<compile_context>
chip_gen: v6e
topology: v6e:2x2x1
jax: 0.10.0
libtpu: 0.0.40
codegen_flags: <defaults>
</compile_context>

<pallas_src>
import functools

import jax
import jax.numpy as jnp
from jax.experimental import pallas as pl
from jax.experimental.pallas import tpu as pltpu

D = 1024  # feature width fixed by the module (nn.Linear(1024, ...))


# ----------------------------------------------------------------------------
# Pallas kernel: per-modality attention + confidence + gating + fuse partial
# ----------------------------------------------------------------------------
def _fusion_kernel(conf_col,
                   obs_ref,        # (1, TB, 1024) f32   observation tile
                   w_att_ref,      # (1, 1024, 1024) bf16 attention weight
                   b_att_ref,      # (1, 1, 1024)   f32   attention bias
                   w_conf_ref,     # (1, 1, 1024)   f32   confidence weight
                   b_conf_ref,     # (1, 1, 1)      f32   confidence bias
                   w_fuse_ref,     # (1, 1024, F)   bf16  [obs|rep] fuse weight half
                   partial_ref,    # (1, TB, F)     f32   fuse partial (+conf column)
                   att_ref):       # (1, TB, 1024)  bf16  attention gate
    obs = obs_ref[0]                                   # (TB, 1024) f32
    obs_bf = obs.astype(jnp.bfloat16)

    # attention gate: sigmoid(Linear(1024 -> 1024)), bf16 weights, f32 acc
    att = jax.nn.sigmoid(
        jnp.dot(obs_bf, w_att_ref[0], preferred_element_type=jnp.float32)
        + b_att_ref[0])                                # (TB, 1024) f32

    # confidence scalar: Linear(1024 -> 1) as VPU mul + lane (XLU) reduction, f32
    conf = (jnp.sum(obs * w_conf_ref[0], axis=-1, keepdims=True)
            + b_conf_ref[0])                           # (TB, 1) f32

    # gated observation (confidence is applied AFTER the matmul — it commutes)
    mod = obs * att                                    # (TB, 1024) f32

    # fuse-head partial for this modality's half of the 2048-d concat:
    # columns [0:C] -> output_observation, [C:2C] -> output_representation
    partial = jnp.dot(mod.astype(jnp.bfloat16), w_fuse_ref[0],
                      preferred_element_type=jnp.float32)   # (TB, F) f32
    partial = partial * conf                           # per-row scale in f32

    # pack the confidence scalar into spare lane column `conf_col` so the
    # kernel emits a single lane-dense, unmasked store per tile.
    col = jax.lax.broadcasted_iota(jnp.int32, partial.shape, 1)
    partial_ref[0] = jnp.where(col == conf_col, conf, partial)
    att_ref[0] = att.astype(att_ref.dtype)             # bf16 writeback


def fusion_head_pallas(obs_clinical, obs_axial, p):
    """obs_* are (B, 1024) f32. Returns the module's fusion-path outputs."""
    B = obs_clinical.shape[0]
    C = p["num_classes"]
    conf_col = 2 * C
    F = p["w_fuse"].shape[-1]

    # batch tiling: sublane-pad to 8, then cap the per-step tile at 256 rows
    B_pad = ((B + 7) // 8) * 8
    TB = min(B_pad, 256)
    B_pad = ((B_pad + TB - 1) // TB) * TB
    n_bt = B_pad // TB

    # stack modalities: index 0 = clinical, index 1 = axial; pad batch
    obs = jnp.stack([obs_clinical, obs_axial], axis=0).astype(jnp.float32)
    if B_pad != B:
        obs = jnp.pad(obs, ((0, 0), (0, B_pad - B), (0, 0)))

    # weights stay resident across the (inner) batch axis: index_map ignores b
    w_idx = lambda m, b: (m, 0, 0)
    x_idx = lambda m, b: (m, b, 0)
    in_specs = [
        pl.BlockSpec((1, TB, D), x_idx),     # obs tile
        pl.BlockSpec((1, D, D), w_idx),      # w_att (bf16)
        pl.BlockSpec((1, 1, D), w_idx),      # b_att
        pl.BlockSpec((1, 1, D), w_idx),      # w_conf
        pl.BlockSpec((1, 1, 1), w_idx),      # b_conf
        pl.BlockSpec((1, D, F), w_idx),      # w_fuse (bf16)
    ]
    out_specs = [
        pl.BlockSpec((1, TB, F), x_idx),     # fuse partial + conf column (f32)
        pl.BlockSpec((1, TB, D), x_idx),     # attention gate (bf16)
    ]
    out_shapes = (
        jax.ShapeDtypeStruct((2, B_pad, F), jnp.float32),
        jax.ShapeDtypeStruct((2, B_pad, D), jnp.bfloat16),
    )

    partial_out, att_out = pl.pallas_call(
        functools.partial(_fusion_kernel, conf_col),
        out_shape=out_shapes,
        grid_spec=pltpu.PrefetchScalarGridSpec(
            num_scalar_prefetch=0,
            grid=(2, n_bt),                  # modality outer, batch inner
            in_specs=in_specs,
            out_specs=out_specs,
        ),
        compiler_params=pltpu.CompilerParams(
            dimension_semantics=("parallel", "parallel"),
            vmem_limit_bytes=16 << 20,
        ),
    )(obs, p["w_att"], p["b_att"], p["w_conf"], p["b_conf"], p["w_fuse"])

    # cross-modality sum of the fuse-head partials + biases (tiny, plain JAX)
    fuse = partial_out[0, :B, :2 * C] + partial_out[1, :B, :2 * C]
    out_obs_fuse = fuse[:, :C] + p["b_fuse_obs"]
    out_rep_fuse = fuse[:, C:2 * C] + p["b_fuse_rep"]

    conf_cl = partial_out[0, :B, conf_col:conf_col + 1]   # (B, 1) f32
    conf_ax = partial_out[1, :B, conf_col:conf_col + 1]   # (B, 1) f32
    att_cl = att_out[0, :B]                                # (B, 1024) bf16
    att_ax = att_out[1, :B]                                # (B, 1024) bf16
    return out_obs_fuse, out_rep_fuse, conf_ax, conf_cl, att_ax, att_cl


# ----------------------------------------------------------------------------
# Backbone stubs (external to the module under implementation) — plain JAX glue
# ----------------------------------------------------------------------------
def clinical_backbone_stub(clinical, p):
    """clinical: (B, len_clinical) -> (output_observation, observation)."""
    obs = jax.nn.relu(clinical @ p["w_feat"] + p["b_feat"])          # (B, 1024)
    out = obs @ p["w_head"] + p["b_head"]                            # (B, C)
    return out, obs


def image_backbone_stub(x_nchw, p):
    """x: (B, C, H, W) NCHW -> (output_observation, observation (B,1024))."""
    pooled = jnp.mean(x_nchw, axis=(2, 3))                           # (B, C_in)
    obs = jax.nn.relu(pooled @ p["w_feat"] + p["b_feat"])            # (B, 1024)
    out = obs @ p["w_head"] + p["b_head"]                            # (B, C)
    return out, obs


# ----------------------------------------------------------------------------
# Full forward (use_fuse_clinical_axial=True, use_CONF=True, use_ATTEN=True)
# ----------------------------------------------------------------------------
def model_forward(x_axial, x_coronal, clinical, params):
    del x_coronal  # not used on the clinical+axial fusion path
    out_obs_clinical, obs_clinical = clinical_backbone_stub(
        clinical, params["clinical_backbone"])
    out_obs_axial, obs_axial = image_backbone_stub(
        x_axial, params["axial_backbone"])

    (out_obs_fuse, out_rep_fuse,
     conf_ax, conf_cl, att_ax, att_cl) = fusion_head_pallas(
        obs_clinical, obs_axial, params["fusion"])

    # mirrors the PyTorch return structure
    return ((out_obs_fuse, out_rep_fuse),
            (out_obs_axial, out_obs_clinical),
            (conf_ax, conf_cl),
            (att_ax, att_cl))


# ----------------------------------------------------------------------------
# Deterministic parameter init (torch-equivalent weights, packed for the kernel)
# ----------------------------------------------------------------------------
def init_params(key, len_clinical, img_channels, num_classes):
    ks = iter(jax.random.split(key, 24))

    def w(shape, scale=0.02):
        return (scale * jax.random.normal(next(ks), shape)).astype(jnp.float32)

    C = num_classes
    F = ((2 * C + 1 + 127) // 128) * 128   # lane-dense fuse width (+1 conf col)

    # torch-equivalent (in_features, out_features) weights
    w_att_cl, b_att_cl = w((D, D)), w((1, D))
    w_att_ax, b_att_ax = w((D, D)), w((1, D))
    w_conf_cl, b_conf_cl = w((1, D)), w((1, 1))
    w_conf_ax, b_conf_ax = w((1, D)), w((1, 1))
    # fuse head on concat([clinical, axial]) (2048 -> C) split into modality halves
    w_fobs_cl, w_fobs_ax, b_fobs = w((D, C)), w((D, C)), w((1, C))
    w_frep_cl, w_frep_ax, b_frep = w((D, C)), w((D, C)), w((1, C))

    # combined lane-dense fuse weight per modality: cols [0:C]=obs, [C:2C]=rep,
    # column 2C is left zero so the confidence scalar can ride in it.
    w_fuse = jnp.zeros((2, D, F), jnp.float32)
    w_fuse = w_fuse.at[0, :, :C].set(w_fobs_cl).at[0, :, C:2 * C].set(w_frep_cl)
    w_fuse = w_fuse.at[1, :, :C].set(w_fobs_ax).at[1, :, C:2 * C].set(w_frep_ax)

    fusion = {
        "num_classes": C,
        "w_att": jnp.stack([w_att_cl, w_att_ax]).astype(jnp.bfloat16),  # (2,D,D)
        "b_att": jnp.stack([b_att_cl, b_att_ax]),                       # (2,1,D)
        "w_conf": jnp.stack([w_conf_cl, w_conf_ax]),                    # (2,1,D)
        "b_conf": jnp.stack([b_conf_cl, b_conf_ax]),                    # (2,1,1)
        "w_fuse": w_fuse.astype(jnp.bfloat16),                          # (2,D,F)
        "b_fuse_obs": b_fobs,                                           # (1,C)
        "b_fuse_rep": b_frep,                                           # (1,C)
    }
    clinical_backbone = {
        "w_feat": w((len_clinical, D)), "b_feat": w((1, D)),
        "w_head": w((D, C)), "b_head": w((1, C)),
    }
    axial_backbone = {
        "w_feat": w((img_channels, D)), "b_feat": w((1, D)),
        "w_head": w((D, C)), "b_head": w((1, C)),
    }
    return {"fusion": fusion,
            "clinical_backbone": clinical_backbone,
            "axial_backbone": axial_backbone}


if __name__ == "__main__":
    B, C_IMG, H, W = 4, 4, 16, 16
    LEN_CLINICAL = 16
    NUM_CLASSES = 8

    key = jax.random.PRNGKey(0)
    k_x, k_c, k_p = jax.random.split(key, 3)

    x_axial = jax.random.normal(k_x, (B, C_IMG, H, W), dtype=jnp.float32)
    x_coronal = jnp.zeros((B, C_IMG, H, W), dtype=jnp.float32)  # unused on this path
    clinical = jax.random.normal(k_c, (B, LEN_CLINICAL), dtype=jnp.float32)

    params = init_params(k_p, LEN_CLINICAL, C_IMG, NUM_CLASSES)

    out = model_forward(x_axial, x_coronal, clinical, params)
    jax.block_until_ready(out)

    # light sanity checks on shapes
    (oof, orf), (ooa, ooc), (cax, ccl), (aax, acl) = out
    assert oof.shape == (B, NUM_CLASSES) and orf.shape == (B, NUM_CLASSES)
    assert ooa.shape == (B, NUM_CLASSES) and ooc.shape == (B, NUM_CLASSES)
    assert cax.shape == (B, 1) and ccl.shape == (B, 1)
    assert aax.shape == (B, D) and acl.shape == (B, D)

    print("KERNEL_OK")
</pallas_src>

<mosaic_0001>
module attributes {stable_mosaic.version = 11 : i64} {
  func.func @_fusion_kernel(%arg0: i32, %arg1: i32, %arg2: memref<1x8x1024xf32, #tpu.memory_space<vmem>>, %arg3: memref<1x1024x1024xbf16, #tpu.memory_space<vmem>>, %arg4: memref<1x1x1024xf32, #tpu.memory_space<vmem>>, %arg5: memref<1x1x1024xf32, #tpu.memory_space<vmem>>, %arg6: memref<1x1x1xf32, #tpu.memory_space<vmem>>, %arg7: memref<1x1024x128xbf16, #tpu.memory_space<vmem>>, %arg8: memref<1x8x128xf32, #tpu.memory_space<vmem>>, %arg9: memref<1x8x1024xbf16, #tpu.memory_space<vmem>>) attributes {dimension_semantics = [#tpu.dimension_semantics<parallel>, #tpu.dimension_semantics<parallel>], iteration_bounds = array<i64: 2, 1>, scalar_prefetch = 0 : i64, scratch_operands = 0 : i64, tpu.core_type = #tpu.core_type<tc>, window_params = [{transform_indices = @transform_0, window_bounds = array<i64: 1, 8, 1024>}, {transform_indices = @transform_1, window_bounds = array<i64: 1, 1024, 1024>}, {transform_indices = @transform_2, window_bounds = array<i64: 1, 1, 1024>}, {transform_indices = @transform_3, window_bounds = array<i64: 1, 1, 1024>}, {transform_indices = @transform_4, window_bounds = array<i64: 1, 1, 1>}, {transform_indices = @transform_5, window_bounds = array<i64: 1, 1024, 128>}, {transform_indices = @transform_6, window_bounds = array<i64: 1, 8, 128>}, {transform_indices = @transform_7, window_bounds = array<i64: 1, 8, 1024>}]} {
    %c0 = arith.constant 0 : index
    %c0_0 = arith.constant 0 : index
    %c0_1 = arith.constant 0 : index
    %0 = vector.load %arg2[%c0, %c0_0, %c0_1] : memref<1x8x1024xf32, #tpu.memory_space<vmem>>, vector<1x8x1024xf32>
    %1 = vector.shape_cast %0 : vector<1x8x1024xf32> to vector<8x1024xf32>
    %2 = arith.truncf %1 : vector<8x1024xf32> to vector<8x1024xbf16>
    %c0_2 = arith.constant 0 : index
    %c0_3 = arith.constant 0 : index
    %c0_4 = arith.constant 0 : index
    %3 = vector.load %arg3[%c0_2, %c0_3, %c0_4] : memref<1x1024x1024xbf16, #tpu.memory_space<vmem>>, vector<1x1024x1024xbf16>
    %4 = vector.shape_cast %3 : vector<1x1024x1024xbf16> to vector<1024x1024xbf16>
    %cst = arith.constant dense<0.000000e+00> : vector<8x1024xf32>
    %5 = tpu.matmul %2, %4, %cst {dimension_numbers = #tpu.dot_dimension_numbers<[1], [0], [0], [1], [0, 0, 1, 1], [], []>} : vector<8x1024xbf16>, vector<1024x1024xbf16>, vector<8x1024xf32> -> vector<8x1024xf32>
    %c0_5 = arith.constant 0 : index
    %c0_6 = arith.constant 0 : index
    %c0_7 = arith.constant 0 : index
    %6 = vector.load %arg4[%c0_5, %c0_6, %c0_7] : memref<1x1x1024xf32, #tpu.memory_space<vmem>>, vector<1x1x1024xf32>
    %7 = vector.shape_cast %6 : vector<1x1x1024xf32> to vector<1x1024xf32>
    %8 = vector.broadcast %7 : vector<1x1024xf32> to vector<8x1024xf32>
    %9 = arith.addf %5, %8 : vector<8x1024xf32>
    %10 = arith.negf %9 : vector<8x1024xf32>
    %11 = math.exp %10 : vector<8x1024xf32>
    %cst_8 = arith.constant 1.000000e+00 : f32
    %12 = vector.broadcast %cst_8 : f32 to vector<8x1024xf32>
    %13 = arith.addf %12, %11 : vector<8x1024xf32>
    %14 = arith.divf %12, %13 : vector<8x1024xf32>
    %c0_9 = arith.constant 0 : index
    %c0_10 = arith.constant 0 : index
    %c0_11 = arith.constant 0 : index
    %15 = vector.load %arg5[%c0_9, %c0_10, %c0_11] : memref<1x1x1024xf32, #tpu.memory_space<vmem>>, vector<1x1x1024xf32>
    %16 = vector.shape_cast %15 : vector<1x1x1024xf32> to vector<1x1024xf32>
    %17 = vector.broadcast %16 : vector<1x1024xf32> to vector<8x1024xf32>
    %18 = arith.mulf %1, %17 : vector<8x1024xf32>
    %cst_12 = arith.constant dense<0.000000e+00> : vector<8xf32>
    %19 = vector.multi_reduction <add>, %18, %cst_12 [1] : vector<8x1024xf32> to vector<8xf32>
    %20 = vector.shape_cast %19 : vector<8xf32> to vector<8x1xf32>
    %c0_13 = arith.constant 0 : index
    %c0_14 = arith.constant 0 : index
    %c0_15 = arith.constant 0 : index
    %21 = vector.load %arg6[%c0_13, %c0_14, %c0_15] : memref<1x1x1xf32, #tpu.memory_space<vmem>>, vector<1x1x1xf32>
    %22 = vector.shape_cast %21 : vector<1x1x1xf32> to vector<1x1xf32>
    %23 = vector.broadcast %22 : vector<1x1xf32> to vector<8x1xf32>
    %24 = arith.addf %20, %23 : vector<8x1xf32>
    %25 = arith.mulf %1, %14 : vector<8x1024xf32>
    %26 = arith.truncf %25 : vector<8x1024xf32> to vector<8x1024xbf16>
    %c0_16 = arith.constant 0 : index
    %c0_17 = arith.constant 0 : index
    %c0_18 = arith.constant 0 : index
    %27 = vector.load %arg7[%c0_16, %c0_17, %c0_18] : memref<1x1024x128xbf16, #tpu.memory_space<vmem>>, vector<1x1024x128xbf16>
    %28 = vector.shape_cast %27 : vector<1x1024x128xbf16> to vector<1024x128xbf16>
    %cst_19 = arith.constant dense<0.000000e+00> : vector<8x128xf32>
    %29 = tpu.matmul %26, %28, %cst_19 {dimension_numbers = #tpu.dot_dimension_numbers<[1], [0], [0], [1], [0, 0, 1, 1], [], []>} : vector<8x1024xbf16>, vector<1024x128xbf16>, vector<8x128xf32> -> vector<8x128xf32>
    %30 = vector.broadcast %24 : vector<8x1xf32> to vector<8x128xf32>
    %31 = arith.mulf %29, %30 : vector<8x128xf32>
    %32 = tpu.iota {dimensions = array<i32: 1>} : vector<8x128xi32>
    %c16_i32 = arith.constant 16 : i32
    %33 = vector.broadcast %c16_i32 : i32 to vector<8x128xi32>
    %34 = arith.cmpi eq, %32, %33 : vector<8x128xi32>
    %35 = vector.shape_cast %24 : vector<8x1xf32> to vector<8x1xf32>
    %36 = vector.broadcast %35 : vector<8x1xf32> to vector<8x128xf32>
    %37 = arith.select %34, %36, %31 : vector<8x128xi1>, vector<8x128xf32>
    %c0_20 = arith.constant 0 : index
    %c0_21 = arith.constant 0 : index
    %c0_22 = arith.constant 0 : index
    %38 = vector.load %arg8[%c0_20, %c0_21, %c0_22] : memref<1x8x128xf32, #tpu.memory_space<vmem>>, vector<1x8x128xf32>
    %39 = vector.shape_cast %38 : vector<1x8x128xf32> to vector<8x128xf32>
    %40 = vector.shape_cast %37 : vector<8x128xf32> to vector<1x8x128xf32>
    tpu.vector_store %arg8[%c0_20, %c0_21, %c0_22], %40 {strides = array<i32>} : memref<1x8x128xf32, #tpu.memory_space<vmem>>, vector<1x8x128xf32>,
    %41 = arith.truncf %14 : vector<8x1024xf32> to vector<8x1024xbf16>
    %c0_23 = arith.constant 0 : index
    %c0_24 = arith.constant 0 : index
    %c0_25 = arith.constant 0 : index
    %42 = vector.load %arg9[%c0_23, %c0_24, %c0_25] : memref<1x8x1024xbf16, #tpu.memory_space<vmem>>, vector<1x8x1024xbf16>
    %43 = vector.shape_cast %42 : vector<1x8x1024xbf16> to vector<8x1024xbf16>
    %44 = vector.shape_cast %41 : vector<8x1024xbf16> to vector<1x8x1024xbf16>
    tpu.vector_store %arg9[%c0_23, %c0_24, %c0_25], %44 {strides = array<i32>} : memref<1x8x1024xbf16, #tpu.memory_space<vmem>>, vector<1x8x1024xbf16>,
    return
  }
  func.func @transform_0(%arg0: i32, %arg1: i32) -> (i32, i32, i32) {
    %c0_i32 = arith.constant 0 : i32
    %c0_i32_0 = arith.constant 0 : i32
    return %arg0, %arg1, %c0_i32 : i32, i32, i32
  }
  func.func @transform_1(%arg0: i32, %arg1: i32) -> (i32, i32, i32) {
    %c0_i32 = arith.constant 0 : i32
    %c0_i32_0 = arith.constant 0 : i32
    %c0_i32_1 = arith.constant 0 : i32
    return %arg0, %c0_i32, %c0_i32_0 : i32, i32, i32
  }
  func.func @transform_2(%arg0: i32, %arg1: i32) -> (i32, i32, i32) {
    %c0_i32 = arith.constant 0 : i32
    %c0_i32_0 = arith.constant 0 : i32
    %c0_i32_1 = arith.constant 0 : i32
    return %arg0, %c0_i32, %c0_i32_0 : i32, i32, i32
  }
  func.func @transform_3(%arg0: i32, %arg1: i32) -> (i32, i32, i32) {
    %c0_i32 = arith.constant 0 : i32
    %c0_i32_0 = arith.constant 0 : i32
    %c0_i32_1 = arith.constant 0 : i32
    return %arg0, %c0_i32, %c0_i32_0 : i32, i32, i32
  }
  func.func @transform_4(%arg0: i32, %arg1: i32) -> (i32, i32, i32) {
    %c0_i32 = arith.constant 0 : i32
    %c0_i32_0 = arith.constant 0 : i32
    %c0_i32_1 = arith.constant 0 : i32
    return %arg0, %c0_i32, %c0_i32_0 : i32, i32, i32
  }
  func.func @transform_5(%arg0: i32, %arg1: i32) -> (i32, i32, i32) {
    %c0_i32 = arith.constant 0 : i32
    %c0_i32_0 = arith.constant 0 : i32
    %c0_i32_1 = arith.constant 0 : i32
    return %arg0, %c0_i32, %c0_i32_0 : i32, i32, i32
  }
  func.func @transform_6(%arg0: i32, %arg1: i32) -> (i32, i32, i32) {
    %c0_i32 = arith.constant 0 : i32
    %c0_i32_0 = arith.constant 0 : i32
    return %arg0, %arg1, %c0_i32 : i32, i32, i32
  }
  func.func @transform_7(%arg0: i32, %arg1: i32) -> (i32, i32, i32) {
    %c0_i32 = arith.constant 0 : i32
    %c0_i32_0 = arith.constant 0 : i32
    return %arg0, %arg1, %c0_i32 : i32, i32, i32
  }
}

</mosaic_0001>

<llo_original>
// kernel: tpu_custom_call.1
$region0: #{tpu_custom_call.1}
  #allocation0 [shape = 'u32[]', space=smem, size = 0x4, offset = 0x4, fixed_abs, tag = 'smem constant byte address 0x4 - core index']
  #allocation1 [shape = 'u32[144,128]{1,0:T(1,128)}', space=vmem, size = 0x12000, scoped, tag = 'internal scratch']
  %s0 = inlined_call_operand.hbm [shape: f32[2,8,1024], index: 0, kind: input, shape index: {}]
  %s1 = inlined_call_operand.hbm [shape: bf16[2,1024,1024], index: 1, kind: input, shape index: {}]
  %s2 = inlined_call_operand.hbm [shape: f32[2,1,1024], index: 2, kind: input, shape index: {}]
  %s3 = inlined_call_operand.hbm [shape: f32[2,1,1024], index: 3, kind: input, shape index: {}]
  %s4 = inlined_call_operand.vmem [shape: f32[2,1,1], index: 4, kind: input, shape index: {}]
  %s5 = inlined_call_operand.hbm [shape: bf16[2,1024,128], index: 5, kind: input, shape index: {}]
  %s6 = inlined_call_operand.hbm [shape: f32[2,8,128], index: 6, kind: output, shape index: {0}]
  %s7 = inlined_call_operand.hbm [shape: bf16[2,8,1024], index: 7, kind: output, shape index: {1}]
  %8 = xla_tuple %s6, %s7
  %s9 = sld [smem:[#allocation0]]
  $region85: #{tpu_custom_call.1} parent=0
    _
  %s11 = ssub.s32 1, %s9
  %s12 = scalar_select 0, %s11, %s9
  $region1: #{tpu_custom_call.1} parent=0
    #allocation2 [shape = 'u8[65536]{0}', space=vmem, size = 0x10000, scoped, tag = 'input window, operand 0']
    #allocation3 [shape = 's32[2]{0}', space=sflag, size = 0x8, scoped, tag = 'scoped memory for tpu_custom_call.1']
    #allocation4 [shape = 's32[2]{0}', space=sflag, size = 0x8, scoped, tag = 'scoped memory for tpu_custom_call.1']
    #allocation5 [shape = 'u8[4194304]{0}', space=vmem, size = 0x400000, scoped, tag = 'input window, operand 1']
    #allocation6 [shape = 's32[2]{0}', space=sflag, size = 0x8, scoped, tag = 'scoped memory for tpu_custom_call.1']
    #allocation7 [shape = 'u8[8192]{0}', space=vmem, size = 0x2000, scoped, tag = 'input window, operand 2']
    #allocation8 [shape = 'u8[8192]{0}', space=vmem, size = 0x2000, scoped, tag = 'input window, operand 3']
    #allocation9 [shape = 's32[2]{0}', space=sflag, size = 0x8, scoped, tag = 'scoped memory for tpu_custom_call.1']
    #allocation10 [shape = 'u8[524288]{0}', space=vmem, size = 0x80000, scoped, tag = 'input window, operand 5']
    #allocation11 [shape = 'u8[8192]{0}', space=vmem, size = 0x2000, scoped, tag = 'output window, operand 0']
    #allocation12 [shape = 'u8[32768]{0}', space=vmem, size = 0x8000, scoped, tag = 'output window, operand 1']
    #allocation13 [shape = 's32[2]{0}', space=sflag, size = 0x8, scoped, tag = 'scoped memory for tpu_custom_call.1']
    %13 = vsyncpa [#allocation3], 0
    %s14 = scalar_lea.sflag [#allocation3], 1
    %15 = vsyncpa %s14, 0
    %16 = vsyncpa [#allocation6], 0
    %s17 = scalar_lea.sflag [#allocation6], 1
    %18 = vsyncpa %s17, 0
    %19 = vsyncpa [#allocation9], 0
    %s20 = scalar_lea.sflag [#allocation9], 1
    %21 = vsyncpa %s20, 0
    %22 = vsyncpa [#allocation4], 0
    %s23 = scalar_lea.sflag [#allocation4], 1
    %24 = vsyncpa %s23, 0
    %25 = vsyncpa [#allocation13], 0
    %s26 = scalar_lea.sflag [#allocation13], 1
    %27 = vsyncpa %s26, 0
    loop: start=0, step=1, limit=4
    $region2: #{tpu_custom_call.1} parent=1 // loop_pre_header
      _
    $region3: #{tpu_custom_call.1} parent=1 // loop_header
      %s29 = sphi 0, %s33
      %p30 = scmp.ge.s32.totalorder %s29, 4
      %s36 = sphi 0, %s48
      %s37 = sphi 0, %s44
      %s38 = sphi 0, %s36
      %s39 = sphi 0, %s37
      %s40 = sphi 0, %s38
      %s41 = sphi 0, %s39
      %s53 = sphi 0, %s55
      %s56 = sphi 0, %s53
      %s57 = sphi 0, %s56
      %s73 = sphi 0, %s57
      %s79 = sphi 0, %s81
      %s82 = sphi 0, %s79
      %s83 = sphi 0, %s82
      %s99 = sphi 0, %s83
      %s105 = sphi 0, %s107
      %s108 = sphi 0, %s105
      %s109 = sphi 0, %s108
      %s125 = sphi 0, %s109
      %s131 = sphi 0, %s133
      %s134 = sphi 0, %s131
      %s135 = sphi 0, %s134
      %s151 = sphi 0, %s135
      %s157 = sphi 0, %s159
      %s160 = sphi 0, %s157
      %s161 = sphi 0, %s160
      %s177 = sphi 0, %s161
      %s183 = sphi 0, %s185
      %s186 = sphi 0, %s183
      %s187 = sphi 0, %s186
      %s203 = sphi 0, %s187
      %s211 = sphi 0, %s213
      %s214 = sphi 0, %s211
      %s215 = sphi 0, %s214
      %s231 = sphi 0, %s215
      %s239 = sphi 0, %s241
      %s242 = sphi 0, %s239
      %s243 = sphi 0, %s242
      %s259 = sphi 0, %s243
    $region4: #{tpu_custom_call.1} parent=1 // loop_header_branch
      %32 = sbr.rel (%p30) target = $region8
    $region5: #{tpu_custom_call.1} parent=1 // loop_body
      %s34 = ssub.s32 %s29, 1
      %s35 = ssub.s32 %s29, 2
      %s42 = sadd.s32 1, %s37
      %p43 = scmp.ge.s32.totalorder %s42, 1
      %s44 = scalar_select %p43, 0, %s42
      %s45 = sadd.s32 1, %s36
      %s46 = scalar_select %p43, %s45, %s36
      %p47 = scmp.ge.s32.totalorder %s46, 2
      %s48 = scalar_select %p47, 0, %s46
      %s49 = ssub.s32 %s36, %s48
      %s50 = ssub.s32 %s37, %s44
      %s51 = sor.u32 %s49, %s50
      %p52 = scmp.eq.s32.totalorder %s51, 0
      %s54 = sadd.s32 %s53, 1
      %s55 = scalar_select %p52, %s53, %s54
      %p58 = pneg %p52
      %p59 = scmp.eq.s32.totalorder %s29, 1
      %p60 = por %p58, %p59
      %p61 = scmp.ne.s32.totalorder %s53, %s56
      %p62 = scmp.eq.s32.totalorder %s29, 0
      %p63 = por %p61, %p62
      %p64 = scmp.ne.s32.totalorder %s53, %s56
      %p65 = scmp.eq.s32.totalorder %s34, 1
      %p66 = por %p64, %p65
      %p67 = scmp.ne.s32.totalorder %s56, %s57
      %p68 = scmp.eq.s32.totalorder %s34, 0
      %p69 = por %p67, %p68
      %p70 = scmp.ne.s32.totalorder %s56, %s57
      %p71 = scmp.eq.s32.totalorder %s35, 1
      %p72 = por %p70, %p71
      %p74 = scmp.ne.s32.totalorder %s57, %s73
      %p75 = scmp.eq.s32.totalorder %s35, 0
      %p76 = por %p74, %p75
      %s77 = ssub.s32 %s36, %s48
      %p78 = scmp.eq.s32.totalorder %s77, 0
      %s80 = sadd.s32 %s79, 1
      %s81 = scalar_select %p78, %s79, %s80
      %p84 = pneg %p78
      %p85 = scmp.eq.s32.totalorder %s29, 1
      %p86 = por %p84, %p85
      %p87 = scmp.ne.s32.totalorder %s79, %s82
      %p88 = scmp.eq.s32.totalorder %s29, 0
      %p89 = por %p87, %p88
      %p90 = scmp.ne.s32.totalorder %s79, %s82
      %p91 = scmp.eq.s32.totalorder %s34, 1
      %p92 = por %p90, %p91
      %p93 = scmp.ne.s32.totalorder %s82, %s83
      %p94 = scmp.eq.s32.totalorder %s34, 0
      %p95 = por %p93, %p94
      %p96 = scmp.ne.s32.totalorder %s82, %s83
      %p97 = scmp.eq.s32.totalorder %s35, 1
      %p98 = por %p96, %p97
      %p100 = scmp.ne.s32.totalorder %s83, %s99
      %p101 = scmp.eq.s32.totalorder %s35, 0
      %p102 = por %p100, %p101
      %s103 = ssub.s32 %s36, %s48
      %p104 = scmp.eq.s32.totalorder %s103, 0
      %s106 = sadd.s32 %s105, 1
      %s107 = scalar_select %p104, %s105, %s106
      %p110 = pneg %p104
      %p111 = scmp.eq.s32.totalorder %s29, 1
      %p112 = por %p110, %p111
      %p113 = scmp.ne.s32.totalorder %s105, %s108
      %p114 = scmp.eq.s32.totalorder %s29, 0
      %p115 = por %p113, %p114
      %p116 = scmp.ne.s32.totalorder %s105, %s108
      %p117 = scmp.eq.s32.totalorder %s34, 1
      %p118 = por %p116, %p117
      %p119 = scmp.ne.s32.totalorder %s108, %s109
      %p120 = scmp.eq.s32.totalorder %s34, 0
      %p121 = por %p119, %p120
      %p122 = scmp.ne.s32.totalorder %s108, %s109
      %p123 = scmp.eq.s32.totalorder %s35, 1
      %p124 = por %p122, %p123
      %p126 = scmp.ne.s32.totalorder %s109, %s125
      %p127 = scmp.eq.s32.totalorder %s35, 0
      %p128 = por %p126, %p127
      %s129 = ssub.s32 %s36, %s48
      %p130 = scmp.eq.s32.totalorder %s129, 0
      %s132 = sadd.s32 %s131, 1
      %s133 = scalar_select %p130, %s131, %s132
      %p136 = pneg %p130
      %p137 = scmp.eq.s32.totalorder %s29, 1
      %p138 = por %p136, %p137
      %p139 = scmp.ne.s32.totalorder %s131, %s134
      %p140 = scmp.eq.s32.totalorder %s29, 0
      %p141 = por %p139, %p140
      %p142 = scmp.ne.s32.totalorder %s131, %s134
      %p143 = scmp.eq.s32.totalorder %s34, 1
      %p144 = por %p142, %p143
      %p145 = scmp.ne.s32.totalorder %s134, %s135
      %p146 = scmp.eq.s32.totalorder %s34, 0
      %p147 = por %p145, %p146
      %p148 = scmp.ne.s32.totalorder %s134, %s135
      %p149 = scmp.eq.s32.totalorder %s35, 1
      %p150 = por %p148, %p149
      %p152 = scmp.ne.s32.totalorder %s135, %s151
      %p153 = scmp.eq.s32.totalorder %s35, 0
      %p154 = por %p152, %p153
      %s155 = ssub.s32 %s36, %s48
      %p156 = scmp.eq.s32.totalorder %s155, 0
      %s158 = sadd.s32 %s157, 1
      %s159 = scalar_select %p156, %s157, %s158
      %p162 = pneg %p156
      %p163 = scmp.eq.s32.totalorder %s29, 1
      %p164 = por %p162, %p163
      %p165 = scmp.ne.s32.totalorder %s157, %s160
      %p166 = scmp.eq.s32.totalorder %s29, 0
      %p167 = por %p165, %p166
      %p168 = scmp.ne.s32.totalorder %s157, %s160
      %p169 = scmp.eq.s32.totalorder %s34, 1
      %p170 = por %p168, %p169
      %p171 = scmp.ne.s32.totalorder %s160, %s161
      %p172 = scmp.eq.s32.totalorder %s34, 0
      %p173 = por %p171, %p172
      %p174 = scmp.ne.s32.totalorder %s160, %s161
      %p175 = scmp.eq.s32.totalorder %s35, 1
      %p176 = por %p174, %p175
      %p178 = scmp.ne.s32.totalorder %s161, %s177
      %p179 = scmp.eq.s32.totalorder %s35, 0
      %p180 = por %p178, %p179
      %s181 = ssub.s32 %s36, %s48
      %p182 = scmp.eq.s32.totalorder %s181, 0
      %s184 = sadd.s32 %s183, 1
      %s185 = scalar_select %p182, %s183, %s184
      %p188 = pneg %p182
      %p189 = scmp.eq.s32.totalorder %s29, 1
      %p190 = por %p188, %p189
      %p191 = scmp.ne.s32.totalorder %s183, %s186
      %p192 = scmp.eq.s32.totalorder %s29, 0
      %p193 = por %p191, %p192
      %p194 = scmp.ne.s32.totalorder %s183, %s186
      %p195 = scmp.eq.s32.totalorder %s34, 1
      %p196 = por %p194, %p195
      %p197 = scmp.ne.s32.totalorder %s186, %s187
      %p198 = scmp.eq.s32.totalorder %s34, 0
      %p199 = por %p197, %p198
      %p200 = scmp.ne.s32.totalorder %s186, %s187
      %p201 = scmp.eq.s32.totalorder %s35, 1
      %p202 = por %p200, %p201
      %p204 = scmp.ne.s32.totalorder %s187, %s203
      %p205 = scmp.eq.s32.totalorder %s35, 0
      %p206 = por %p204, %p205
      %s207 = ssub.s32 %s36, %s48
      %s208 = ssub.s32 %s37, %s44
      %s209 = sor.u32 %s207, %s208
      %p210 = scmp.eq.s32.totalorder %s209, 0
      %s212 = sadd.s32 %s211, 1
      %s213 = scalar_select %p210, %s211, %s212
      %p216 = pneg %p210
      %p217 = scmp.eq.s32.totalorder %s29, 1
      %p218 = por %p216, %p217
      %p219 = scmp.ne.s32.totalorder %s211, %s214
      %p220 = scmp.eq.s32.totalorder %s29, 0
      %p221 = por %p219, %p220
      %p222 = scmp.ne.s32.totalorder %s211, %s214
      %p223 = scmp.eq.s32.totalorder %s34, 1
      %p224 = por %p222, %p223
      %p225 = scmp.ne.s32.totalorder %s214, %s215
      %p226 = scmp.eq.s32.totalorder %s34, 0
      %p227 = por %p225, %p226
      %p228 = scmp.ne.s32.totalorder %s214, %s215
      %p229 = scmp.eq.s32.totalorder %s35, 1
      %p230 = por %p228, %p229
      %p232 = scmp.ne.s32.totalorder %s215, %s231
      %p233 = scmp.eq.s32.totalorder %s35, 0
      %p234 = por %p232, %p233
      %s235 = ssub.s32 %s36, %s48
      %s236 = ssub.s32 %s37, %s44
      %s237 = sor.u32 %s235, %s236
      %p238 = scmp.eq.s32.totalorder %s237, 0
      %s240 = sadd.s32 %s239, 1
      %s241 = scalar_select %p238, %s239, %s240
      %p244 = pneg %p238
      %p245 = scmp.eq.s32.totalorder %s29, 1
      %p246 = por %p244, %p245
      %p247 = scmp.ne.s32.totalorder %s239, %s242
      %p248 = scmp.eq.s32.totalorder %s29, 0
      %p249 = por %p247, %p248
      %p250 = scmp.ne.s32.totalorder %s239, %s242
      %p251 = scmp.eq.s32.totalorder %s34, 1
      %p252 = por %p250, %p251
      %p253 = scmp.ne.s32.totalorder %s242, %s243
      %p254 = scmp.eq.s32.totalorder %s34, 0
      %p255 = por %p253, %p254
      %p256 = scmp.ne.s32.totalorder %s242, %s243
      %p257 = scmp.eq.s32.totalorder %s35, 1
      %p258 = por %p256, %p257
      %p260 = scmp.ne.s32.totalorder %s243, %s259
      %p261 = scmp.eq.s32.totalorder %s35, 0
      %p262 = por %p260, %p261
      %p263 = scmp.le.s32.totalorder 1, %s29
      %p264 = scmp.lt.s32.totalorder %s29, 3
      %p265 = pnand %p263, %p264
      %p266 = pneg %p265
      // Predicated region
      $region9: #{tpu_custom_call.1} parent=5 // pred_check
        _
      $region10: #{tpu_custom_call.1} parent=5 // pred_check_branch
        %268 = sbr.rel (%p265) target = $region12
      $region11: #{tpu_custom_call.1} parent=5 // pred_region
        %s269 = ssub.s32 %s29, 1
      $region12: #{tpu_custom_call.1} parent=5 // pred_fallthru
        _
      %p270 = scmp.lt.s32.totalorder %s29, 2
      // Predicated region
      $region13: #{tpu_custom_call.1} parent=5 // pred_check
        %p271 = pneg %p270
      $region14: #{tpu_custom_call.1} parent=5 // pred_check_branch
        %273 = sbr.rel (%p271) target = $region16
      $region15: #{tpu_custom_call.1} parent=5 // pred_region
        // Predicated region
        $region17: #{tpu_custom_call.1} parent=15 // pred_check
          %p274 = pneg %p63
        $region18: #{tpu_custom_call.1} parent=15 // pred_check_branch
          %276 = sbr.rel (%p274) target = $region20
        $region19: #{tpu_custom_call.1} parent=15 // pred_region
          %s277 = sand.u32 %s53, 1
          %s278 = scalar_lea.sflag [#allocation3], %s277
          %s279 = sand.u32 %s53, 1
          %s280 = smul.addr %s279, 64
          %s281 = scalar_lea.vmem [#allocation2], %s280
          %s283 = ssub.s32 1024, 1024
          %284 = vsyncadd %s278, %s283
          %s285 = smul.addr %s37, 8
          %s286 = smul.addr %s36, 8
          %s287 = sadd.s32 %s285, %s286
          %s288 = smul.addr %s287, 128
          %s289 = scalar_lea.hbm %s0, %s288
          %s291 = sshll.u32 %s281, 4
          %s292 = int_to_ptr.vmem [resolvable:$true] %s291
          %294 = dma.hbm_to_vmem [thread:$0]  %s289, 1024, %s292, %s278
        $region20: #{tpu_custom_call.1} parent=15 // pred_fallthru
          _
        // Predicated region
        $region21: #{tpu_custom_call.1} parent=15 // pred_check
          %p295 = pneg %p89
        $region22: #{tpu_custom_call.1} parent=15 // pred_check_branch
          %297 = sbr.rel (%p295) target = $region24
        $region23: #{tpu_custom_call.1} parent=15 // pred_region
          %s298 = sand.u32 %s29, 1
          %s299 = scalar_lea.sflag [#allocation6], %s298
          %s300 = sand.u32 %s79, 1
          %s301 = smul.addr %s300, 4096
          %s302 = scalar_lea.vmem [#allocation5], %s301
          %s304 = ssub.s32 65536, 65536
          %305 = vsyncadd %s299, %s304
          %s306 = smul.addr %s36, 1024
          %s307 = smul.addr %s306, 64
          %s308 = scalar_lea.hbm %s1, %s307
          %s309 = sshll.u32 %s302, 4
          %s310 = int_to_ptr.vmem [resolvable:$true] %s309
          %315 = dma.hbm_to_vmem [thread:$0]  %s308, 65536, %s310, %s299, 512, 512, 32
        $region24: #{tpu_custom_call.1} parent=15 // pred_fallthru
          _
        // Predicated region
        $region25: #{tpu_custom_call.1} parent=15 // pred_check
          %p316 = pneg %p115
        $region26: #{tpu_custom_call.1} parent=15 // pred_check_branch
          %318 = sbr.rel (%p316) target = $region28
        $region27: #{tpu_custom_call.1} parent=15 // pred_region
          %s319 = sand.u32 %s29, 1
          %s320 = scalar_lea.sflag [#allocation6], %s319
          %s321 = sand.u32 %s105, 1
          %s322 = smul.addr %s321, 8
          %s323 = scalar_lea.vmem [#allocation7], %s322
          %s325 = ssub.s32 128, 128
          %326 = vsyncadd %s320, %s325
          %s327 = smul.addr %s36, 8
          %s328 = smul.addr %s327, 16
          %s329 = scalar_lea.hbm %s2, %s328
          %s331 = sshll.u32 %s323, 4
          %s332 = int_to_ptr.vmem [resolvable:$true] %s331
          %334 = dma.hbm_to_vmem [thread:$0]  %s329, 128, %s332, %s320
        $region28: #{tpu_custom_call.1} parent=15 // pred_fallthru
          _
        // Predicated region
        $region29: #{tpu_custom_call.1} parent=15 // pred_check
          %p335 = pneg %p141
        $region30: #{tpu_custom_call.1} parent=15 // pred_check_branch
          %337 = sbr.rel (%p335) target = $region32
        $region31: #{tpu_custom_call.1} parent=15 // pred_region
          %s338 = sand.u32 %s29, 1
          %s339 = scalar_lea.sflag [#allocation9], %s338
          %s340 = sand.u32 %s131, 1
          %s341 = smul.addr %s340, 8
          %s342 = scalar_lea.vmem [#allocation8], %s341
          %s344 = ssub.s32 128, 128
          %345 = vsyncadd %s339, %s344
          %s346 = smul.addr %s36, 8
          %s347 = smul.addr %s346, 16
          %s348 = scalar_lea.hbm %s3, %s347
          %s350 = sshll.u32 %s342, 4
          %s351 = int_to_ptr.vmem [resolvable:$true] %s350
          %353 = dma.hbm_to_vmem [thread:$0]  %s348, 128, %s351, %s339
        $region32: #{tpu_custom_call.1} parent=15 // pred_fallthru
          _
        // Predicated region
        $region33: #{tpu_custom_call.1} parent=15 // pred_check
          %p354 = pneg %p167
        $region34: #{tpu_custom_call.1} parent=15 // pred_check_branch
          %356 = sbr.rel (%p354) target = $region36
        $region35: #{tpu_custom_call.1} parent=15 // pred_region
          %p357 = scmp.lt.s32.totalorder %s36, 1
          %s358 = scalar_select %p357, %s36, 1
          %s359 = scalar_lea.vmem %s4, %s358
        $region36: #{tpu_custom_call.1} parent=15 // pred_fallthru
          _
        // Predicated region
        $region37: #{tpu_custom_call.1} parent=15 // pred_check
          %p360 = pneg %p193
        $region38: #{tpu_custom_call.1} parent=15 // pred_check_branch
          %362 = sbr.rel (%p360) target = $region40
        $region39: #{tpu_custom_call.1} parent=15 // pred_region
          %s363 = sand.u32 %s29, 1
          %s364 = scalar_lea.sflag [#allocation9], %s363
          %s365 = sand.u32 %s183, 1
          %s366 = smul.addr %s365, 512
          %s367 = scalar_lea.vmem [#allocation10], %s366
          %s369 = ssub.s32 8192, 8192
          %370 = vsyncadd %s364, %s369
          %s371 = smul.addr %s36, 128
          %s372 = smul.addr %s371, 64
          %s373 = scalar_lea.hbm %s5, %s372
          %s374 = sshll.u32 %s367, 4
          %s375 = int_to_ptr.vmem [resolvable:$true] %s374
          %380 = dma.hbm_to_vmem [thread:$0]  %s373, 8192, %s375, %s364, 64, 64, 4
        $region40: #{tpu_custom_call.1} parent=15 // pred_fallthru
          _
      $region16: #{tpu_custom_call.1} parent=5 // pred_fallthru
        _
      %p381 = scmp.le.s32.totalorder 1, %s29
      %p382 = scmp.lt.s32.totalorder %s29, 3
      %p383 = pnand %p381, %p382
      %p384 = pneg %p383
      // Predicated region
      $region41: #{tpu_custom_call.1} parent=5 // pred_check
        _
      $region42: #{tpu_custom_call.1} parent=5 // pred_check_branch
        %386 = sbr.rel (%p383) target = $region44
      $region43: #{tpu_custom_call.1} parent=5 // pred_region
        %s387 = ssub.s32 %s29, 1
        %s388 = sand.u32 %s56, 1
        %s389 = scalar_lea.sflag [#allocation3], %s388
        %s390 = sand.u32 %s56, 1
        %s391 = smul.addr %s390, 64
        %s392 = scalar_lea.vmem [#allocation2], %s391
        // Predicated region
        $region45: #{tpu_custom_call.1} parent=43 // pred_check
          %p393 = pneg %p69
        $region46: #{tpu_custom_call.1} parent=43 // pred_check_branch
          %395 = sbr.rel (%p393) target = $region48
        $region47: #{tpu_custom_call.1} parent=43 // pred_region
          %396 = dma.done %s389, 1024
        $region48: #{tpu_custom_call.1} parent=43 // pred_fallthru
          _
        %s397 = sand.u32 %s34, 1
        %s398 = scalar_lea.sflag [#allocation6], %s397
        %s399 = sand.u32 %s82, 1
        %s400 = smul.addr %s399, 4096
        %s401 = scalar_lea.vmem [#allocation5], %s400
        // Predicated region
        $region49: #{tpu_custom_call.1} parent=43 // pred_check
          %p402 = pneg %p95
        $region50: #{tpu_custom_call.1} parent=43 // pred_check_branch
          %404 = sbr.rel (%p402) target = $region52
        $region51: #{tpu_custom_call.1} parent=43 // pred_region
          %405 = dma.done %s398, 65536
        $region52: #{tpu_custom_call.1} parent=43 // pred_fallthru
          _
        %s406 = sand.u32 %s34, 1
        %s407 = scalar_lea.sflag [#allocation6], %s406
        %s408 = sand.u32 %s108, 1
        %s409 = smul.addr %s408, 8
        %s410 = scalar_lea.vmem [#allocation7], %s409
        // Predicated region
        $region53: #{tpu_custom_call.1} parent=43 // pred_check
          %p411 = pneg %p121
        $region54: #{tpu_custom_call.1} parent=43 // pred_check_branch
          %413 = sbr.rel (%p411) target = $region56
        $region55: #{tpu_custom_call.1} parent=43 // pred_region
          %414 = dma.done %s407, 128
        $region56: #{tpu_custom_call.1} parent=43 // pred_fallthru
          _
        %s415 = sand.u32 %s34, 1
        %s416 = scalar_lea.sflag [#allocation9], %s415
        %s417 = sand.u32 %s134, 1
        %s418 = smul.addr %s417, 8
        %s419 = scalar_lea.vmem [#allocation8], %s418
        // Predicated region
        $region57: #{tpu_custom_call.1} parent=43 // pred_check
          %p420 = pneg %p147
        $region58: #{tpu_custom_call.1} parent=43 // pred_check_branch
          %422 = sbr.rel (%p420) target = $region60
        $region59: #{tpu_custom_call.1} parent=43 // pred_region
          %423 = dma.done %s416, 128
        $region60: #{tpu_custom_call.1} parent=43 // pred_fallthru
          _
        %s424 = sand.u32 %s34, 1
        %s425 = scalar_lea.sflag [#allocation9], %s424
        %s426 = sand.u32 %s186, 1
        %s427 = smul.addr %s426, 512
        %s428 = scalar_lea.vmem [#allocation10], %s427
        // Predicated region
        $region61: #{tpu_custom_call.1} parent=43 // pred_check
          %p429 = pneg %p199
        $region62: #{tpu_custom_call.1} parent=43 // pred_check_branch
          %431 = sbr.rel (%p429) target = $region64
        $region63: #{tpu_custom_call.1} parent=43 // pred_region
          %432 = dma.done %s425, 8192
        $region64: #{tpu_custom_call.1} parent=43 // pred_fallthru
          _
        %s433 = sand.u32 %s56, 1
        %s434 = scalar_lea.sflag [#allocation3], %s433
        %s435 = sand.u32 %s56, 1
        %s436 = smul.addr %s435, 64
        %s437 = scalar_lea.vmem [#allocation2], %s436
        %p438 = pneg %p69
        %p439 = pneg %p66
        %s440 = sand.u32 %s34, 1
        %s441 = scalar_lea.sflag [#allocation6], %s440
        %s442 = sand.u32 %s82, 1
        %s443 = smul.addr %s442, 4096
        %s444 = scalar_lea.vmem [#allocation5], %s443
        %p445 = pneg %p95
        %p446 = pneg %p92
        %s447 = sand.u32 %s34, 1
        %s448 = scalar_lea.sflag [#allocation6], %s447
        %s449 = sand.u32 %s108, 1
        %s450 = smul.addr %s449, 8
        %s451 = scalar_lea.vmem [#allocation7], %s450
        %p452 = pneg %p121
        %p453 = pneg %p118
        %s454 = sand.u32 %s34, 1
        %s455 = scalar_lea.sflag [#allocation9], %s454
        %s456 = sand.u32 %s134, 1
        %s457 = smul.addr %s456, 8
        %s458 = scalar_lea.vmem [#allocation8], %s457
        %p459 = pneg %p147
        %p460 = pneg %p144
        %p461 = scmp.lt.s32.totalorder %s38, 1
        %s462 = scalar_select %p461, %s38, 1
        %s463 = scalar_lea.vmem %s4, %s462
        %p464 = pneg %p173
        %p465 = pneg %p170
        %s466 = sand.u32 %s34, 1
        %s467 = scalar_lea.sflag [#allocation9], %s466
        %s468 = sand.u32 %s186, 1
        %s469 = smul.addr %s468, 512
        %s470 = scalar_lea.vmem [#allocation10], %s469
        %p471 = pneg %p199
        %p472 = pneg %p196
        %p473 = pneg %p227
        %p474 = pneg %p224
        %s475 = sand.u32 %s214, 1
        %s476 = scalar_lea.sflag [#allocation4], %s475
        %s477 = sand.u32 %s214, 1
        %s478 = smul.addr %s477, 8
        %s479 = scalar_lea.vmem [#allocation11], %s478
        %p480 = pneg %p255
        %p481 = pneg %p252
        %s482 = sand.u32 %s242, 1
        %s483 = scalar_lea.sflag [#allocation13], %s482
        %s484 = sand.u32 %s242, 1
        %s485 = smul.addr %s484, 32
        %s486 = scalar_lea.vmem [#allocation12], %s485
        %p487 = scmp.lt.s32.totalorder %s38, 1
        %s488 = scalar_select %p487, %s38, 1
        %s489 = scalar_lea.vmem %s4, %s488
        %v491 = vld [vmem:[%s392] sm:$0xff]
        %v492 = vld [vmem:[%s392 + $0x8] sm:$0xff]
        %v493 = vld [vmem:[%s392 + $0x10] sm:$0xff]
        %v494 = vld [vmem:[%s392 + $0x18] sm:$0xff]
        %v495 = vld [vmem:[%s392 + $0x20] sm:$0xff]
        %v496 = vld [vmem:[%s392 + $0x28] sm:$0xff]
        %v497 = vld [vmem:[%s392 + $0x30] sm:$0xff]
        %v498 = vld [vmem:[%s392 + $0x38] sm:$0xff]
        %v499 = vpack.c.bf16 %v491, %v491
        %v500 = vpack.c.bf16 %v492, %v492
        %v501 = vpack.c.bf16 %v493, %v493
        %v502 = vpack.c.bf16 %v494, %v494
        %v503 = vpack.c.bf16 %v495, %v495
        %v504 = vpack.c.bf16 %v496, %v496
        %v505 = vpack.c.bf16 %v497, %v497
        %v506 = vpack.c.bf16 %v498, %v498
        %v507 = vld [vmem:[%s401] sm:$0xff]
        %v508 = vld [vmem:[%s401 + $0x8] sm:$0xff]
        %v509 = vld [vmem:[%s401 + $0x10] sm:$0xff]
        %v510 = vld [vmem:[%s401 + $0x18] sm:$0xff]
        %v511 = vld [vmem:[%s401 + $0x20] sm:$0xff]
        %v512 = vld [vmem:[%s401 + $0x28] sm:$0xff]
        %v513 = vld [vmem:[%s401 + $0x30] sm:$0xff]
        %v514 = vld [vmem:[%s401 + $0x38] sm:$0xff]
        %v515 = vld [vmem:[%s401 + $0x40] sm:$0xff]
        %v516 = vld [vmem:[%s401 + $0x48] sm:$0xff]
        %v517 = vld [vmem:[%s401 + $0x50] sm:$0xff]
        %v518 = vld [vmem:[%s401 + $0x58] sm:$0xff]
        %v519 = vld [vmem:[%s401 + $0x60] sm:$0xff]
        %v520 = vld [vmem:[%s401 + $0x68] sm:$0xff]
        %v521 = vld [vmem:[%s401 + $0x70] sm:$0xff]
        %v522 = vld [vmem:[%s401 + $0x78] sm:$0xff]
        %v523 = vld [vmem:[%s401 + $0x80] sm:$0xff]
        %v524 = vld [vmem:[%s401 + $0x88] sm:$0xff]
        %v525 = vld [vmem:[%s401 + $0x90] sm:$0xff]
        %v526 = vld [vmem:[%s401 + $0x98] sm:$0xff]
        %v527 = vld [vmem:[%s401 + $0xa0] sm:$0xff]
        %v528 = vld [vmem:[%s401 + $0xa8] sm:$0xff]
        %v529 = vld [vmem:[%s401 + $0xb0] sm:$0xff]
        %v530 = vld [vmem:[%s401 + $0xb8] sm:$0xff]
        %v531 = vld [vmem:[%s401 + $0xc0] sm:$0xff]
        %v532 = vld [vmem:[%s401 + $0xc8] sm:$0xff]
        %v533 = vld [vmem:[%s401 + $0xd0] sm:$0xff]
        %v534 = vld [vmem:[%s401 + $0xd8] sm:$0xff]
        %v535 = vld [vmem:[%s401 + $0xe0] sm:$0xff]
        %v536 = vld [vmem:[%s401 + $0xe8] sm:$0xff]
        %v537 = vld [vmem:[%s401 + $0xf0] sm:$0xff]
        %v538 = vld [vmem:[%s401 + $0xf8] sm:$0xff]
        %v539 = vld [vmem:[%s401 + $0x100] sm:$0xff]
        %v540 = vld [vmem:[%s401 + $0x108] sm:$0xff]
        %v541 = vld [vmem:[%s401 + $0x110] sm:$0xff]
        %v542 = vld [vmem:[%s401 + $0x118] sm:$0xff]
        %v543 = vld [vmem:[%s401 + $0x120] sm:$0xff]
        %v544 = vld [vmem:[%s401 + $0x128] sm:$0xff]
        %v545 = vld [vmem:[%s401 + $0x130] sm:$0xff]
        %v546 = vld [vmem:[%s401 + $0x138] sm:$0xff]
        %v547 = vld [vmem:[%s401 + $0x140] sm:$0xff]
        %v548 = vld [vmem:[%s401 + $0x148] sm:$0xff]
        %v549 = vld [vmem:[%s401 + $0x150] sm:$0xff]
        %v550 = vld [vmem:[%s401 + $0x158] sm:$0xff]
        %v551 = vld [vmem:[%s401 + $0x160] sm:$0xff]
        %v552 = vld [vmem:[%s401 + $0x168] sm:$0xff]
        %v553 = vld [vmem:[%s401 + $0x170] sm:$0xff]
        %v554 = vld [vmem:[%s401 + $0x178] sm:$0xff]
        %v555 = vld [vmem:[%s401 + $0x180] sm:$0xff]
        %v556 = vld [vmem:[%s401 + $0x188] sm:$0xff]
        %v557 = vld [vmem:[%s401 + $0x190] sm:$0xff]
        %v558 = vld [vmem:[%s401 + $0x198] sm:$0xff]
        %v559 = vld [vmem:[%s401 + $0x1a0] sm:$0xff]
        %v560 = vld [vmem:[%s401 + $0x1a8] sm:$0xff]
        %v561 = vld [vmem:[%s401 + $0x1b0] sm:$0xff]
        %v562 = vld [vmem:[%s401 + $0x1b8] sm:$0xff]
        %v563 = vld [vmem:[%s401 + $0x1c0] sm:$0xff]
        %v564 = vld [vmem:[%s401 + $0x1c8] sm:$0xff]
        %v565 = vld [vmem:[%s401 + $0x1d0] sm:$0xff]
        %v566 = vld [vmem:[%s401 + $0x1d8] sm:$0xff]
        %v567 = vld [vmem:[%s401 + $0x1e0] sm:$0xff]
        %v568 = vld [vmem:[%s401 + $0x1e8] sm:$0xff]
        %v569 = vld [vmem:[%s401 + $0x1f0] sm:$0xff]
        %v570 = vld [vmem:[%s401 + $0x1f8] sm:$0xff]
        %v571 = vld [vmem:[%s401 + $0x200] sm:$0xff]
        %v572 = vld [vmem:[%s401 + $0x208] sm:$0xff]
        %v573 = vld [vmem:[%s401 + $0x210] sm:$0xff]
        %v574 = vld [vmem:[%s401 + $0x218] sm:$0xff]
        %v575 = vld [vmem:[%s401 + $0x220] sm:$0xff]
        %v576 = vld [vmem:[%s401 + $0x228] sm:$0xff]
        %v577 = vld [vmem:[%s401 + $0x230] sm:$0xff]
        %v578 = vld [vmem:[%s401 + $0x238] sm:$0xff]
        %v579 = vld [vmem:[%s401 + $0x240] sm:$0xff]
        %v580 = vld [vmem:[%s401 + $0x248] sm:$0xff]
        %v581 = vld [vmem:[%s401 + $0x250] sm:$0xff]
        %v582 = vld [vmem:[%s401 + $0x258] sm:$0xff]
        %v583 = vld [vmem:[%s401 + $0x260] sm:$0xff]
        %v584 = vld [vmem:[%s401 + $0x268] sm:$0xff]
        %v585 = vld [vmem:[%s401 + $0x270] sm:$0xff]
        %v586 = vld [vmem:[%s401 + $0x278] sm:$0xff]
        %v587 = vld [vmem:[%s401 + $0x280] sm:$0xff]
        %v588 = vld [vmem:[%s401 + $0x288] sm:$0xff]
        %v589 = vld [vmem:[%s401 + $0x290] sm:$0xff]
        %v590 = vld [vmem:[%s401 + $0x298] sm:$0xff]
        %v591 = vld [vmem:[%s401 + $0x2a0] sm:$0xff]
        %v592 = vld [vmem:[%s401 + $0x2a8] sm:$0xff]
        %v593 = vld [vmem:[%s401 + $0x2b0] sm:$0xff]
        %v594 = vld [vmem:[%s401 + $0x2b8] sm:$0xff]
        %v595 = vld [vmem:[%s401 + $0x2c0] sm:$0xff]
        %v596 = vld [vmem:[%s401 + $0x2c8] sm:$0xff]
        %v597 = vld [vmem:[%s401 + $0x2d0] sm:$0xff]
        %v598 = vld [vmem:[%s401 + $0x2d8] sm:$0xff]
        %v599 = vld [vmem:[%s401 + $0x2e0] sm:$0xff]
        %v600 = vld [vmem:[%s401 + $0x2e8] sm:$0xff]
        %v601 = vld [vmem:[%s401 + $0x2f0] sm:$0xff]
        %v602 = vld [vmem:[%s401 + $0x2f8] sm:$0xff]
        %v603 = vld [vmem:[%s401 + $0x300] sm:$0xff]
        %v604 = vld [vmem:[%s401 + $0x308] sm:$0xff]
        %v605 = vld [vmem:[%s401 + $0x310] sm:$0xff]
        %v606 = vld [vmem:[%s401 + $0x318] sm:$0xff]
        %v607 = vld [vmem:[%s401 + $0x320] sm:$0xff]
        %v608 = vld [vmem:[%s401 + $0x328] sm:$0xff]
        %v609 = vld [vmem:[%s401 + $0x330] sm:$0xff]
        %v610 = vld [vmem:[%s401 + $0x338] sm:$0xff]
        %v611 = vld [vmem:[%s401 + $0x340] sm:$0xff]
        %v612 = vld [vmem:[%s401 + $0x348] sm:$0xff]
        %v613 = vld [vmem:[%s401 + $0x350] sm:$0xff]
        %v614 = vld [vmem:[%s401 + $0x358] sm:$0xff]
        %v615 = vld [vmem:[%s401 + $0x360] sm:$0xff]
        %v616 = vld [vmem:[%s401 + $0x368] sm:$0xff]
        %v617 = vld [vmem:[%s401 + $0x370] sm:$0xff]
        %v618 = vld [vmem:[%s401 + $0x378] sm:$0xff]
        %v619 = vld [vmem:[%s401 + $0x380] sm:$0xff]
        %v620 = vld [vmem:[%s401 + $0x388] sm:$0xff]
        %v621 = vld [vmem:[%s401 + $0x390] sm:$0xff]
        %v622 = vld [vmem:[%s401 + $0x398] sm:$0xff]
        %v623 = vld [vmem:[%s401 + $0x3a0] sm:$0xff]
        %v624 = vld [vmem:[%s401 + $0x3a8] sm:$0xff]
        %v625 = vld [vmem:[%s401 + $0x3b0] sm:$0xff]
        %v626 = vld [vmem:[%s401 + $0x3b8] sm:$0xff]
        %v627 = vld [vmem:[%s401 + $0x3c0] sm:$0xff]
        %v628 = vld [vmem:[%s401 + $0x3c8] sm:$0xff]
        %v629 = vld [vmem:[%s401 + $0x3d0] sm:$0xff]
        %v630 = vld [vmem:[%s401 + $0x3d8] sm:$0xff]
        %v631 = vld [vmem:[%s401 + $0x3e0] sm:$0xff]
        %v632 = vld [vmem:[%s401 + $0x3e8] sm:$0xff]
        %v633 = vld [vmem:[%s401 + $0x3f0] sm:$0xff]
        %v634 = vld [vmem:[%s401 + $0x3f8] sm:$0xff]
        %v635 = vld [vmem:[%s401 + $0x400] sm:$0xff]
        %v636 = vld [vmem:[%s401 + $0x408] sm:$0xff]
        %v637 = vld [vmem:[%s401 + $0x410] sm:$0xff]
        %v638 = vld [vmem:[%s401 + $0x418] sm:$0xff]
        %v639 = vld [vmem:[%s401 + $0x420] sm:$0xff]
        %v640 = vld [vmem:[%s401 + $0x428] sm:$0xff]
        %v641 = vld [vmem:[%s401 + $0x430] sm:$0xff]
        %v642 = vld [vmem:[%s401 + $0x438] sm:$0xff]
        %v643 = vld [vmem:[%s401 + $0x440] sm:$0xff]
        %v644 = vld [vmem:[%s401 + $0x448] sm:$0xff]
        %v645 = vld [vmem:[%s401 + $0x450] sm:$0xff]
        %v646 = vld [vmem:[%s401 + $0x458] sm:$0xff]
        %v647 = vld [vmem:[%s401 + $0x460] sm:$0xff]
        %v648 = vld [vmem:[%s401 + $0x468] sm:$0xff]
        %v649 = vld [vmem:[%s401 + $0x470] sm:$0xff]
        %v650 = vld [vmem:[%s401 + $0x478] sm:$0xff]
        %v651 = vld [vmem:[%s401 + $0x480] sm:$0xff]
        %v652 = vld [vmem:[%s401 + $0x488] sm:$0xff]
        %v653 = vld [vmem:[%s401 + $0x490] sm:$0xff]
        %v654 = vld [vmem:[%s401 + $0x498] sm:$0xff]
        %v655 = vld [vmem:[%s401 + $0x4a0] sm:$0xff]
        %v656 = vld [vmem:[%s401 + $0x4a8] sm:$0xff]
        %v657 = vld [vmem:[%s401 + $0x4b0] sm:$0xff]
        %v658 = vld [vmem:[%s401 + $0x4b8] sm:$0xff]
        %v659 = vld [vmem:[%s401 + $0x4c0] sm:$0xff]
        %v660 = vld [vmem:[%s401 + $0x4c8] sm:$0xff]
        %v661 = vld [vmem:[%s401 + $0x4d0] sm:$0xff]
        %v662 = vld [vmem:[%s401 + $0x4d8] sm:$0xff]
        %v663 = vld [vmem:[%s401 + $0x4e0] sm:$0xff]
        %v664 = vld [vmem:[%s401 + $0x4e8] sm:$0xff]
        %v665 = vld [vmem:[%s401 + $0x4f0] sm:$0xff]
        %v666 = vld [vmem:[%s401 + $0x4f8] sm:$0xff]
        %v667 = vld [vmem:[%s401 + $0x500] sm:$0xff]
        %v668 = vld [vmem:[%s401 + $0x508] sm:$0xff]
        %v669 = vld [vmem:[%s401 + $0x510] sm:$0xff]
        %v670 = vld [vmem:[%s401 + $0x518] sm:$0xff]
        %v671 = vld [vmem:[%s401 + $0x520] sm:$0xff]
        %v672 = vld [vmem:[%s401 + $0x528] sm:$0xff]
        %v673 = vld [vmem:[%s401 + $0x530] sm:$0xff]
        %v674 = vld [vmem:[%s401 + $0x538] sm:$0xff]
        %v675 = vld [vmem:[%s401 + $0x540] sm:$0xff]
        %v676 = vld [vmem:[%s401 + $0x548] sm:$0xff]
        %v677 = vld [vmem:[%s401 + $0x550] sm:$0xff]
        %v678 = vld [vmem:[%s401 + $0x558] sm:$0xff]
        %v679 = vld [vmem:[%s401 + $0x560] sm:$0xff]
        %v680 = vld [vmem:[%s401 + $0x568] sm:$0xff]
        %v681 = vld [vmem:[%s401 + $0x570] sm:$0xff]
        %v682 = vld [vmem:[%s401 + $0x578] sm:$0xff]
        %v683 = vld [vmem:[%s401 + $0x580] sm:$0xff]
        %v684 = vld [vmem:[%s401 + $0x588] sm:$0xff]
        %v685 = vld [vmem:[%s401 + $0x590] sm:$0xff]
        %v686 = vld [vmem:[%s401 + $0x598] sm:$0xff]
        %v687 = vld [vmem:[%s401 + $0x5a0] sm:$0xff]
        %v688 = vld [vmem:[%s401 + $0x5a8] sm:$0xff]
        %v689 = vld [vmem:[%s401 + $0x5b0] sm:$0xff]
        %v690 = vld [vmem:[%s401 + $0x5b8] sm:$0xff]
        %v691 = vld [vmem:[%s401 + $0x5c0] sm:$0xff]
        %v692 = vld [vmem:[%s401 + $0x5c8] sm:$0xff]
        %v693 = vld [vmem:[%s401 + $0x5d0] sm:$0xff]
        %v694 = vld [vmem:[%s401 + $0x5d8] sm:$0xff]
        %v695 = vld [vmem:[%s401 + $0x5e0] sm:$0xff]
        %v696 = vld [vmem:[%s401 + $0x5e8] sm:$0xff]
        %v697 = vld [vmem:[%s401 + $0x5f0] sm:$0xff]
        %v698 = vld [vmem:[%s401 + $0x5f8] sm:$0xff]
        %v699 = vld [vmem:[%s401 + $0x600] sm:$0xff]
        %v700 = vld [vmem:[%s401 + $0x608] sm:$0xff]
        %v701 = vld [vmem:[%s401 + $0x610] sm:$0xff]
        %v702 = vld [vmem:[%s401 + $0x618] sm:$0xff]
        %v703 = vld [vmem:[%s401 + $0x620] sm:$0xff]
        %v704 = vld [vmem:[%s401 + $0x628] sm:$0xff]
        %v705 = vld [vmem:[%s401 + $0x630] sm:$0xff]
        %v706 = vld [vmem:[%s401 + $0x638] sm:$0xff]
        %v707 = vld [vmem:[%s401 + $0x640] sm:$0xff]
        %v708 = vld [vmem:[%s401 + $0x648] sm:$0xff]
        %v709 = vld [vmem:[%s401 + $0x650] sm:$0xff]
        %v710 = vld [vmem:[%s401 + $0x658] sm:$0xff]
        %v711 = vld [vmem:[%s401 + $0x660] sm:$0xff]
        %v712 = vld [vmem:[%s401 + $0x668] sm:$0xff]
        %v713 = vld [vmem:[%s401 + $0x670] sm:$0xff]
        %v714 = vld [vmem:[%s401 + $0x678] sm:$0xff]
        %v715 = vld [vmem:[%s401 + $0x680] sm:$0xff]
        %v716 = vld [vmem:[%s401 + $0x688] sm:$0xff]
        %v717 = vld [vmem:[%s401 + $0x690] sm:$0xff]
        %v718 = vld [vmem:[%s401 + $0x698] sm:$0xff]
        %v719 = vld [vmem:[%s401 + $0x6a0] sm:$0xff]
        %v720 = vld [vmem:[%s401 + $0x6a8] sm:$0xff]
        %v721 = vld [vmem:[%s401 + $0x6b0] sm:$0xff]
        %v722 = vld [vmem:[%s401 + $0x6b8] sm:$0xff]
        %v723 = vld [vmem:[%s401 + $0x6c0] sm:$0xff]
        %v724 = vld [vmem:[%s401 + $0x6c8] sm:$0xff]
        %v725 = vld [vmem:[%s401 + $0x6d0] sm:$0xff]
        %v726 = vld [vmem:[%s401 + $0x6d8] sm:$0xff]
        %v727 = vld [vmem:[%s401 + $0x6e0] sm:$0xff]
        %v728 = vld [vmem:[%s401 + $0x6e8] sm:$0xff]
        %v729 = vld [vmem:[%s401 + $0x6f0] sm:$0xff]
        %v730 = vld [vmem:[%s401 + $0x6f8] sm:$0xff]
        %v731 = vld [vmem:[%s401 + $0x700] sm:$0xff]
        %v732 = vld [vmem:[%s401 + $0x708] sm:$0xff]
        %v733 = vld [vmem:[%s401 + $0x710] sm:$0xff]
        %v734 = vld [vmem:[%s401 + $0x718] sm:$0xff]
        %v735 = vld [vmem:[%s401 + $0x720] sm:$0xff]
        %v736 = vld [vmem:[%s401 + $0x728] sm:$0xff]
        %v737 = vld [vmem:[%s401 + $0x730] sm:$0xff]
        %v738 = vld [vmem:[%s401 + $0x738] sm:$0xff]
        %v739 = vld [vmem:[%s401 + $0x740] sm:$0xff]
        %v740 = vld [vmem:[%s401 + $0x748] sm:$0xff]
        %v741 = vld [vmem:[%s401 + $0x750] sm:$0xff]
        %v742 = vld [vmem:[%s401 + $0x758] sm:$0xff]
        %v743 = vld [vmem:[%s401 + $0x760] sm:$0xff]
        %v744 = vld [vmem:[%s401 + $0x768] sm:$0xff]
        %v745 = vld [vmem:[%s401 + $0x770] sm:$0xff]
        %v746 = vld [vmem:[%s401 + $0x778] sm:$0xff]
        %v747 = vld [vmem:[%s401 + $0x780] sm:$0xff]
        %v748 = vld [vmem:[%s401 + $0x788] sm:$0xff]
        %v749 = vld [vmem:[%s401 + $0x790] sm:$0xff]
        %v750 = vld [vmem:[%s401 + $0x798] sm:$0xff]
        %v751 = vld [vmem:[%s401 + $0x7a0] sm:$0xff]
        %v752 = vld [vmem:[%s401 + $0x7a8] sm:$0xff]
        %v753 = vld [vmem:[%s401 + $0x7b0] sm:$0xff]
        %v754 = vld [vmem:[%s401 + $0x7b8] sm:$0xff]
        %v755 = vld [vmem:[%s401 + $0x7c0] sm:$0xff]
        %v756 = vld [vmem:[%s401 + $0x7c8] sm:$0xff]
        %v757 = vld [vmem:[%s401 + $0x7d0] sm:$0xff]
        %v758 = vld [vmem:[%s401 + $0x7d8] sm:$0xff]
        %v759 = vld [vmem:[%s401 + $0x7e0] sm:$0xff]
        %v760 = vld [vmem:[%s401 + $0x7e8] sm:$0xff]
        %v761 = vld [vmem:[%s401 + $0x7f0] sm:$0xff]
        %v762 = vld [vmem:[%s401 + $0x7f8] sm:$0xff]
        %v763 = vld [vmem:[%s401 + $0x800] sm:$0xff]
        %v764 = vld [vmem:[%s401 + $0x808] sm:$0xff]
        %v765 = vld [vmem:[%s401 + $0x810] sm:$0xff]
        %v766 = vld [vmem:[%s401 + $0x818] sm:$0xff]
        %v767 = vld [vmem:[%s401 + $0x820] sm:$0xff]
        %v768 = vld [vmem:[%s401 + $0x828] sm:$0xff]
        %v769 = vld [vmem:[%s401 + $0x830] sm:$0xff]
        %v770 = vld [vmem:[%s401 + $0x838] sm:$0xff]
        %v771 = vld [vmem:[%s401 + $0x840] sm:$0xff]
        %v772 = vld [vmem:[%s401 + $0x848] sm:$0xff]
        %v773 = vld [vmem:[%s401 + $0x850] sm:$0xff]
        %v774 = vld [vmem:[%s401 + $0x858] sm:$0xff]
        %v775 = vld [vmem:[%s401 + $0x860] sm:$0xff]
        %v776 = vld [vmem:[%s401 + $0x868] sm:$0xff]
        %v777 = vld [vmem:[%s401 + $0x870] sm:$0xff]
        %v778 = vld [vmem:[%s401 + $0x878] sm:$0xff]
        %v779 = vld [vmem:[%s401 + $0x880] sm:$0xff]
        %v780 = vld [vmem:[%s401 + $0x888] sm:$0xff]
        %v781 = vld [vmem:[%s401 + $0x890] sm:$0xff]
        %v782 = vld [vmem:[%s401 + $0x898] sm:$0xff]
        %v783 = vld [vmem:[%s401 + $0x8a0] sm:$0xff]
        %v784 = vld [vmem:[%s401 + $0x8a8] sm:$0xff]
        %v785 = vld [vmem:[%s401 + $0x8b0] sm:$0xff]
        %v786 = vld [vmem:[%s401 + $0x8b8] sm:$0xff]
        %v787 = vld [vmem:[%s401 + $0x8c0] sm:$0xff]
        %v788 = vld [vmem:[%s401 + $0x8c8] sm:$0xff]
        %v789 = vld [vmem:[%s401 + $0x8d0] sm:$0xff]
        %v790 = vld [vmem:[%s401 + $0x8d8] sm:$0xff]
        %v791 = vld [vmem:[%s401 + $0x8e0] sm:$0xff]
        %v792 = vld [vmem:[%s401 + $0x8e8] sm:$0xff]
        %v793 = vld [vmem:[%s401 + $0x8f0] sm:$0xff]
        %v794 = vld [vmem:[%s401 + $0x8f8] sm:$0xff]
        %v795 = vld [vmem:[%s401 + $0x900] sm:$0xff]
        %v796 = vld [vmem:[%s401 + $0x908] sm:$0xff]
        %v797 = vld [vmem:[%s401 + $0x910] sm:$0xff]
        %v798 = vld [vmem:[%s401 + $0x918] sm:$0xff]
        %v799 = vld [vmem:[%s401 + $0x920] sm:$0xff]
        %v800 = vld [vmem:[%s401 + $0x928] sm:$0xff]
        %v801 = vld [vmem:[%s401 + $0x930] sm:$0xff]
        %v802 = vld [vmem:[%s401 + $0x938] sm:$0xff]
        %v803 = vld [vmem:[%s401 + $0x940] sm:$0xff]
        %v804 = vld [vmem:[%s401 + $0x948] sm:$0xff]
        %v805 = vld [vmem:[%s401 + $0x950] sm:$0xff]
        %v806 = vld [vmem:[%s401 + $0x958] sm:$0xff]
        %v807 = vld [vmem:[%s401 + $0x960] sm:$0xff]
        %v808 = vld [vmem:[%s401 + $0x968] sm:$0xff]
        %v809 = vld [vmem:[%s401 + $0x970] sm:$0xff]
        %v810 = vld [vmem:[%s401 + $0x978] sm:$0xff]
        %v811 = vld [vmem:[%s401 + $0x980] sm:$0xff]
        %v812 = vld [vmem:[%s401 + $0x988] sm:$0xff]
        %v813 = vld [vmem:[%s401 + $0x990] sm:$0xff]
        %v814 = vld [vmem:[%s401 + $0x998] sm:$0xff]
        %v815 = vld [vmem:[%s401 + $0x9a0] sm:$0xff]
        %v816 = vld [vmem:[%s401 + $0x9a8] sm:$0xff]
        %v817 = vld [vmem:[%s401 + $0x9b0] sm:$0xff]
        %v818 = vld [vmem:[%s401 + $0x9b8] sm:$0xff]
        %v819 = vld [vmem:[%s401 + $0x9c0] sm:$0xff]
        %v820 = vld [vmem:[%s401 + $0x9c8] sm:$0xff]
        %v821 = vld [vmem:[%s401 + $0x9d0] sm:$0xff]
        %v822 = vld [vmem:[%s401 + $0x9d8] sm:$0xff]
        %v823 = vld [vmem:[%s401 + $0x9e0] sm:$0xff]
        %v824 = vld [vmem:[%s401 + $0x9e8] sm:$0xff]
        %v825 = vld [vmem:[%s401 + $0x9f0] sm:$0xff]
        %v826 = vld [vmem:[%s401 + $0x9f8] sm:$0xff]
        %v827 = vld [vmem:[%s401 + $0xa00] sm:$0xff]
        %v828 = vld [vmem:[%s401 + $0xa08] sm:$0xff]
        %v829 = vld [vmem:[%s401 + $0xa10] sm:$0xff]
        %v830 = vld [vmem:[%s401 + $0xa18] sm:$0xff]
        %v831 = vld [vmem:[%s401 + $0xa20] sm:$0xff]
        %v832 = vld [vmem:[%s401 + $0xa28] sm:$0xff]
        %v833 = vld [vmem:[%s401 + $0xa30] sm:$0xff]
        %v834 = vld [vmem:[%s401 + $0xa38] sm:$0xff]
        %v835 = vld [vmem:[%s401 + $0xa40] sm:$0xff]
        %v836 = vld [vmem:[%s401 + $0xa48] sm:$0xff]
        %v837 = vld [vmem:[%s401 + $0xa50] sm:$0xff]
        %v838 = vld [vmem:[%s401 + $0xa58] sm:$0xff]
        %v839 = vld [vmem:[%s401 + $0xa60] sm:$0xff]
        %v840 = vld [vmem:[%s401 + $0xa68] sm:$0xff]
        %v841 = vld [vmem:[%s401 + $0xa70] sm:$0xff]
        %v842 = vld [vmem:[%s401 + $0xa78] sm:$0xff]
        %v843 = vld [vmem:[%s401 + $0xa80] sm:$0xff]
        %v844 = vld [vmem:[%s401 + $0xa88] sm:$0xff]
        %v845 = vld [vmem:[%s401 + $0xa90] sm:$0xff]
        %v846 = vld [vmem:[%s401 + $0xa98] sm:$0xff]
        %v847 = vld [vmem:[%s401 + $0xaa0] sm:$0xff]
        %v848 = vld [vmem:[%s401 + $0xaa8] sm:$0xff]
        %v849 = vld [vmem:[%s401 + $0xab0] sm:$0xff]
        %v850 = vld [vmem:[%s401 + $0xab8] sm:$0xff]
        %v851 = vld [vmem:[%s401 + $0xac0] sm:$0xff]
        %v852 = vld [vmem:[%s401 + $0xac8] sm:$0xff]
        %v853 = vld [vmem:[%s401 + $0xad0] sm:$0xff]
        %v854 = vld [vmem:[%s401 + $0xad8] sm:$0xff]
        %v855 = vld [vmem:[%s401 + $0xae0] sm:$0xff]
        %v856 = vld [vmem:[%s401 + $0xae8] sm:$0xff]
        %v857 = vld [vmem:[%s401 + $0xaf0] sm:$0xff]
        %v858 = vld [vmem:[%s401 + $0xaf8] sm:$0xff]
        %v859 = vld [vmem:[%s401 + $0xb00] sm:$0xff]
        %v860 = vld [vmem:[%s401 + $0xb08] sm:$0xff]
        %v861 = vld [vmem:[%s401 + $0xb10] sm:$0xff]
        %v862 = vld [vmem:[%s401 + $0xb18] sm:$0xff]
        %v863 = vld [vmem:[%s401 + $0xb20] sm:$0xff]
        %v864 = vld [vmem:[%s401 + $0xb28] sm:$0xff]
        %v865 = vld [vmem:[%s401 + $0xb30] sm:$0xff]
        %v866 = vld [vmem:[%s401 + $0xb38] sm:$0xff]
        %v867 = vld [vmem:[%s401 + $0xb40] sm:$0xff]
        %v868 = vld [vmem:[%s401 + $0xb48] sm:$0xff]
        %v869 = vld [vmem:[%s401 + $0xb50] sm:$0xff]
        %v870 = vld [vmem:[%s401 + $0xb58] sm:$0xff]
        %v871 = vld [vmem:[%s401 + $0xb60] sm:$0xff]
        %v872 = vld [vmem:[%s401 + $0xb68] sm:$0xff]
        %v873 = vld [vmem:[%s401 + $0xb70] sm:$0xff]
        %v874 = vld [vmem:[%s401 + $0xb78] sm:$0xff]
        %v875 = vld [vmem:[%s401 + $0xb80] sm:$0xff]
        %v876 = vld [vmem:[%s401 + $0xb88] sm:$0xff]
        %v877 = vld [vmem:[%s401 + $0xb90] sm:$0xff]
        %v878 = vld [vmem:[%s401 + $0xb98] sm:$0xff]
        %v879 = vld [vmem:[%s401 + $0xba0] sm:$0xff]
        %v880 = vld [vmem:[%s401 + $0xba8] sm:$0xff]
        %v881 = vld [vmem:[%s401 + $0xbb0] sm:$0xff]
        %v882 = vld [vmem:[%s401 + $0xbb8] sm:$0xff]
        %v883 = vld [vmem:[%s401 + $0xbc0] sm:$0xff]
        %v884 = vld [vmem:[%s401 + $0xbc8] sm:$0xff]
        %v885 = vld [vmem:[%s401 + $0xbd0] sm:$0xff]
        %v886 = vld [vmem:[%s401 + $0xbd8] sm:$0xff]
        %v887 = vld [vmem:[%s401 + $0xbe0] sm:$0xff]
        %v888 = vld [vmem:[%s401 + $0xbe8] sm:$0xff]
        %v889 = vld [vmem:[%s401 + $0xbf0] sm:$0xff]
        %v890 = vld [vmem:[%s401 + $0xbf8] sm:$0xff]
        %v891 = vld [vmem:[%s401 + $0xc00] sm:$0xff]
        %v892 = vld [vmem:[%s401 + $0xc08] sm:$0xff]
        %v893 = vld [vmem:[%s401 + $0xc10] sm:$0xff]
        %v894 = vld [vmem:[%s401 + $0xc18] sm:$0xff]
        %v895 = vld [vmem:[%s401 + $0xc20] sm:$0xff]
        %v896 = vld [vmem:[%s401 + $0xc28] sm:$0xff]
        %v897 = vld [vmem:[%s401 + $0xc30] sm:$0xff]
        %v898 = vld [vmem:[%s401 + $0xc38] sm:$0xff]
        %v899 = vld [vmem:[%s401 + $0xc40] sm:$0xff]
        %v900 = vld [vmem:[%s401 + $0xc48] sm:$0xff]
        %v901 = vld [vmem:[%s401 + $0xc50] sm:$0xff]
        %v902 = vld [vmem:[%s401 + $0xc58] sm:$0xff]
        %v903 = vld [vmem:[%s401 + $0xc60] sm:$0xff]
        %v904 = vld [vmem:[%s401 + $0xc68] sm:$0xff]
        %v905 = vld [vmem:[%s401 + $0xc70] sm:$0xff]
        %v906 = vld [vmem:[%s401 + $0xc78] sm:$0xff]
        %v907 = vld [vmem:[%s401 + $0xc80] sm:$0xff]
        %v908 = vld [vmem:[%s401 + $0xc88] sm:$0xff]
        %v909 = vld [vmem:[%s401 + $0xc90] sm:$0xff]
        %v910 = vld [vmem:[%s401 + $0xc98] sm:$0xff]
        %v911 = vld [vmem:[%s401 + $0xca0] sm:$0xff]
        %v912 = vld [vmem:[%s401 + $0xca8] sm:$0xff]
        %v913 = vld [vmem:[%s401 + $0xcb0] sm:$0xff]
        %v914 = vld [vmem:[%s401 + $0xcb8] sm:$0xff]
        %v915 = vld [vmem:[%s401 + $0xcc0] sm:$0xff]
        %v916 = vld [vmem:[%s401 + $0xcc8] sm:$0xff]
        %v917 = vld [vmem:[%s401 + $0xcd0] sm:$0xff]
        %v918 = vld [vmem:[%s401 + $0xcd8] sm:$0xff]
        %v919 = vld [vmem:[%s401 + $0xce0] sm:$0xff]
        %v920 = vld [vmem:[%s401 + $0xce8] sm:$0xff]
        %v921 = vld [vmem:[%s401 + $0xcf0] sm:$0xff]
        %v922 = vld [vmem:[%s401 + $0xcf8] sm:$0xff]
        %v923 = vld [vmem:[%s401 + $0xd00] sm:$0xff]
        %v924 = vld [vmem:[%s401 + $0xd08] sm:$0xff]
        %v925 = vld [vmem:[%s401 + $0xd10] sm:$0xff]
        %v926 = vld [vmem:[%s401 + $0xd18] sm:$0xff]
        %v927 = vld [vmem:[%s401 + $0xd20] sm:$0xff]
        %v928 = vld [vmem:[%s401 + $0xd28] sm:$0xff]
        %v929 = vld [vmem:[%s401 + $0xd30] sm:$0xff]
        %v930 = vld [vmem:[%s401 + $0xd38] sm:$0xff]
        %v931 = vld [vmem:[%s401 + $0xd40] sm:$0xff]
        %v932 = vld [vmem:[%s401 + $0xd48] sm:$0xff]
        %v933 = vld [vmem:[%s401 + $0xd50] sm:$0xff]
        %v934 = vld [vmem:[%s401 + $0xd58] sm:$0xff]
        %v935 = vld [vmem:[%s401 + $0xd60] sm:$0xff]
        %v936 = vld [vmem:[%s401 + $0xd68] sm:$0xff]
        %v937 = vld [vmem:[%s401 + $0xd70] sm:$0xff]
        %v938 = vld [vmem:[%s401 + $0xd78] sm:$0xff]
        %v939 = vld [vmem:[%s401 + $0xd80] sm:$0xff]
        %v940 = vld [vmem:[%s401 + $0xd88] sm:$0xff]
        %v941 = vld [vmem:[%s401 + $0xd90] sm:$0xff]
        %v942 = vld [vmem:[%s401 + $0xd98] sm:$0xff]
        %v943 = vld [vmem:[%s401 + $0xda0] sm:$0xff]
        %v944 = vld [vmem:[%s401 + $0xda8] sm:$0xff]
        %v945 = vld [vmem:[%s401 + $0xdb0] sm:$0xff]
        %v946 = vld [vmem:[%s401 + $0xdb8] sm:$0xff]
        %v947 = vld [vmem:[%s401 + $0xdc0] sm:$0xff]
        %v948 = vld [vmem:[%s401 + $0xdc8] sm:$0xff]
        %v949 = vld [vmem:[%s401 + $0xdd0] sm:$0xff]
        %v950 = vld [vmem:[%s401 + $0xdd8] sm:$0xff]
        %v951 = vld [vmem:[%s401 + $0xde0] sm:$0xff]
        %v952 = vld [vmem:[%s401 + $0xde8] sm:$0xff]
        %v953 = vld [vmem:[%s401 + $0xdf0] sm:$0xff]
        %v954 = vld [vmem:[%s401 + $0xdf8] sm:$0xff]
        %v955 = vld [vmem:[%s401 + $0xe00] sm:$0xff]
        %v956 = vld [vmem:[%s401 + $0xe08] sm:$0xff]
        %v957 = vld [vmem:[%s401 + $0xe10] sm:$0xff]
        %v958 = vld [vmem:[%s401 + $0xe18] sm:$0xff]
        %v959 = vld [vmem:[%s401 + $0xe20] sm:$0xff]
        %v960 = vld [vmem:[%s401 + $0xe28] sm:$0xff]
        %v961 = vld [vmem:[%s401 + $0xe30] sm:$0xff]
        %v962 = vld [vmem:[%s401 + $0xe38] sm:$0xff]
        %v963 = vld [vmem:[%s401 + $0xe40] sm:$0xff]
        %v964 = vld [vmem:[%s401 + $0xe48] sm:$0xff]
        %v965 = vld [vmem:[%s401 + $0xe50] sm:$0xff]
        %v966 = vld [vmem:[%s401 + $0xe58] sm:$0xff]
        %v967 = vld [vmem:[%s401 + $0xe60] sm:$0xff]
        %v968 = vld [vmem:[%s401 + $0xe68] sm:$0xff]
        %v969 = vld [vmem:[%s401 + $0xe70] sm:$0xff]
        %v970 = vld [vmem:[%s401 + $0xe78] sm:$0xff]
        %v971 = vld [vmem:[%s401 + $0xe80] sm:$0xff]
        %v972 = vld [vmem:[%s401 + $0xe88] sm:$0xff]
        %v973 = vld [vmem:[%s401 + $0xe90] sm:$0xff]
        %v974 = vld [vmem:[%s401 + $0xe98] sm:$0xff]
        %v975 = vld [vmem:[%s401 + $0xea0] sm:$0xff]
        %v976 = vld [vmem:[%s401 + $0xea8] sm:$0xff]
        %v977 = vld [vmem:[%s401 + $0xeb0] sm:$0xff]
        %v978 = vld [vmem:[%s401 + $0xeb8] sm:$0xff]
        %v979 = vld [vmem:[%s401 + $0xec0] sm:$0xff]
        %v980 = vld [vmem:[%s401 + $0xec8] sm:$0xff]
        %v981 = vld [vmem:[%s401 + $0xed0] sm:$0xff]
        %v982 = vld [vmem:[%s401 + $0xed8] sm:$0xff]
        %v983 = vld [vmem:[%s401 + $0xee0] sm:$0xff]
        %v984 = vld [vmem:[%s401 + $0xee8] sm:$0xff]
        %v985 = vld [vmem:[%s401 + $0xef0] sm:$0xff]
        %v986 = vld [vmem:[%s401 + $0xef8] sm:$0xff]
        %v987 = vld [vmem:[%s401 + $0xf00] sm:$0xff]
        %v988 = vld [vmem:[%s401 + $0xf08] sm:$0xff]
        %v989 = vld [vmem:[%s401 + $0xf10] sm:$0xff]
        %v990 = vld [vmem:[%s401 + $0xf18] sm:$0xff]
        %v991 = vld [vmem:[%s401 + $0xf20] sm:$0xff]
        %v992 = vld [vmem:[%s401 + $0xf28] sm:$0xff]
        %v993 = vld [vmem:[%s401 + $0xf30] sm:$0xff]
        %v994 = vld [vmem:[%s401 + $0xf38] sm:$0xff]
        %v995 = vld [vmem:[%s401 + $0xf40] sm:$0xff]
        %v996 = vld [vmem:[%s401 + $0xf48] sm:$0xff]
        %v997 = vld [vmem:[%s401 + $0xf50] sm:$0xff]
        %v998 = vld [vmem:[%s401 + $0xf58] sm:$0xff]
        %v999 = vld [vmem:[%s401 + $0xf60] sm:$0xff]
        %v1000 = vld [vmem:[%s401 + $0xf68] sm:$0xff]
        %v1001 = vld [vmem:[%s401 + $0xf70] sm:$0xff]
        %v1002 = vld [vmem:[%s401 + $0xf78] sm:$0xff]
        %v1003 = vld [vmem:[%s401 + $0xf80] sm:$0xff]
        %v1004 = vld [vmem:[%s401 + $0xf88] sm:$0xff]
        %v1005 = vld [vmem:[%s401 + $0xf90] sm:$0xff]
        %v1006 = vld [vmem:[%s401 + $0xf98] sm:$0xff]
        %v1007 = vld [vmem:[%s401 + $0xfa0] sm:$0xff]
        %v1008 = vld [vmem:[%s401 + $0xfa8] sm:$0xff]
        %v1009 = vld [vmem:[%s401 + $0xfb0] sm:$0xff]
        %v1010 = vld [vmem:[%s401 + $0xfb8] sm:$0xff]
        %v1011 = vld [vmem:[%s401 + $0xfc0] sm:$0xff]
        %v1012 = vld [vmem:[%s401 + $0xfc8] sm:$0xff]
        %v1013 = vld [vmem:[%s401 + $0xfd0] sm:$0xff]
        %v1014 = vld [vmem:[%s401 + $0xfd8] sm:$0xff]
        %v1015 = vld [vmem:[%s401 + $0xfe0] sm:$0xff]
        %v1016 = vld [vmem:[%s401 + $0xfe8] sm:$0xff]
        %v1017 = vld [vmem:[%s401 + $0xff0] sm:$0xff]
        %v1018 = vld [vmem:[%s401 + $0xff8] sm:$0xff]
        %v1019 = vld [vmem:[%s410] sm:$0xff]
        %v1021 = vlaneseq
        %v1022 = vshrl.u32 %v1021, 7
        %v1023 = vsub.s32 0, %v1022
        %v1024 = vrot.slane %v1019, %v1023
        %v1025 = vlaneseq
        %v1026 = vshrl.u32 %v1025, 7
        %v1027 = vsub.s32 1, %v1026
        %v1028 = vrot.slane %v1019, %v1027
        %v1029 = vlaneseq
        %v1030 = vshrl.u32 %v1029, 7
        %v1031 = vsub.s32 2, %v1030
        %v1032 = vrot.slane %v1019, %v1031
        %v1033 = vlaneseq
        %v1034 = vshrl.u32 %v1033, 7
        %v1035 = vsub.s32 3, %v1034
        %v1036 = vrot.slane %v1019, %v1035
        %v1037 = vlaneseq
        %v1038 = vshrl.u32 %v1037, 7
        %v1039 = vsub.s32 4, %v1038
        %v1040 = vrot.slane %v1019, %v1039
        %v1041 = vlaneseq
        %v1042 = vshrl.u32 %v1041, 7
        %v1043 = vsub.s32 5, %v1042
        %v1044 = vrot.slane %v1019, %v1043
        %v1045 = vlaneseq
        %v1046 = vshrl.u32 %v1045, 7
        %v1047 = vsub.s32 6, %v1046
        %v1048 = vrot.slane %v1019, %v1047
        %v1049 = vlaneseq
        %v1050 = vshrl.u32 %v1049, 7
        %v1051 = vsub.s32 7, %v1050
        %v1052 = vrot.slane %v1019, %v1051
        %v1573 = vunpack.c.l.b16 %v507
        %v1574 = vunpack.c.h.b16 %v507
        %v1575 = vunpack.c.l.b16 %v508
        %v1576 = vunpack.c.h.b16 %v508
        %v1577 = vunpack.c.l.b16 %v509
        %v1578 = vunpack.c.h.b16 %v509
        %v1579 = vunpack.c.l.b16 %v510
        %v1580 = vunpack.c.h.b16 %v510
        %v1581 = vunpack.c.l.b16 %v511
        %v1582 = vunpack.c.h.b16 %v511
        %v1583 = vunpack.c.l.b16 %v512
        %v1584 = vunpack.c.h.b16 %v512
        %v1585 = vunpack.c.l.b16 %v513
        %v1586 = vunpack.c.h.b16 %v513
        %v1587 = vunpack.c.l.b16 %v514
        %v1588 = vunpack.c.h.b16 %v514
        %v1589 = vunpack.c.l.b16 %v515
        %v1590 = vunpack.c.h.b16 %v515
        %v1591 = vunpack.c.l.b16 %v516
        %v1592 = vunpack.c.h.b16 %v516
        %v1593 = vunpack.c.l.b16 %v517
        %v1594 = vunpack.c.h.b16 %v517
        %v1595 = vunpack.c.l.b16 %v518
        %v1596 = vunpack.c.h.b16 %v518
        %v1597 = vunpack.c.l.b16 %v519
        %v1598 = vunpack.c.h.b16 %v519
        %v1599 = vunpack.c.l.b16 %v520
        %v1600 = vunpack.c.h.b16 %v520
        %v1601 = vunpack.c.l.b16 %v521
        %v1602 = vunpack.c.h.b16 %v521
        %v1603 = vunpack.c.l.b16 %v522
        %v1604 = vunpack.c.h.b16 %v522
        %v1605 = vunpack.c.l.b16 %v523
        %v1606 = vunpack.c.h.b16 %v523
        %v1607 = vunpack.c.l.b16 %v524
        %v1608 = vunpack.c.h.b16 %v524
        %v1609 = vunpack.c.l.b16 %v525
        %v1610 = vunpack.c.h.b16 %v525
        %v1611 = vunpack.c.l.b16 %v526
        %v1612 = vunpack.c.h.b16 %v526
        %v1613 = vunpack.c.l.b16 %v527
        %v1614 = vunpack.c.h.b16 %v527
        %v1615 = vunpack.c.l.b16 %v528
        %v1616 = vunpack.c.h.b16 %v528
        %v1617 = vunpack.c.l.b16 %v529
        %v1618 = vunpack.c.h.b16 %v529
        %v1619 = vunpack.c.l.b16 %v530
        %v1620 = vunpack.c.h.b16 %v530
        %v1621 = vunpack.c.l.b16 %v531
        %v1622 = vunpack.c.h.b16 %v531
        %v1623 = vunpack.c.l.b16 %v532
        %v1624 = vunpack.c.h.b16 %v532
        %v1625 = vunpack.c.l.b16 %v533
        %v1626 = vunpack.c.h.b16 %v533
        %v1627 = vunpack.c.l.b16 %v534
        %v1628 = vunpack.c.h.b16 %v534
        %v1629 = vunpack.c.l.b16 %v535
        %v1630 = vunpack.c.h.b16 %v535
        %v1631 = vunpack.c.l.b16 %v536
        %v1632 = vunpack.c.h.b16 %v536
        %v1633 = vunpack.c.l.b16 %v537
        %v1634 = vunpack.c.h.b16 %v537
        %v1635 = vunpack.c.l.b16 %v538
        %v1636 = vunpack.c.h.b16 %v538
        %v1637 = vunpack.c.l.b16 %v539
        %v1638 = vunpack.c.h.b16 %v539
        %v1639 = vunpack.c.l.b16 %v540
        %v1640 = vunpack.c.h.b16 %v540
        %v1641 = vunpack.c.l.b16 %v541
        %v1642 = vunpack.c.h.b16 %v541
        %v1643 = vunpack.c.l.b16 %v542
        %v1644 = vunpack.c.h.b16 %v542
        %v1645 = vunpack.c.l.b16 %v543
        %v1646 = vunpack.c.h.b16 %v543
        %v1647 = vunpack.c.l.b16 %v544
        %v1648 = vunpack.c.h.b16 %v544
        %v1649 = vunpack.c.l.b16 %v545
        %v1650 = vunpack.c.h.b16 %v545
        %v1651 = vunpack.c.l.b16 %v546
        %v1652 = vunpack.c.h.b16 %v546
        %v1653 = vunpack.c.l.b16 %v547
        %v1654 = vunpack.c.h.b16 %v547
        %v1655 = vunpack.c.l.b16 %v548
        %v1656 = vunpack.c.h.b16 %v548
        %v1657 = vunpack.c.l.b16 %v549
        %v1658 = vunpack.c.h.b16 %v549
        %v1659 = vunpack.c.l.b16 %v550
        %v1660 = vunpack.c.h.b16 %v550
        %v1661 = vunpack.c.l.b16 %v551
        %v1662 = vunpack.c.h.b16 %v551
        %v1663 = vunpack.c.l.b16 %v552
        %v1664 = vunpack.c.h.b16 %v552
        %v1665 = vunpack.c.l.b16 %v553
        %v1666 = vunpack.c.h.b16 %v553
        %v1667 = vunpack.c.l.b16 %v554
        %v1668 = vunpack.c.h.b16 %v554
        %v1669 = vunpack.c.l.b16 %v555
        %v1670 = vunpack.c.h.b16 %v555
        %v1671 = vunpack.c.l.b16 %v556
        %v1672 = vunpack.c.h.b16 %v556
        %v1673 = vunpack.c.l.b16 %v557
        %v1674 = vunpack.c.h.b16 %v557
        %v1675 = vunpack.c.l.b16 %v558
        %v1676 = vunpack.c.h.b16 %v558
        %v1677 = vunpack.c.l.b16 %v559
        %v1678 = vunpack.c.h.b16 %v559
        %v1679 = vunpack.c.l.b16 %v560
        %v1680 = vunpack.c.h.b16 %v560
        %v1681 = vunpack.c.l.b16 %v561
        %v1682 = vunpack.c.h.b16 %v561
        %v1683 = vunpack.c.l.b16 %v562
        %v1684 = vunpack.c.h.b16 %v562
        %v1685 = vunpack.c.l.b16 %v563
        %v1686 = vunpack.c.h.b16 %v563
        %v1687 = vunpack.c.l.b16 %v564
        %v1688 = vunpack.c.h.b16 %v564
        %v1689 = vunpack.c.l.b16 %v565
        %v1690 = vunpack.c.h.b16 %v565
        %v1691 = vunpack.c.l.b16 %v566
        %v1692 = vunpack.c.h.b16 %v566
        %v1693 = vunpack.c.l.b16 %v567
        %v1694 = vunpack.c.h.b16 %v567
        %v1695 = vunpack.c.l.b16 %v568
        %v1696 = vunpack.c.h.b16 %v568
        %v1697 = vunpack.c.l.b16 %v569
        %v1698 = vunpack.c.h.b16 %v569
        %v1699 = vunpack.c.l.b16 %v570
        %v1700 = vunpack.c.h.b16 %v570
        %v1701 = vunpack.c.l.b16 %v571
        %v1702 = vunpack.c.h.b16 %v571
        %v1703 = vunpack.c.l.b16 %v572
        %v1704 = vunpack.c.h.b16 %v572
        %v1705 = vunpack.c.l.b16 %v573
        %v1706 = vunpack.c.h.b16 %v573
        %v1707 = vunpack.c.l.b16 %v574
        %v1708 = vunpack.c.h.b16 %v574
        %v1709 = vunpack.c.l.b16 %v575
        %v1710 = vunpack.c.h.b16 %v575
        %v1711 = vunpack.c.l.b16 %v576
        %v1712 = vunpack.c.h.b16 %v576
        %v1713 = vunpack.c.l.b16 %v577
        %v1714 = vunpack.c.h.b16 %v577
        %v1715 = vunpack.c.l.b16 %v578
        %v1716 = vunpack.c.h.b16 %v578
        %v1717 = vunpack.c.l.b16 %v579
        %v1718 = vunpack.c.h.b16 %v579
        %v1719 = vunpack.c.l.b16 %v580
        %v1720 = vunpack.c.h.b16 %v580
        %v1721 = vunpack.c.l.b16 %v581
        %v1722 = vunpack.c.h.b16 %v581
        %v1723 = vunpack.c.l.b16 %v582
        %v1724 = vunpack.c.h.b16 %v582
        %v1725 = vunpack.c.l.b16 %v583
        %v1726 = vunpack.c.h.b16 %v583
        %v1727 = vunpack.c.l.b16 %v584
        %v1728 = vunpack.c.h.b16 %v584
        %v1729 = vunpack.c.l.b16 %v585
        %v1730 = vunpack.c.h.b16 %v585
        %v1731 = vunpack.c.l.b16 %v586
        %v1732 = vunpack.c.h.b16 %v586
        %v1733 = vunpack.c.l.b16 %v587
        %v1734 = vunpack.c.h.b16 %v587
        %v1735 = vunpack.c.l.b16 %v588
        %v1736 = vunpack.c.h.b16 %v588
        %v1737 = vunpack.c.l.b16 %v589
        %v1738 = vunpack.c.h.b16 %v589
        %v1739 = vunpack.c.l.b16 %v590
        %v1740 = vunpack.c.h.b16 %v590
        %v1741 = vunpack.c.l.b16 %v591
        %v1742 = vunpack.c.h.b16 %v591
        %v1743 = vunpack.c.l.b16 %v592
        %v1744 = vunpack.c.h.b16 %v592
        %v1745 = vunpack.c.l.b16 %v593
        %v1746 = vunpack.c.h.b16 %v593
        %v1747 = vunpack.c.l.b16 %v594
        %v1748 = vunpack.c.h.b16 %v594
        %v1749 = vunpack.c.l.b16 %v595
        %v1750 = vunpack.c.h.b16 %v595
        %v1751 = vunpack.c.l.b16 %v596
        %v1752 = vunpack.c.h.b16 %v596
        %v1753 = vunpack.c.l.b16 %v597
        %v1754 = vunpack.c.h.b16 %v597
        %v1755 = vunpack.c.l.b16 %v598
        %v1756 = vunpack.c.h.b16 %v598
        %v1757 = vunpack.c.l.b16 %v599
        %v1758 = vunpack.c.h.b16 %v599
        %v1759 = vunpack.c.l.b16 %v600
        %v1760 = vunpack.c.h.b16 %v600
        %v1761 = vunpack.c.l.b16 %v601
        %v1762 = vunpack.c.h.b16 %v601
        %v1763 = vunpack.c.l.b16 %v602
        %v1764 = vunpack.c.h.b16 %v602
        %v1765 = vunpack.c.l.b16 %v603
        %v1766 = vunpack.c.h.b16 %v603
        %v1767 = vunpack.c.l.b16 %v604
        %v1768 = vunpack.c.h.b16 %v604
        %v1769 = vunpack.c.l.b16 %v605
        %v1770 = vunpack.c.h.b16 %v605
        %v1771 = vunpack.c.l.b16 %v606
        %v1772 = vunpack.c.h.b16 %v606
        %v1773 = vunpack.c.l.b16 %v607
        %v1774 = vunpack.c.h.b16 %v607
        %v1775 = vunpack.c.l.b16 %v608
        %v1776 = vunpack.c.h.b16 %v608
        %v1777 = vunpack.c.l.b16 %v609
        %v1778 = vunpack.c.h.b16 %v609
        %v1779 = vunpack.c.l.b16 %v610
        %v1780 = vunpack.c.h.b16 %v610
        %v1781 = vunpack.c.l.b16 %v611
        %v1782 = vunpack.c.h.b16 %v611
        %v1783 = vunpack.c.l.b16 %v612
        %v1784 = vunpack.c.h.b16 %v612
        %v1785 = vunpack.c.l.b16 %v613
        %v1786 = vunpack.c.h.b16 %v613
        %v1787 = vunpack.c.l.b16 %v614
        %v1788 = vunpack.c.h.b16 %v614
        %v1789 = vunpack.c.l.b16 %v615
        %v1790 = vunpack.c.h.b16 %v615
        %v1791 = vunpack.c.l.b16 %v616
        %v1792 = vunpack.c.h.b16 %v616
        %v1793 = vunpack.c.l.b16 %v617
        %v1794 = vunpack.c.h.b16 %v617
        %v1795 = vunpack.c.l.b16 %v618
        %v1796 = vunpack.c.h.b16 %v618
        %v1797 = vunpack.c.l.b16 %v619
        %v1798 = vunpack.c.h.b16 %v619
        %v1799 = vunpack.c.l.b16 %v620
        %v1800 = vunpack.c.h.b16 %v620
        %v1801 = vunpack.c.l.b16 %v621
        %v1802 = vunpack.c.h.b16 %v621
        %v1803 = vunpack.c.l.b16 %v622
        %v1804 = vunpack.c.h.b16 %v622
        %v1805 = vunpack.c.l.b16 %v623
        %v1806 = vunpack.c.h.b16 %v623
        %v1807 = vunpack.c.l.b16 %v624
        %v1808 = vunpack.c.h.b16 %v624
        %v1809 = vunpack.c.l.b16 %v625
        %v1810 = vunpack.c.h.b16 %v625
        %v1811 = vunpack.c.l.b16 %v626
        %v1812 = vunpack.c.h.b16 %v626
        %v1813 = vunpack.c.l.b16 %v627
        %v1814 = vunpack.c.h.b16 %v627
        %v1815 = vunpack.c.l.b16 %v628
        %v1816 = vunpack.c.h.b16 %v628
        %v1817 = vunpack.c.l.b16 %v629
        %v1818 = vunpack.c.h.b16 %v629
        %v1819 = vunpack.c.l.b16 %v630
        %v1820 = vunpack.c.h.b16 %v630
        %v1821 = vunpack.c.l.b16 %v631
        %v1822 = vunpack.c.h.b16 %v631
        %v1823 = vunpack.c.l.b16 %v632
        %v1824 = vunpack.c.h.b16 %v632
        %v1825 = vunpack.c.l.b16 %v633
        %v1826 = vunpack.c.h.b16 %v633
        %v1827 = vunpack.c.l.b16 %v634
        %v1828 = vunpack.c.h.b16 %v634
        %v1829 = vunpack.c.l.b16 %v635
        %v1830 = vunpack.c.h.b16 %v635
        %v1831 = vunpack.c.l.b16 %v636
        %v1832 = vunpack.c.h.b16 %v636
        %v1833 = vunpack.c.l.b16 %v637
        %v1834 = vunpack.c.h.b16 %v637
        %v1835 = vunpack.c.l.b16 %v638
        %v1836 = vunpack.c.h.b16 %v638
        %v1837 = vunpack.c.l.b16 %v639
        %v1838 = vunpack.c.h.b16 %v639
        %v1839 = vunpack.c.l.b16 %v640
        %v1840 = vunpack.c.h.b16 %v640
        %v1841 = vunpack.c.l.b16 %v641
        %v1842 = vunpack.c.h.b16 %v641
        %v1843 = vunpack.c.l.b16 %v642
        %v1844 = vunpack.c.h.b16 %v642
        %v1845 = vunpack.c.l.b16 %v643
        %v1846 = vunpack.c.h.b16 %v643
        %v1847 = vunpack.c.l.b16 %v644
        %v1848 = vunpack.c.h.b16 %v644
        %v1849 = vunpack.c.l.b16 %v645
        %v1850 = vunpack.c.h.b16 %v645
        %v1851 = vunpack.c.l.b16 %v646
        %v1852 = vunpack.c.h.b16 %v646
        %v1853 = vunpack.c.l.b16 %v647
        %v1854 = vunpack.c.h.b16 %v647
        %v1855 = vunpack.c.l.b16 %v648
        %v1856 = vunpack.c.h.b16 %v648
        %v1857 = vunpack.c.l.b16 %v649
        %v1858 = vunpack.c.h.b16 %v649
        %v1859 = vunpack.c.l.b16 %v650
        %v1860 = vunpack.c.h.b16 %v650
        %v1861 = vunpack.c.l.b16 %v651
        %v1862 = vunpack.c.h.b16 %v651
        %v1863 = vunpack.c.l.b16 %v652
        %v1864 = vunpack.c.h.b16 %v652
        %v1865 = vunpack.c.l.b16 %v653
        %v1866 = vunpack.c.h.b16 %v653
        %v1867 = vunpack.c.l.b16 %v654
        %v1868 = vunpack.c.h.b16 %v654
        %v1869 = vunpack.c.l.b16 %v655
        %v1870 = vunpack.c.h.b16 %v655
        %v1871 = vunpack.c.l.b16 %v656
        %v1872 = vunpack.c.h.b16 %v656
        %v1873 = vunpack.c.l.b16 %v657
        %v1874 = vunpack.c.h.b16 %v657
        %v1875 = vunpack.c.l.b16 %v658
        %v1876 = vunpack.c.h.b16 %v658
        %v1877 = vunpack.c.l.b16 %v659
        %v1878 = vunpack.c.h.b16 %v659
        %v1879 = vunpack.c.l.b16 %v660
        %v1880 = vunpack.c.h.b16 %v660
        %v1881 = vunpack.c.l.b16 %v661
        %v1882 = vunpack.c.h.b16 %v661
        %v1883 = vunpack.c.l.b16 %v662
        %v1884 = vunpack.c.h.b16 %v662
        %v1885 = vunpack.c.l.b16 %v663
        %v1886 = vunpack.c.h.b16 %v663
        %v1887 = vunpack.c.l.b16 %v664
        %v1888 = vunpack.c.h.b16 %v664
        %v1889 = vunpack.c.l.b16 %v665
        %v1890 = vunpack.c.h.b16 %v665
        %v1891 = vunpack.c.l.b16 %v666
        %v1892 = vunpack.c.h.b16 %v666
        %v1893 = vunpack.c.l.b16 %v667
        %v1894 = vunpack.c.h.b16 %v667
        %v1895 = vunpack.c.l.b16 %v668
        %v1896 = vunpack.c.h.b16 %v668
        %v1897 = vunpack.c.l.b16 %v669
        %v1898 = vunpack.c.h.b16 %v669
        %v1899 = vunpack.c.l.b16 %v670
        %v1900 = vunpack.c.h.b16 %v670
        %v1901 = vunpack.c.l.b16 %v671
        %v1902 = vunpack.c.h.b16 %v671
        %v1903 = vunpack.c.l.b16 %v672
        %v1904 = vunpack.c.h.b16 %v672
        %v1905 = vunpack.c.l.b16 %v673
        %v1906 = vunpack.c.h.b16 %v673
        %v1907 = vunpack.c.l.b16 %v674
        %v1908 = vunpack.c.h.b16 %v674
        %v1909 = vunpack.c.l.b16 %v675
        %v1910 = vunpack.c.h.b16 %v675
        %v1911 = vunpack.c.l.b16 %v676
        %v1912 = vunpack.c.h.b16 %v676
        %v1913 = vunpack.c.l.b16 %v677
        %v1914 = vunpack.c.h.b16 %v677
        %v1915 = vunpack.c.l.b16 %v678
        %v1916 = vunpack.c.h.b16 %v678
        %v1917 = vunpack.c.l.b16 %v679
        %v1918 = vunpack.c.h.b16 %v679
        %v1919 = vunpack.c.l.b16 %v680
        %v1920 = vunpack.c.h.b16 %v680
        %v1921 = vunpack.c.l.b16 %v681
        %v1922 = vunpack.c.h.b16 %v681
        %v1923 = vunpack.c.l.b16 %v682
        %v1924 = vunpack.c.h.b16 %v682
        %v1925 = vunpack.c.l.b16 %v683
        %v1926 = vunpack.c.h.b16 %v683
        %v1927 = vunpack.c.l.b16 %v684
        %v1928 = vunpack.c.h.b16 %v684
        %v1929 = vunpack.c.l.b16 %v685
        %v1930 = vunpack.c.h.b16 %v685
        %v1931 = vunpack.c.l.b16 %v686
        %v1932 = vunpack.c.h.b16 %v686
        %v1933 = vunpack.c.l.b16 %v687
        %v1934 = vunpack.c.h.b16 %v687
        %v1935 = vunpack.c.l.b16 %v688
        %v1936 = vunpack.c.h.b16 %v688
        %v1937 = vunpack.c.l.b16 %v689
        %v1938 = vunpack.c.h.b16 %v689
        %v1939 = vunpack.c.l.b16 %v690
        %v1940 = vunpack.c.h.b16 %v690
        %v1941 = vunpack.c.l.b16 %v691
        %v1942 = vunpack.c.h.b16 %v691
        %v1943 = vunpack.c.l.b16 %v692
        %v1944 = vunpack.c.h.b16 %v692
        %v1945 = vunpack.c.l.b16 %v693
        %v1946 = vunpack.c.h.b16 %v693
        %v1947 = vunpack.c.l.b16 %v694
        %v1948 = vunpack.c.h.b16 %v694
        %v1949 = vunpack.c.l.b16 %v695
        %v1950 = vunpack.c.h.b16 %v695
        %v1951 = vunpack.c.l.b16 %v696
        %v1952 = vunpack.c.h.b16 %v696
        %v1953 = vunpack.c.l.b16 %v697
        %v1954 = vunpack.c.h.b16 %v697
        %v1955 = vunpack.c.l.b16 %v698
        %v1956 = vunpack.c.h.b16 %v698
        %v1957 = vunpack.c.l.b16 %v699
        %v1958 = vunpack.c.h.b16 %v699
        %v1959 = vunpack.c.l.b16 %v700
        %v1960 = vunpack.c.h.b16 %v700
        %v1961 = vunpack.c.l.b16 %v701
        %v1962 = vunpack.c.h.b16 %v701
        %v1963 = vunpack.c.l.b16 %v702
        %v1964 = vunpack.c.h.b16 %v702
        %v1965 = vunpack.c.l.b16 %v703
        %v1966 = vunpack.c.h.b16 %v703
        %v1967 = vunpack.c.l.b16 %v704
        %v1968 = vunpack.c.h.b16 %v704
        %v1969 = vunpack.c.l.b16 %v705
        %v1970 = vunpack.c.h.b16 %v705
        %v1971 = vunpack.c.l.b16 %v706
        %v1972 = vunpack.c.h.b16 %v706
        %v1973 = vunpack.c.l.b16 %v707
        %v1974 = vunpack.c.h.b16 %v707
        %v1975 = vunpack.c.l.b16 %v708
        %v1976 = vunpack.c.h.b16 %v708
        %v1977 = vunpack.c.l.b16 %v709
        %v1978 = vunpack.c.h.b16 %v709
        %v1979 = vunpack.c.l.b16 %v710
        %v1980 = vunpack.c.h.b16 %v710
        %v1981 = vunpack.c.l.b16 %v711
        %v1982 = vunpack.c.h.b16 %v711
        %v1983 = vunpack.c.l.b16 %v712
        %v1984 = vunpack.c.h.b16 %v712
        %v1985 = vunpack.c.l.b16 %v713
        %v1986 = vunpack.c.h.b16 %v713
        %v1987 = vunpack.c.l.b16 %v714
        %v1988 = vunpack.c.h.b16 %v714
        %v1989 = vunpack.c.l.b16 %v715
        %v1990 = vunpack.c.h.b16 %v715
        %v1991 = vunpack.c.l.b16 %v716
        %v1992 = vunpack.c.h.b16 %v716
        %v1993 = vunpack.c.l.b16 %v717
        %v1994 = vunpack.c.h.b16 %v717
        %v1995 = vunpack.c.l.b16 %v718
        %v1996 = vunpack.c.h.b16 %v718
        %v1997 = vunpack.c.l.b16 %v719
        %v1998 = vunpack.c.h.b16 %v719
        %v1999 = vunpack.c.l.b16 %v720
        %v2000 = vunpack.c.h.b16 %v720
        %v2001 = vunpack.c.l.b16 %v721
        %v2002 = vunpack.c.h.b16 %v721
        %v2003 = vunpack.c.l.b16 %v722
        %v2004 = vunpack.c.h.b16 %v722
        %v2005 = vunpack.c.l.b16 %v723
        %v2006 = vunpack.c.h.b16 %v723
        %v2007 = vunpack.c.l.b16 %v724
        %v2008 = vunpack.c.h.b16 %v724
        %v2009 = vunpack.c.l.b16 %v725
        %v2010 = vunpack.c.h.b16 %v725
        %v2011 = vunpack.c.l.b16 %v726
        %v2012 = vunpack.c.h.b16 %v726
        %v2013 = vunpack.c.l.b16 %v727
        %v2014 = vunpack.c.h.b16 %v727
        %v2015 = vunpack.c.l.b16 %v728
        %v2016 = vunpack.c.h.b16 %v728
        %v2017 = vunpack.c.l.b16 %v729
        %v2018 = vunpack.c.h.b16 %v729
        %v2019 = vunpack.c.l.b16 %v730
        %v2020 = vunpack.c.h.b16 %v730
        %v2021 = vunpack.c.l.b16 %v731
        %v2022 = vunpack.c.h.b16 %v731
        %v2023 = vunpack.c.l.b16 %v732
        %v2024 = vunpack.c.h.b16 %v732
        %v2025 = vunpack.c.l.b16 %v733
        %v2026 = vunpack.c.h.b16 %v733
        %v2027 = vunpack.c.l.b16 %v734
        %v2028 = vunpack.c.h.b16 %v734
        %v2029 = vunpack.c.l.b16 %v735
        %v2030 = vunpack.c.h.b16 %v735
        %v2031 = vunpack.c.l.b16 %v736
        %v2032 = vunpack.c.h.b16 %v736
        %v2033 = vunpack.c.l.b16 %v737
        %v2034 = vunpack.c.h.b16 %v737
        %v2035 = vunpack.c.l.b16 %v738
        %v2036 = vunpack.c.h.b16 %v738
        %v2037 = vunpack.c.l.b16 %v739
        %v2038 = vunpack.c.h.b16 %v739
        %v2039 = vunpack.c.l.b16 %v740
        %v2040 = vunpack.c.h.b16 %v740
        %v2041 = vunpack.c.l.b16 %v741
        %v2042 = vunpack.c.h.b16 %v741
        %v2043 = vunpack.c.l.b16 %v742
        %v2044 = vunpack.c.h.b16 %v742
        %v2045 = vunpack.c.l.b16 %v743
        %v2046 = vunpack.c.h.b16 %v743
        %v2047 = vunpack.c.l.b16 %v744
        %v2048 = vunpack.c.h.b16 %v744
        %v2049 = vunpack.c.l.b16 %v745
        %v2050 = vunpack.c.h.b16 %v745
        %v2051 = vunpack.c.l.b16 %v746
        %v2052 = vunpack.c.h.b16 %v746
        %v2053 = vunpack.c.l.b16 %v747
        %v2054 = vunpack.c.h.b16 %v747
        %v2055 = vunpack.c.l.b16 %v748
        %v2056 = vunpack.c.h.b16 %v748
        %v2057 = vunpack.c.l.b16 %v749
        %v2058 = vunpack.c.h.b16 %v749
        %v2059 = vunpack.c.l.b16 %v750
        %v2060 = vunpack.c.h.b16 %v750
        %v2061 = vunpack.c.l.b16 %v751
        %v2062 = vunpack.c.h.b16 %v751
        %v2063 = vunpack.c.l.b16 %v752
        %v2064 = vunpack.c.h.b16 %v752
        %v2065 = vunpack.c.l.b16 %v753
        %v2066 = vunpack.c.h.b16 %v753
        %v2067 = vunpack.c.l.b16 %v754
        %v2068 = vunpack.c.h.b16 %v754
        %v2069 = vunpack.c.l.b16 %v755
        %v2070 = vunpack.c.h.b16 %v755
        %v2071 = vunpack.c.l.b16 %v756
        %v2072 = vunpack.c.h.b16 %v756
        %v2073 = vunpack.c.l.b16 %v757
        %v2074 = vunpack.c.h.b16 %v757
        %v2075 = vunpack.c.l.b16 %v758
        %v2076 = vunpack.c.h.b16 %v758
        %v2077 = vunpack.c.l.b16 %v759
        %v2078 = vunpack.c.h.b16 %v759
        %v2079 = vunpack.c.l.b16 %v760
        %v2080 = vunpack.c.h.b16 %v760
        %v2081 = vunpack.c.l.b16 %v761
        %v2082 = vunpack.c.h.b16 %v761
        %v2083 = vunpack.c.l.b16 %v762
        %v2084 = vunpack.c.h.b16 %v762
        %v2085 = vunpack.c.l.b16 %v763
        %v2086 = vunpack.c.h.b16 %v763
        %v2087 = vunpack.c.l.b16 %v764
        %v2088 = vunpack.c.h.b16 %v764
        %v2089 = vunpack.c.l.b16 %v765
        %v2090 = vunpack.c.h.b16 %v765
        %v2091 = vunpack.c.l.b16 %v766
        %v2092 = vunpack.c.h.b16 %v766
        %v2093 = vunpack.c.l.b16 %v767
        %v2094 = vunpack.c.h.b16 %v767
        %v2095 = vunpack.c.l.b16 %v768
        %v2096 = vunpack.c.h.b16 %v768
        %v2097 = vunpack.c.l.b16 %v769
        %v2098 = vunpack.c.h.b16 %v769
        %v2099 = vunpack.c.l.b16 %v770
        %v2100 = vunpack.c.h.b16 %v770
        %v2101 = vunpack.c.l.b16 %v771
        %v2102 = vunpack.c.h.b16 %v771
        %v2103 = vunpack.c.l.b16 %v772
        %v2104 = vunpack.c.h.b16 %v772
        %v2105 = vunpack.c.l.b16 %v773
        %v2106 = vunpack.c.h.b16 %v773
        %v2107 = vunpack.c.l.b16 %v774
        %v2108 = vunpack.c.h.b16 %v774
        %v2109 = vunpack.c.l.b16 %v775
        %v2110 = vunpack.c.h.b16 %v775
        %v2111 = vunpack.c.l.b16 %v776
        %v2112 = vunpack.c.h.b16 %v776
        %v2113 = vunpack.c.l.b16 %v777
        %v2114 = vunpack.c.h.b16 %v777
        %v2115 = vunpack.c.l.b16 %v778
        %v2116 = vunpack.c.h.b16 %v778
        %v2117 = vunpack.c.l.b16 %v779
        %v2118 = vunpack.c.h.b16 %v779
        %v2119 = vunpack.c.l.b16 %v780
        %v2120 = vunpack.c.h.b16 %v780
        %v2121 = vunpack.c.l.b16 %v781
        %v2122 = vunpack.c.h.b16 %v781
        %v2123 = vunpack.c.l.b16 %v782
        %v2124 = vunpack.c.h.b16 %v782
        %v2125 = vunpack.c.l.b16 %v783
        %v2126 = vunpack.c.h.b16 %v783
        %v2127 = vunpack.c.l.b16 %v784
        %v2128 = vunpack.c.h.b16 %v784
        %v2129 = vunpack.c.l.b16 %v785
        %v2130 = vunpack.c.h.b16 %v785
        %v2131 = vunpack.c.l.b16 %v786
        %v2132 = vunpack.c.h.b16 %v786
        %v2133 = vunpack.c.l.b16 %v787
        %v2134 = vunpack.c.h.b16 %v787
        %v2135 = vunpack.c.l.b16 %v788
        %v2136 = vunpack.c.h.b16 %v788
        %v2137 = vunpack.c.l.b16 %v789
        %v2138 = vunpack.c.h.b16 %v789
        %v2139 = vunpack.c.l.b16 %v790
        %v2140 = vunpack.c.h.b16 %v790
        %v2141 = vunpack.c.l.b16 %v791
        %v2142 = vunpack.c.h.b16 %v791
        %v2143 = vunpack.c.l.b16 %v792
        %v2144 = vunpack.c.h.b16 %v792
        %v2145 = vunpack.c.l.b16 %v793
        %v2146 = vunpack.c.h.b16 %v793
        %v2147 = vunpack.c.l.b16 %v794
        %v2148 = vunpack.c.h.b16 %v794
        %v2149 = vunpack.c.l.b16 %v795
        %v2150 = vunpack.c.h.b16 %v795
        %v2151 = vunpack.c.l.b16 %v796
        %v2152 = vunpack.c.h.b16 %v796
        %v2153 = vunpack.c.l.b16 %v797
        %v2154 = vunpack.c.h.b16 %v797
        %v2155 = vunpack.c.l.b16 %v798
        %v2156 = vunpack.c.h.b16 %v798
        %v2157 = vunpack.c.l.b16 %v799
        %v2158 = vunpack.c.h.b16 %v799
        %v2159 = vunpack.c.l.b16 %v800
        %v2160 = vunpack.c.h.b16 %v800
        %v2161 = vunpack.c.l.b16 %v801
        %v2162 = vunpack.c.h.b16 %v801
        %v2163 = vunpack.c.l.b16 %v802
        %v2164 = vunpack.c.h.b16 %v802
        %v2165 = vunpack.c.l.b16 %v803
        %v2166 = vunpack.c.h.b16 %v803
        %v2167 = vunpack.c.l.b16 %v804
        %v2168 = vunpack.c.h.b16 %v804
        %v2169 = vunpack.c.l.b16 %v805
        %v2170 = vunpack.c.h.b16 %v805
        %v2171 = vunpack.c.l.b16 %v806
        %v2172 = vunpack.c.h.b16 %v806
        %v2173 = vunpack.c.l.b16 %v807
        %v2174 = vunpack.c.h.b16 %v807
        %v2175 = vunpack.c.l.b16 %v808
        %v2176 = vunpack.c.h.b16 %v808
        %v2177 = vunpack.c.l.b16 %v809
        %v2178 = vunpack.c.h.b16 %v809
        %v2179 = vunpack.c.l.b16 %v810
        %v2180 = vunpack.c.h.b16 %v810
        %v2181 = vunpack.c.l.b16 %v811
        %v2182 = vunpack.c.h.b16 %v811
        %v2183 = vunpack.c.l.b16 %v812
        %v2184 = vunpack.c.h.b16 %v812
        %v2185 = vunpack.c.l.b16 %v813
        %v2186 = vunpack.c.h.b16 %v813
        %v2187 = vunpack.c.l.b16 %v814
        %v2188 = vunpack.c.h.b16 %v814
        %v2189 = vunpack.c.l.b16 %v815
        %v2190 = vunpack.c.h.b16 %v815
        %v2191 = vunpack.c.l.b16 %v816
        %v2192 = vunpack.c.h.b16 %v816
        %v2193 = vunpack.c.l.b16 %v817
        %v2194 = vunpack.c.h.b16 %v817
        %v2195 = vunpack.c.l.b16 %v818
        %v2196 = vunpack.c.h.b16 %v818
        %v2197 = vunpack.c.l.b16 %v819
        %v2198 = vunpack.c.h.b16 %v819
        %v2199 = vunpack.c.l.b16 %v820
        %v2200 = vunpack.c.h.b16 %v820
        %v2201 = vunpack.c.l.b16 %v821
        %v2202 = vunpack.c.h.b16 %v821
        %v2203 = vunpack.c.l.b16 %v822
        %v2204 = vunpack.c.h.b16 %v822
        %v2205 = vunpack.c.l.b16 %v823
        %v2206 = vunpack.c.h.b16 %v823
        %v2207 = vunpack.c.l.b16 %v824
        %v2208 = vunpack.c.h.b16 %v824
        %v2209 = vunpack.c.l.b16 %v825
        %v2210 = vunpack.c.h.b16 %v825
        %v2211 = vunpack.c.l.b16 %v826
        %v2212 = vunpack.c.h.b16 %v826
        %v2213 = vunpack.c.l.b16 %v827
        %v2214 = vunpack.c.h.b16 %v827
        %v2215 = vunpack.c.l.b16 %v828
        %v2216 = vunpack.c.h.b16 %v828
        %v2217 = vunpack.c.l.b16 %v829
        %v2218 = vunpack.c.h.b16 %v829
        %v2219 = vunpack.c.l.b16 %v830
        %v2220 = vunpack.c.h.b16 %v830
        %v2221 = vunpack.c.l.b16 %v831
        %v2222 = vunpack.c.h.b16 %v831
        %v2223 = vunpack.c.l.b16 %v832
        %v2224 = vunpack.c.h.b16 %v832
        %v2225 = vunpack.c.l.b16 %v833
        %v2226 = vunpack.c.h.b16 %v833
        %v2227 = vunpack.c.l.b16 %v834
        %v2228 = vunpack.c.h.b16 %v834
        %v2229 = vunpack.c.l.b16 %v835
        %v2230 = vunpack.c.h.b16 %v835
        %v2231 = vunpack.c.l.b16 %v836
        %v2232 = vunpack.c.h.b16 %v836
        %v2233 = vunpack.c.l.b16 %v837
        %v2234 = vunpack.c.h.b16 %v837
        %v2235 = vunpack.c.l.b16 %v838
        %v2236 = vunpack.c.h.b16 %v838
        %v2237 = vunpack.c.l.b16 %v839
        %v2238 = vunpack.c.h.b16 %v839
        %v2239 = vunpack.c.l.b16 %v840
        %v2240 = vunpack.c.h.b16 %v840
        %v2241 = vunpack.c.l.b16 %v841
        %v2242 = vunpack.c.h.b16 %v841
        %v2243 = vunpack.c.l.b16 %v842
        %v2244 = vunpack.c.h.b16 %v842
        %v2245 = vunpack.c.l.b16 %v843
        %v2246 = vunpack.c.h.b16 %v843
        %v2247 = vunpack.c.l.b16 %v844
        %v2248 = vunpack.c.h.b16 %v844
        %v2249 = vunpack.c.l.b16 %v845
        %v2250 = vunpack.c.h.b16 %v845
        %v2251 = vunpack.c.l.b16 %v846
        %v2252 = vunpack.c.h.b16 %v846
        %v2253 = vunpack.c.l.b16 %v847
        %v2254 = vunpack.c.h.b16 %v847
        %v2255 = vunpack.c.l.b16 %v848
        %v2256 = vunpack.c.h.b16 %v848
        %v2257 = vunpack.c.l.b16 %v849
        %v2258 = vunpack.c.h.b16 %v849
        %v2259 = vunpack.c.l.b16 %v850
        %v2260 = vunpack.c.h.b16 %v850
        %v2261 = vunpack.c.l.b16 %v851
        %v2262 = vunpack.c.h.b16 %v851
        %v2263 = vunpack.c.l.b16 %v852
        %v2264 = vunpack.c.h.b16 %v852
        %v2265 = vunpack.c.l.b16 %v853
        %v2266 = vunpack.c.h.b16 %v853
        %v2267 = vunpack.c.l.b16 %v854
        %v2268 = vunpack.c.h.b16 %v854
        %v2269 = vunpack.c.l.b16 %v855
        %v2270 = vunpack.c.h.b16 %v855
        %v2271 = vunpack.c.l.b16 %v856
        %v2272 = vunpack.c.h.b16 %v856
        %v2273 = vunpack.c.l.b16 %v857
        %v2274 = vunpack.c.h.b16 %v857
        %v2275 = vunpack.c.l.b16 %v858
        %v2276 = vunpack.c.h.b16 %v858
        %v2277 = vunpack.c.l.b16 %v859
        %v2278 = vunpack.c.h.b16 %v859
        %v2279 = vunpack.c.l.b16 %v860
        %v2280 = vunpack.c.h.b16 %v860
        %v2281 = vunpack.c.l.b16 %v861
        %v2282 = vunpack.c.h.b16 %v861
        %v2283 = vunpack.c.l.b16 %v862
        %v2284 = vunpack.c.h.b16 %v862
        %v2285 = vunpack.c.l.b16 %v863
        %v2286 = vunpack.c.h.b16 %v863
        %v2287 = vunpack.c.l.b16 %v864
        %v2288 = vunpack.c.h.b16 %v864
        %v2289 = vunpack.c.l.b16 %v865
        %v2290 = vunpack.c.h.b16 %v865
        %v2291 = vunpack.c.l.b16 %v866
        %v2292 = vunpack.c.h.b16 %v866
        %v2293 = vunpack.c.l.b16 %v867
        %v2294 = vunpack.c.h.b16 %v867
        %v2295 = vunpack.c.l.b16 %v868
        %v2296 = vunpack.c.h.b16 %v868
        %v2297 = vunpack.c.l.b16 %v869
        %v2298 = vunpack.c.h.b16 %v869
        %v2299 = vunpack.c.l.b16 %v870
        %v2300 = vunpack.c.h.b16 %v870
        %v2301 = vunpack.c.l.b16 %v871
        %v2302 = vunpack.c.h.b16 %v871
        %v2303 = vunpack.c.l.b16 %v872
        %v2304 = vunpack.c.h.b16 %v872
        %v2305 = vunpack.c.l.b16 %v873
        %v2306 = vunpack.c.h.b16 %v873
        %v2307 = vunpack.c.l.b16 %v874
        %v2308 = vunpack.c.h.b16 %v874
        %v2309 = vunpack.c.l.b16 %v875
        %v2310 = vunpack.c.h.b16 %v875
        %v2311 = vunpack.c.l.b16 %v876
        %v2312 = vunpack.c.h.b16 %v876
        %v2313 = vunpack.c.l.b16 %v877
        %v2314 = vunpack.c.h.b16 %v877
        %v2315 = vunpack.c.l.b16 %v878
        %v2316 = vunpack.c.h.b16 %v878
        %v2317 = vunpack.c.l.b16 %v879
        %v2318 = vunpack.c.h.b16 %v879
        %v2319 = vunpack.c.l.b16 %v880
        %v2320 = vunpack.c.h.b16 %v880
        %v2321 = vunpack.c.l.b16 %v881
        %v2322 = vunpack.c.h.b16 %v881
        %v2323 = vunpack.c.l.b16 %v882
        %v2324 = vunpack.c.h.b16 %v882
        %v2325 = vunpack.c.l.b16 %v883
        %v2326 = vunpack.c.h.b16 %v883
        %v2327 = vunpack.c.l.b16 %v884
        %v2328 = vunpack.c.h.b16 %v884
        %v2329 = vunpack.c.l.b16 %v885
        %v2330 = vunpack.c.h.b16 %v885
        %v2331 = vunpack.c.l.b16 %v886
        %v2332 = vunpack.c.h.b16 %v886
        %v2333 = vunpack.c.l.b16 %v887
        %v2334 = vunpack.c.h.b16 %v887
        %v2335 = vunpack.c.l.b16 %v888
        %v2336 = vunpack.c.h.b16 %v888
        %v2337 = vunpack.c.l.b16 %v889
        %v2338 = vunpack.c.h.b16 %v889
        %v2339 = vunpack.c.l.b16 %v890
        %v2340 = vunpack.c.h.b16 %v890
        %v2341 = vunpack.c.l.b16 %v891
        %v2342 = vunpack.c.h.b16 %v891
        %v2343 = vunpack.c.l.b16 %v892
        %v2344 = vunpack.c.h.b16 %v892
        %v2345 = vunpack.c.l.b16 %v893
        %v2346 = vunpack.c.h.b16 %v893
        %v2347 = vunpack.c.l.b16 %v894
        %v2348 = vunpack.c.h.b16 %v894
        %v2349 = vunpack.c.l.b16 %v895
        %v2350 = vunpack.c.h.b16 %v895
        %v2351 = vunpack.c.l.b16 %v896
        %v2352 = vunpack.c.h.b16 %v896
        %v2353 = vunpack.c.l.b16 %v897
        %v2354 = vunpack.c.h.b16 %v897
        %v2355 = vunpack.c.l.b16 %v898
        %v2356 = vunpack.c.h.b16 %v898
        %v2357 = vunpack.c.l.b16 %v899
        %v2358 = vunpack.c.h.b16 %v899
        %v2359 = vunpack.c.l.b16 %v900
        %v2360 = vunpack.c.h.b16 %v900
        %v2361 = vunpack.c.l.b16 %v901
        %v2362 = vunpack.c.h.b16 %v901
        %v2363 = vunpack.c.l.b16 %v902
        %v2364 = vunpack.c.h.b16 %v902
        %v2365 = vunpack.c.l.b16 %v903
        %v2366 = vunpack.c.h.b16 %v903
        %v2367 = vunpack.c.l.b16 %v904
        %v2368 = vunpack.c.h.b16 %v904
        %v2369 = vunpack.c.l.b16 %v905
        %v2370 = vunpack.c.h.b16 %v905
        %v2371 = vunpack.c.l.b16 %v906
        %v2372 = vunpack.c.h.b16 %v906
        %v2373 = vunpack.c.l.b16 %v907
        %v2374 = vunpack.c.h.b16 %v907
        %v2375 = vunpack.c.l.b16 %v908
        %v2376 = vunpack.c.h.b16 %v908
        %v2377 = vunpack.c.l.b16 %v909
        %v2378 = vunpack.c.h.b16 %v909
        %v2379 = vunpack.c.l.b16 %v910
        %v2380 = vunpack.c.h.b16 %v910
        %v2381 = vunpack.c.l.b16 %v911
        %v2382 = vunpack.c.h.b16 %v911
        %v2383 = vunpack.c.l.b16 %v912
        %v2384 = vunpack.c.h.b16 %v912
        %v2385 = vunpack.c.l.b16 %v913
        %v2386 = vunpack.c.h.b16 %v913
        %v2387 = vunpack.c.l.b16 %v914
        %v2388 = vunpack.c.h.b16 %v914
        %v2389 = vunpack.c.l.b16 %v915
        %v2390 = vunpack.c.h.b16 %v915
        %v2391 = vunpack.c.l.b16 %v916
        %v2392 = vunpack.c.h.b16 %v916
        %v2393 = vunpack.c.l.b16 %v917
        %v2394 = vunpack.c.h.b16 %v917
        %v2395 = vunpack.c.l.b16 %v918
        %v2396 = vunpack.c.h.b16 %v918
        %v2397 = vunpack.c.l.b16 %v919
        %v2398 = vunpack.c.h.b16 %v919
        %v2399 = vunpack.c.l.b16 %v920
        %v2400 = vunpack.c.h.b16 %v920
        %v2401 = vunpack.c.l.b16 %v921
        %v2402 = vunpack.c.h.b16 %v921
        %v2403 = vunpack.c.l.b16 %v922
        %v2404 = vunpack.c.h.b16 %v922
        %v2405 = vunpack.c.l.b16 %v923
        %v2406 = vunpack.c.h.b16 %v923
        %v2407 = vunpack.c.l.b16 %v924
        %v2408 = vunpack.c.h.b16 %v924
        %v2409 = vunpack.c.l.b16 %v925
        %v2410 = vunpack.c.h.b16 %v925
        %v2411 = vunpack.c.l.b16 %v926
        %v2412 = vunpack.c.h.b16 %v926
        %v2413 = vunpack.c.l.b16 %v927
        %v2414 = vunpack.c.h.b16 %v927
        %v2415 = vunpack.c.l.b16 %v928
        %v2416 = vunpack.c.h.b16 %v928
        %v2417 = vunpack.c.l.b16 %v929
        %v2418 = vunpack.c.h.b16 %v929
        %v2419 = vunpack.c.l.b16 %v930
        %v2420 = vunpack.c.h.b16 %v930
        %v2421 = vunpack.c.l.b16 %v931
        %v2422 = vunpack.c.h.b16 %v931
        %v2423 = vunpack.c.l.b16 %v932
        %v2424 = vunpack.c.h.b16 %v932
        %v2425 = vunpack.c.l.b16 %v933
        %v2426 = vunpack.c.h.b16 %v933
        %v2427 = vunpack.c.l.b16 %v934
        %v2428 = vunpack.c.h.b16 %v934
        %v2429 = vunpack.c.l.b16 %v935
        %v2430 = vunpack.c.h.b16 %v935
        %v2431 = vunpack.c.l.b16 %v936
        %v2432 = vunpack.c.h.b16 %v936
        %v2433 = vunpack.c.l.b16 %v937
        %v2434 = vunpack.c.h.b16 %v937
        %v2435 = vunpack.c.l.b16 %v938
        %v2436 = vunpack.c.h.b16 %v938
        %v2437 = vunpack.c.l.b16 %v939
        %v2438 = vunpack.c.h.b16 %v939
        %v2439 = vunpack.c.l.b16 %v940
        %v2440 = vunpack.c.h.b16 %v940
        %v2441 = vunpack.c.l.b16 %v941
        %v2442 = vunpack.c.h.b16 %v941
        %v2443 = vunpack.c.l.b16 %v942
        %v2444 = vunpack.c.h.b16 %v942
        %v2445 = vunpack.c.l.b16 %v943
        %v2446 = vunpack.c.h.b16 %v943
        %v2447 = vunpack.c.l.b16 %v944
        %v2448 = vunpack.c.h.b16 %v944
        %v2449 = vunpack.c.l.b16 %v945
        %v2450 = vunpack.c.h.b16 %v945
        %v2451 = vunpack.c.l.b16 %v946
        %v2452 = vunpack.c.h.b16 %v946
        %v2453 = vunpack.c.l.b16 %v947
        %v2454 = vunpack.c.h.b16 %v947
        %v2455 = vunpack.c.l.b16 %v948
        %v2456 = vunpack.c.h.b16 %v948
        %v2457 = vunpack.c.l.b16 %v949
        %v2458 = vunpack.c.h.b16 %v949
        %v2459 = vunpack.c.l.b16 %v950
        %v2460 = vunpack.c.h.b16 %v950
        %v2461 = vunpack.c.l.b16 %v951
        %v2462 = vunpack.c.h.b16 %v951
        %v2463 = vunpack.c.l.b16 %v952
        %v2464 = vunpack.c.h.b16 %v952
        %v2465 = vunpack.c.l.b16 %v953
        %v2466 = vunpack.c.h.b16 %v953
        %v2467 = vunpack.c.l.b16 %v954
        %v2468 = vunpack.c.h.b16 %v954
        %v2469 = vunpack.c.l.b16 %v955
        %v2470 = vunpack.c.h.b16 %v955
        %v2471 = vunpack.c.l.b16 %v956
        %v2472 = vunpack.c.h.b16 %v956
        %v2473 = vunpack.c.l.b16 %v957
        %v2474 = vunpack.c.h.b16 %v957
        %v2475 = vunpack.c.l.b16 %v958
        %v2476 = vunpack.c.h.b16 %v958
        %v2477 = vunpack.c.l.b16 %v959
        %v2478 = vunpack.c.h.b16 %v959
        %v2479 = vunpack.c.l.b16 %v960
        %v2480 = vunpack.c.h.b16 %v960
        %v2481 = vunpack.c.l.b16 %v961
        %v2482 = vunpack.c.h.b16 %v961
        %v2483 = vunpack.c.l.b16 %v962
        %v2484 = vunpack.c.h.b16 %v962
        %v2485 = vunpack.c.l.b16 %v963
        %v2486 = vunpack.c.h.b16 %v963
        %v2487 = vunpack.c.l.b16 %v964
        %v2488 = vunpack.c.h.b16 %v964
        %v2489 = vunpack.c.l.b16 %v965
        %v2490 = vunpack.c.h.b16 %v965
        %v2491 = vunpack.c.l.b16 %v966
        %v2492 = vunpack.c.h.b16 %v966
        %v2493 = vunpack.c.l.b16 %v967
        %v2494 = vunpack.c.h.b16 %v967
        %v2495 = vunpack.c.l.b16 %v968
        %v2496 = vunpack.c.h.b16 %v968
        %v2497 = vunpack.c.l.b16 %v969
        %v2498 = vunpack.c.h.b16 %v969
        %v2499 = vunpack.c.l.b16 %v970
        %v2500 = vunpack.c.h.b16 %v970
        %v2501 = vunpack.c.l.b16 %v971
        %v2502 = vunpack.c.h.b16 %v971
        %v2503 = vunpack.c.l.b16 %v972
        %v2504 = vunpack.c.h.b16 %v972
        %v2505 = vunpack.c.l.b16 %v973
        %v2506 = vunpack.c.h.b16 %v973
        %v2507 = vunpack.c.l.b16 %v974
        %v2508 = vunpack.c.h.b16 %v974
        %v2509 = vunpack.c.l.b16 %v975
        %v2510 = vunpack.c.h.b16 %v975
        %v2511 = vunpack.c.l.b16 %v976
        %v2512 = vunpack.c.h.b16 %v976
        %v2513 = vunpack.c.l.b16 %v977
        %v2514 = vunpack.c.h.b16 %v977
        %v2515 = vunpack.c.l.b16 %v978
        %v2516 = vunpack.c.h.b16 %v978
        %v2517 = vunpack.c.l.b16 %v979
        %v2518 = vunpack.c.h.b16 %v979
        %v2519 = vunpack.c.l.b16 %v980
        %v2520 = vunpack.c.h.b16 %v980
        %v2521 = vunpack.c.l.b16 %v981
        %v2522 = vunpack.c.h.b16 %v981
        %v2523 = vunpack.c.l.b16 %v982
        %v2524 = vunpack.c.h.b16 %v982
        %v2525 = vunpack.c.l.b16 %v983
        %v2526 = vunpack.c.h.b16 %v983
        %v2527 = vunpack.c.l.b16 %v984
        %v2528 = vunpack.c.h.b16 %v984
        %v2529 = vunpack.c.l.b16 %v985
        %v2530 = vunpack.c.h.b16 %v985
        %v2531 = vunpack.c.l.b16 %v986
        %v2532 = vunpack.c.h.b16 %v986
        %v2533 = vunpack.c.l.b16 %v987
        %v2534 = vunpack.c.h.b16 %v987
        %v2535 = vunpack.c.l.b16 %v988
        %v2536 = vunpack.c.h.b16 %v988
        %v2537 = vunpack.c.l.b16 %v989
        %v2538 = vunpack.c.h.b16 %v989
        %v2539 = vunpack.c.l.b16 %v990
        %v2540 = vunpack.c.h.b16 %v990
        %v2541 = vunpack.c.l.b16 %v991
        %v2542 = vunpack.c.h.b16 %v991
        %v2543 = vunpack.c.l.b16 %v992
        %v2544 = vunpack.c.h.b16 %v992
        %v2545 = vunpack.c.l.b16 %v993
        %v2546 = vunpack.c.h.b16 %v993
        %v2547 = vunpack.c.l.b16 %v994
        %v2548 = vunpack.c.h.b16 %v994
        %v2549 = vunpack.c.l.b16 %v995
        %v2550 = vunpack.c.h.b16 %v995
        %v2551 = vunpack.c.l.b16 %v996
        %v2552 = vunpack.c.h.b16 %v996
        %v2553 = vunpack.c.l.b16 %v997
        %v2554 = vunpack.c.h.b16 %v997
        %v2555 = vunpack.c.l.b16 %v998
        %v2556 = vunpack.c.h.b16 %v998
        %v2557 = vunpack.c.l.b16 %v999
        %v2558 = vunpack.c.h.b16 %v999
        %v2559 = vunpack.c.l.b16 %v1000
        %v2560 = vunpack.c.h.b16 %v1000
        %v2561 = vunpack.c.l.b16 %v1001
        %v2562 = vunpack.c.h.b16 %v1001
        %v2563 = vunpack.c.l.b16 %v1002
        %v2564 = vunpack.c.h.b16 %v1002
        %v2565 = vunpack.c.l.b16 %v1003
        %v2566 = vunpack.c.h.b16 %v1003
        %v2567 = vunpack.c.l.b16 %v1004
        %v2568 = vunpack.c.h.b16 %v1004
        %v2569 = vunpack.c.l.b16 %v1005
        %v2570 = vunpack.c.h.b16 %v1005
        %v2571 = vunpack.c.l.b16 %v1006
        %v2572 = vunpack.c.h.b16 %v1006
        %v2573 = vunpack.c.l.b16 %v1007
        %v2574 = vunpack.c.h.b16 %v1007
        %v2575 = vunpack.c.l.b16 %v1008
        %v2576 = vunpack.c.h.b16 %v1008
        %v2577 = vunpack.c.l.b16 %v1009
        %v2578 = vunpack.c.h.b16 %v1009
        %v2579 = vunpack.c.l.b16 %v1010
        %v2580 = vunpack.c.h.b16 %v1010
        %v2581 = vunpack.c.l.b16 %v1011
        %v2582 = vunpack.c.h.b16 %v1011
        %v2583 = vunpack.c.l.b16 %v1012
        %v2584 = vunpack.c.h.b16 %v1012
        %v2585 = vunpack.c.l.b16 %v1013
        %v2586 = vunpack.c.h.b16 %v1013
        %v2587 = vunpack.c.l.b16 %v1014
        %v2588 = vunpack.c.h.b16 %v1014
        %v2589 = vunpack.c.l.b16 %v1015
        %v2590 = vunpack.c.h.b16 %v1015
        %v2591 = vunpack.c.l.b16 %v1016
        %v2592 = vunpack.c.h.b16 %v1016
        %v2593 = vunpack.c.l.b16 %v1017
        %v2594 = vunpack.c.h.b16 %v1017
        %v2595 = vunpack.c.l.b16 %v1018
        %v2596 = vunpack.c.h.b16 %v1018
        %v2597 = vpack.c.b16 %v1581, %v1573
        %v2598 = vpack.c.b16 %v1582, %v1574
        %v2599 = vpack.c.b16 %v1583, %v1575
        %v2600 = vpack.c.b16 %v1584, %v1576
        %v2601 = vpack.c.b16 %v1585, %v1577
        %v2602 = vpack.c.b16 %v1586, %v1578
        %v2603 = vpack.c.b16 %v1587, %v1579
        %v2604 = vpack.c.b16 %v1588, %v1580
        %v2605 = vpack.c.b16 %v1597, %v1589
        %v2606 = vpack.c.b16 %v1598, %v1590
        %v2607 = vpack.c.b16 %v1599, %v1591
        %v2608 = vpack.c.b16 %v1600, %v1592
        %v2609 = vpack.c.b16 %v1601, %v1593
        %v2610 = vpack.c.b16 %v1602, %v1594
        %v2611 = vpack.c.b16 %v1603, %v1595
        %v2612 = vpack.c.b16 %v1604, %v1596
        %v2613 = vpack.c.b16 %v1613, %v1605
        %v2614 = vpack.c.b16 %v1614, %v1606
        %v2615 = vpack.c.b16 %v1615, %v1607
        %v2616 = vpack.c.b16 %v1616, %v1608
        %v2617 = vpack.c.b16 %v1617, %v1609
        %v2618 = vpack.c.b16 %v1618, %v1610
        %v2619 = vpack.c.b16 %v1619, %v1611
        %v2620 = vpack.c.b16 %v1620, %v1612
        %v2621 = vpack.c.b16 %v1629, %v1621
        %v2622 = vpack.c.b16 %v1630, %v1622
        %v2623 = vpack.c.b16 %v1631, %v1623
        %v2624 = vpack.c.b16 %v1632, %v1624
        %v2625 = vpack.c.b16 %v1633, %v1625
        %v2626 = vpack.c.b16 %v1634, %v1626
        %v2627 = vpack.c.b16 %v1635, %v1627
        %v2628 = vpack.c.b16 %v1636, %v1628
        %v2629 = vpack.c.b16 %v1645, %v1637
        %v2630 = vpack.c.b16 %v1646, %v1638
        %v2631 = vpack.c.b16 %v1647, %v1639
        %v2632 = vpack.c.b16 %v1648, %v1640
        %v2633 = vpack.c.b16 %v1649, %v1641
        %v2634 = vpack.c.b16 %v1650, %v1642
        %v2635 = vpack.c.b16 %v1651, %v1643
        %v2636 = vpack.c.b16 %v1652, %v1644
        %v2637 = vpack.c.b16 %v1661, %v1653
        %v2638 = vpack.c.b16 %v1662, %v1654
        %v2639 = vpack.c.b16 %v1663, %v1655
        %v2640 = vpack.c.b16 %v1664, %v1656
        %v2641 = vpack.c.b16 %v1665, %v1657
        %v2642 = vpack.c.b16 %v1666, %v1658
        %v2643 = vpack.c.b16 %v1667, %v1659
        %v2644 = vpack.c.b16 %v1668, %v1660
        %v2645 = vpack.c.b16 %v1677, %v1669
        %v2646 = vpack.c.b16 %v1678, %v1670
        %v2647 = vpack.c.b16 %v1679, %v1671
        %v2648 = vpack.c.b16 %v1680, %v1672
        %v2649 = vpack.c.b16 %v1681, %v1673
        %v2650 = vpack.c.b16 %v1682, %v1674
        %v2651 = vpack.c.b16 %v1683, %v1675
        %v2652 = vpack.c.b16 %v1684, %v1676
        %v2653 = vpack.c.b16 %v1693, %v1685
        %v2654 = vpack.c.b16 %v1694, %v1686
        %v2655 = vpack.c.b16 %v1695, %v1687
        %v2656 = vpack.c.b16 %v1696, %v1688
        %v2657 = vpack.c.b16 %v1697, %v1689
        %v2658 = vpack.c.b16 %v1698, %v1690
        %v2659 = vpack.c.b16 %v1699, %v1691
        %v2660 = vpack.c.b16 %v1700, %v1692
        %v2661 = vpack.c.b16 %v1709, %v1701
        %v2662 = vpack.c.b16 %v1710, %v1702
        %v2663 = vpack.c.b16 %v1711, %v1703
        %v2664 = vpack.c.b16 %v1712, %v1704
        %v2665 = vpack.c.b16 %v1713, %v1705
        %v2666 = vpack.c.b16 %v1714, %v1706
        %v2667 = vpack.c.b16 %v1715, %v1707
        %v2668 = vpack.c.b16 %v1716, %v1708
        %v2669 = vpack.c.b16 %v1725, %v1717
        %v2670 = vpack.c.b16 %v1726, %v1718
        %v2671 = vpack.c.b16 %v1727, %v1719
        %v2672 = vpack.c.b16 %v1728, %v1720
        %v2673 = vpack.c.b16 %v1729, %v1721
        %v2674 = vpack.c.b16 %v1730, %v1722
        %v2675 = vpack.c.b16 %v1731, %v1723
        %v2676 = vpack.c.b16 %v1732, %v1724
        %v2677 = vpack.c.b16 %v1741, %v1733
        %v2678 = vpack.c.b16 %v1742, %v1734
        %v2679 = vpack.c.b16 %v1743, %v1735
        %v2680 = vpack.c.b16 %v1744, %v1736
        %v2681 = vpack.c.b16 %v1745, %v1737
        %v2682 = vpack.c.b16 %v1746, %v1738
        %v2683 = vpack.c.b16 %v1747, %v1739
        %v2684 = vpack.c.b16 %v1748, %v1740
        %v2685 = vpack.c.b16 %v1757, %v1749
        %v2686 = vpack.c.b16 %v1758, %v1750
        %v2687 = vpack.c.b16 %v1759, %v1751
        %v2688 = vpack.c.b16 %v1760, %v1752
        %v2689 = vpack.c.b16 %v1761, %v1753
        %v2690 = vpack.c.b16 %v1762, %v1754
        %v2691 = vpack.c.b16 %v1763, %v1755
        %v2692 = vpack.c.b16 %v1764, %v1756
        %v2693 = vpack.c.b16 %v1773, %v1765
        %v2694 = vpack.c.b16 %v1774, %v1766
        %v2695 = vpack.c.b16 %v1775, %v1767
        %v2696 = vpack.c.b16 %v1776, %v1768
        %v2697 = vpack.c.b16 %v1777, %v1769
        %v2698 = vpack.c.b16 %v1778, %v1770
        %v2699 = vpack.c.b16 %v1779, %v1771
        %v2700 = vpack.c.b16 %v1780, %v1772
        %v2701 = vpack.c.b16 %v1789, %v1781
        %v2702 = vpack.c.b16 %v1790, %v1782
        %v2703 = vpack.c.b16 %v1791, %v1783
        %v2704 = vpack.c.b16 %v1792, %v1784
        %v2705 = vpack.c.b16 %v1793, %v1785
        %v2706 = vpack.c.b16 %v1794, %v1786
        %v2707 = vpack.c.b16 %v1795, %v1787
        %v2708 = vpack.c.b16 %v1796, %v1788
        %v2709 = vpack.c.b16 %v1805, %v1797
        %v2710 = vpack.c.b16 %v1806, %v1798
        %v2711 = vpack.c.b16 %v1807, %v1799
        %v2712 = vpack.c.b16 %v1808, %v1800
        %v2713 = vpack.c.b16 %v1809, %v1801
        %v2714 = vpack.c.b16 %v1810, %v1802
        %v2715 = vpack.c.b16 %v1811, %v1803
        %v2716 = vpack.c.b16 %v1812, %v1804
        %v2717 = vpack.c.b16 %v1821, %v1813
        %v2718 = vpack.c.b16 %v1822, %v1814
        %v2719 = vpack.c.b16 %v1823, %v1815
        %v2720 = vpack.c.b16 %v1824, %v1816
        %v2721 = vpack.c.b16 %v1825, %v1817
        %v2722 = vpack.c.b16 %v1826, %v1818
        %v2723 = vpack.c.b16 %v1827, %v1819
        %v2724 = vpack.c.b16 %v1828, %v1820
        %v2725 = vpack.c.b16 %v1837, %v1829
        %v2726 = vpack.c.b16 %v1838, %v1830
        %v2727 = vpack.c.b16 %v1839, %v1831
        %v2728 = vpack.c.b16 %v1840, %v1832
        %v2729 = vpack.c.b16 %v1841, %v1833
        %v2730 = vpack.c.b16 %v1842, %v1834
        %v2731 = vpack.c.b16 %v1843, %v1835
        %v2732 = vpack.c.b16 %v1844, %v1836
        %v2733 = vpack.c.b16 %v1853, %v1845
        %v2734 = vpack.c.b16 %v1854, %v1846
        %v2735 = vpack.c.b16 %v1855, %v1847
        %v2736 = vpack.c.b16 %v1856, %v1848
        %v2737 = vpack.c.b16 %v1857, %v1849
        %v2738 = vpack.c.b16 %v1858, %v1850
        %v2739 = vpack.c.b16 %v1859, %v1851
        %v2740 = vpack.c.b16 %v1860, %v1852
        %v2741 = vpack.c.b16 %v1869, %v1861
        %v2742 = vpack.c.b16 %v1870, %v1862
        %v2743 = vpack.c.b16 %v1871, %v1863
        %v2744 = vpack.c.b16 %v1872, %v1864
        %v2745 = vpack.c.b16 %v1873, %v1865
        %v2746 = vpack.c.b16 %v1874, %v1866
        %v2747 = vpack.c.b16 %v1875, %v1867
        %v2748 = vpack.c.b16 %v1876, %v1868
        %v2749 = vpack.c.b16 %v1885, %v1877
        %v2750 = vpack.c.b16 %v1886, %v1878
        %v2751 = vpack.c.b16 %v1887, %v1879
        %v2752 = vpack.c.b16 %v1888, %v1880
        %v2753 = vpack.c.b16 %v1889, %v1881
        %v2754 = vpack.c.b16 %v1890, %v1882
        %v2755 = vpack.c.b16 %v1891, %v1883
        %v2756 = vpack.c.b16 %v1892, %v1884
        %v2757 = vpack.c.b16 %v1901, %v1893
        %v2758 = vpack.c.b16 %v1902, %v1894
        %v2759 = vpack.c.b16 %v1903, %v1895
        %v2760 = vpack.c.b16 %v1904, %v1896
        %v2761 = vpack.c.b16 %v1905, %v1897
        %v2762 = vpack.c.b16 %v1906, %v1898
        %v2763 = vpack.c.b16 %v1907, %v1899
        %v2764 = vpack.c.b16 %v1908, %v1900
        %v2765 = vpack.c.b16 %v1917, %v1909
        %v2766 = vpack.c.b16 %v1918, %v1910
        %v2767 = vpack.c.b16 %v1919, %v1911
        %v2768 = vpack.c.b16 %v1920, %v1912
        %v2769 = vpack.c.b16 %v1921, %v1913
        %v2770 = vpack.c.b16 %v1922, %v1914
        %v2771 = vpack.c.b16 %v1923, %v1915
        %v2772 = vpack.c.b16 %v1924, %v1916
        %v2773 = vpack.c.b16 %v1933, %v1925
        %v2774 = vpack.c.b16 %v1934, %v1926
        %v2775 = vpack.c.b16 %v1935, %v1927
        %v2776 = vpack.c.b16 %v1936, %v1928
        %v2777 = vpack.c.b16 %v1937, %v1929
        %v2778 = vpack.c.b16 %v1938, %v1930
        %v2779 = vpack.c.b16 %v1939, %v1931
        %v2780 = vpack.c.b16 %v1940, %v1932
        %v2781 = vpack.c.b16 %v1949, %v1941
        %v2782 = vpack.c.b16 %v1950, %v1942
        %v2783 = vpack.c.b16 %v1951, %v1943
        %v2784 = vpack.c.b16 %v1952, %v1944
        %v2785 = vpack.c.b16 %v1953, %v1945
        %v2786 = vpack.c.b16 %v1954, %v1946
        %v2787 = vpack.c.b16 %v1955, %v1947
        %v2788 = vpack.c.b16 %v1956, %v1948
        %v2789 = vpack.c.b16 %v1965, %v1957
        %v2790 = vpack.c.b16 %v1966, %v1958
        %v2791 = vpack.c.b16 %v1967, %v1959
        %v2792 = vpack.c.b16 %v1968, %v1960
        %v2793 = vpack.c.b16 %v1969, %v1961
        %v2794 = vpack.c.b16 %v1970, %v1962
        %v2795 = vpack.c.b16 %v1971, %v1963
        %v2796 = vpack.c.b16 %v1972, %v1964
        %v2797 = vpack.c.b16 %v1981, %v1973
        %v2798 = vpack.c.b16 %v1982, %v1974
        %v2799 = vpack.c.b16 %v1983, %v1975
        %v2800 = vpack.c.b16 %v1984, %v1976
        %v2801 = vpack.c.b16 %v1985, %v1977
        %v2802 = vpack.c.b16 %v1986, %v1978
        %v2803 = vpack.c.b16 %v1987, %v1979
        %v2804 = vpack.c.b16 %v1988, %v1980
        %v2805 = vpack.c.b16 %v1997, %v1989
        %v2806 = vpack.c.b16 %v1998, %v1990
        %v2807 = vpack.c.b16 %v1999, %v1991
        %v2808 = vpack.c.b16 %v2000, %v1992
        %v2809 = vpack.c.b16 %v2001, %v1993
        %v2810 = vpack.c.b16 %v2002, %v1994
        %v2811 = vpack.c.b16 %v2003, %v1995
        %v2812 = vpack.c.b16 %v2004, %v1996
        %v2813 = vpack.c.b16 %v2013, %v2005
        %v2814 = vpack.c.b16 %v2014, %v2006
        %v2815 = vpack.c.b16 %v2015, %v2007
        %v2816 = vpack.c.b16 %v2016, %v2008
        %v2817 = vpack.c.b16 %v2017, %v2009
        %v2818 = vpack.c.b16 %v2018, %v2010
        %v2819 = vpack.c.b16 %v2019, %v2011
        %v2820 = vpack.c.b16 %v2020, %v2012
        %v2821 = vpack.c.b16 %v2029, %v2021
        %v2822 = vpack.c.b16 %v2030, %v2022
        %v2823 = vpack.c.b16 %v2031, %v2023
        %v2824 = vpack.c.b16 %v2032, %v2024
        %v2825 = vpack.c.b16 %v2033, %v2025
        %v2826 = vpack.c.b16 %v2034, %v2026
        %v2827 = vpack.c.b16 %v2035, %v2027
        %v2828 = vpack.c.b16 %v2036, %v2028
        %v2829 = vpack.c.b16 %v2045, %v2037
        %v2830 = vpack.c.b16 %v2046, %v2038
        %v2831 = vpack.c.b16 %v2047, %v2039
        %v2832 = vpack.c.b16 %v2048, %v2040
        %v2833 = vpack.c.b16 %v2049, %v2041
        %v2834 = vpack.c.b16 %v2050, %v2042
        %v2835 = vpack.c.b16 %v2051, %v2043
        %v2836 = vpack.c.b16 %v2052, %v2044
        %v2837 = vpack.c.b16 %v2061, %v2053
        %v2838 = vpack.c.b16 %v2062, %v2054
        %v2839 = vpack.c.b16 %v2063, %v2055
        %v2840 = vpack.c.b16 %v2064, %v2056
        %v2841 = vpack.c.b16 %v2065, %v2057
        %v2842 = vpack.c.b16 %v2066, %v2058
        %v2843 = vpack.c.b16 %v2067, %v2059
        %v2844 = vpack.c.b16 %v2068, %v2060
        %v2845 = vpack.c.b16 %v2077, %v2069
        %v2846 = vpack.c.b16 %v2078, %v2070
        %v2847 = vpack.c.b16 %v2079, %v2071
        %v2848 = vpack.c.b16 %v2080, %v2072
        %v2849 = vpack.c.b16 %v2081, %v2073
        %v2850 = vpack.c.b16 %v2082, %v2074
        %v2851 = vpack.c.b16 %v2083, %v2075
        %v2852 = vpack.c.b16 %v2084, %v2076
        %v2853 = vpack.c.b16 %v2093, %v2085
        %v2854 = vpack.c.b16 %v2094, %v2086
        %v2855 = vpack.c.b16 %v2095, %v2087
        %v2856 = vpack.c.b16 %v2096, %v2088
        %v2857 = vpack.c.b16 %v2097, %v2089
        %v2858 = vpack.c.b16 %v2098, %v2090
        %v2859 = vpack.c.b16 %v2099, %v2091
        %v2860 = vpack.c.b16 %v2100, %v2092
        %v2861 = vpack.c.b16 %v2109, %v2101
        %v2862 = vpack.c.b16 %v2110, %v2102
        %v2863 = vpack.c.b16 %v2111, %v2103
        %v2864 = vpack.c.b16 %v2112, %v2104
        %v2865 = vpack.c.b16 %v2113, %v2105
        %v2866 = vpack.c.b16 %v2114, %v2106
        %v2867 = vpack.c.b16 %v2115, %v2107
        %v2868 = vpack.c.b16 %v2116, %v2108
        %v2869 = vpack.c.b16 %v2125, %v2117
        %v2870 = vpack.c.b16 %v2126, %v2118
        %v2871 = vpack.c.b16 %v2127, %v2119
        %v2872 = vpack.c.b16 %v2128, %v2120
        %v2873 = vpack.c.b16 %v2129, %v2121
        %v2874 = vpack.c.b16 %v2130, %v2122
        %v2875 = vpack.c.b16 %v2131, %v2123
        %v2876 = vpack.c.b16 %v2132, %v2124
        %v2877 = vpack.c.b16 %v2141, %v2133
        %v2878 = vpack.c.b16 %v2142, %v2134
        %v2879 = vpack.c.b16 %v2143, %v2135
        %v2880 = vpack.c.b16 %v2144, %v2136
        %v2881 = vpack.c.b16 %v2145, %v2137
        %v2882 = vpack.c.b16 %v2146, %v2138
        %v2883 = vpack.c.b16 %v2147, %v2139
        %v2884 = vpack.c.b16 %v2148, %v2140
        %v2885 = vpack.c.b16 %v2157, %v2149
        %v2886 = vpack.c.b16 %v2158, %v2150
        %v2887 = vpack.c.b16 %v2159, %v2151
        %v2888 = vpack.c.b16 %v2160, %v2152
        %v2889 = vpack.c.b16 %v2161, %v2153
        %v2890 = vpack.c.b16 %v2162, %v2154
        %v2891 = vpack.c.b16 %v2163, %v2155
        %v2892 = vpack.c.b16 %v2164, %v2156
        %v2893 = vpack.c.b16 %v2173, %v2165
        %v2894 = vpack.c.b16 %v2174, %v2166
        %v2895 = vpack.c.b16 %v2175, %v2167
        %v2896 = vpack.c.b16 %v2176, %v2168
        %v2897 = vpack.c.b16 %v2177, %v2169
        %v2898 = vpack.c.b16 %v2178, %v2170
        %v2899 = vpack.c.b16 %v2179, %v2171
        %v2900 = vpack.c.b16 %v2180, %v2172
        %v2901 = vpack.c.b16 %v2189, %v2181
        %v2902 = vpack.c.b16 %v2190, %v2182
        %v2903 = vpack.c.b16 %v2191, %v2183
        %v2904 = vpack.c.b16 %v2192, %v2184
        %v2905 = vpack.c.b16 %v2193, %v2185
        %v2906 = vpack.c.b16 %v2194, %v2186
        %v2907 = vpack.c.b16 %v2195, %v2187
        %v2908 = vpack.c.b16 %v2196, %v2188
        %v2909 = vpack.c.b16 %v2205, %v2197
        %v2910 = vpack.c.b16 %v2206, %v2198
        %v2911 = vpack.c.b16 %v2207, %v2199
        %v2912 = vpack.c.b16 %v2208, %v2200
        %v2913 = vpack.c.b16 %v2209, %v2201
        %v2914 = vpack.c.b16 %v2210, %v2202
        %v2915 = vpack.c.b16 %v2211, %v2203
        %v2916 = vpack.c.b16 %v2212, %v2204
        %v2917 = vpack.c.b16 %v2221, %v2213
        %v2918 = vpack.c.b16 %v2222, %v2214
        %v2919 = vpack.c.b16 %v2223, %v2215
        %v2920 = vpack.c.b16 %v2224, %v2216
        %v2921 = vpack.c.b16 %v2225, %v2217
        %v2922 = vpack.c.b16 %v2226, %v2218
        %v2923 = vpack.c.b16 %v2227, %v2219
        %v2924 = vpack.c.b16 %v2228, %v2220
        %v2925 = vpack.c.b16 %v2237, %v2229
        %v2926 = vpack.c.b16 %v2238, %v2230
        %v2927 = vpack.c.b16 %v2239, %v2231
        %v2928 = vpack.c.b16 %v2240, %v2232
        %v2929 = vpack.c.b16 %v2241, %v2233
        %v2930 = vpack.c.b16 %v2242, %v2234
        %v2931 = vpack.c.b16 %v2243, %v2235
        %v2932 = vpack.c.b16 %v2244, %v2236
        %v2933 = vpack.c.b16 %v2253, %v2245
        %v2934 = vpack.c.b16 %v2254, %v2246
        %v2935 = vpack.c.b16 %v2255, %v2247
        %v2936 = vpack.c.b16 %v2256, %v2248
        %v2937 = vpack.c.b16 %v2257, %v2249
        %v2938 = vpack.c.b16 %v2258, %v2250
        %v2939 = vpack.c.b16 %v2259, %v2251
        %v2940 = vpack.c.b16 %v2260, %v2252
        %v2941 = vpack.c.b16 %v2269, %v2261
        %v2942 = vpack.c.b16 %v2270, %v2262
        %v2943 = vpack.c.b16 %v2271, %v2263
        %v2944 = vpack.c.b16 %v2272, %v2264
        %v2945 = vpack.c.b16 %v2273, %v2265
        %v2946 = vpack.c.b16 %v2274, %v2266
        %v2947 = vpack.c.b16 %v2275, %v2267
        %v2948 = vpack.c.b16 %v2276, %v2268
        %v2949 = vpack.c.b16 %v2285, %v2277
        %v2950 = vpack.c.b16 %v2286, %v2278
        %v2951 = vpack.c.b16 %v2287, %v2279
        %v2952 = vpack.c.b16 %v2288, %v2280
        %v2953 = vpack.c.b16 %v2289, %v2281
        %v2954 = vpack.c.b16 %v2290, %v2282
        %v2955 = vpack.c.b16 %v2291, %v2283
        %v2956 = vpack.c.b16 %v2292, %v2284
        %v2957 = vpack.c.b16 %v2301, %v2293
        %v2958 = vpack.c.b16 %v2302, %v2294
        %v2959 = vpack.c.b16 %v2303, %v2295
        %v2960 = vpack.c.b16 %v2304, %v2296
        %v2961 = vpack.c.b16 %v2305, %v2297
        %v2962 = vpack.c.b16 %v2306, %v2298
        %v2963 = vpack.c.b16 %v2307, %v2299
        %v2964 = vpack.c.b16 %v2308, %v2300
        %v2965 = vpack.c.b16 %v2317, %v2309
        %v2966 = vpack.c.b16 %v2318, %v2310
        %v2967 = vpack.c.b16 %v2319, %v2311
        %v2968 = vpack.c.b16 %v2320, %v2312
        %v2969 = vpack.c.b16 %v2321, %v2313
        %v2970 = vpack.c.b16 %v2322, %v2314
        %v2971 = vpack.c.b16 %v2323, %v2315
        %v2972 = vpack.c.b16 %v2324, %v2316
        %v2973 = vpack.c.b16 %v2333, %v2325
        %v2974 = vpack.c.b16 %v2334, %v2326
        %v2975 = vpack.c.b16 %v2335, %v2327
        %v2976 = vpack.c.b16 %v2336, %v2328
        %v2977 = vpack.c.b16 %v2337, %v2329
        %v2978 = vpack.c.b16 %v2338, %v2330
        %v2979 = vpack.c.b16 %v2339, %v2331
        %v2980 = vpack.c.b16 %v2340, %v2332
        %v2981 = vpack.c.b16 %v2349, %v2341
        %v2982 = vpack.c.b16 %v2350, %v2342
        %v2983 = vpack.c.b16 %v2351, %v2343
        %v2984 = vpack.c.b16 %v2352, %v2344
        %v2985 = vpack.c.b16 %v2353, %v2345
        %v2986 = vpack.c.b16 %v2354, %v2346
        %v2987 = vpack.c.b16 %v2355, %v2347
        %v2988 = vpack.c.b16 %v2356, %v2348
        %v2989 = vpack.c.b16 %v2365, %v2357
        %v2990 = vpack.c.b16 %v2366, %v2358
        %v2991 = vpack.c.b16 %v2367, %v2359
        %v2992 = vpack.c.b16 %v2368, %v2360
        %v2993 = vpack.c.b16 %v2369, %v2361
        %v2994 = vpack.c.b16 %v2370, %v2362
        %v2995 = vpack.c.b16 %v2371, %v2363
        %v2996 = vpack.c.b16 %v2372, %v2364
        %v2997 = vpack.c.b16 %v2381, %v2373
        %v2998 = vpack.c.b16 %v2382, %v2374
        %v2999 = vpack.c.b16 %v2383, %v2375
        %v3000 = vpack.c.b16 %v2384, %v2376
        %v3001 = vpack.c.b16 %v2385, %v2377
        %v3002 = vpack.c.b16 %v2386, %v2378
        %v3003 = vpack.c.b16 %v2387, %v2379
        %v3004 = vpack.c.b16 %v2388, %v2380
        %v3005 = vpack.c.b16 %v2397, %v2389
        %v3006 = vpack.c.b16 %v2398, %v2390
        %v3007 = vpack.c.b16 %v2399, %v2391
        %v3008 = vpack.c.b16 %v2400, %v2392
        %v3009 = vpack.c.b16 %v2401, %v2393
        %v3010 = vpack.c.b16 %v2402, %v2394
        %v3011 = vpack.c.b16 %v2403, %v2395
        %v3012 = vpack.c.b16 %v2404, %v2396
        %v3013 = vpack.c.b16 %v2413, %v2405
        %v3014 = vpack.c.b16 %v2414, %v2406
        %v3015 = vpack.c.b16 %v2415, %v2407
        %v3016 = vpack.c.b16 %v2416, %v2408
        %v3017 = vpack.c.b16 %v2417, %v2409
        %v3018 = vpack.c.b16 %v2418, %v2410
        %v3019 = vpack.c.b16 %v2419, %v2411
        %v3020 = vpack.c.b16 %v2420, %v2412
        %v3021 = vpack.c.b16 %v2429, %v2421
        %v3022 = vpack.c.b16 %v2430, %v2422
        %v3023 = vpack.c.b16 %v2431, %v2423
        %v3024 = vpack.c.b16 %v2432, %v2424
        %v3025 = vpack.c.b16 %v2433, %v2425
        %v3026 = vpack.c.b16 %v2434, %v2426
        %v3027 = vpack.c.b16 %v2435, %v2427
        %v3028 = vpack.c.b16 %v2436, %v2428
        %v3029 = vpack.c.b16 %v2445, %v2437
        %v3030 = vpack.c.b16 %v2446, %v2438
        %v3031 = vpack.c.b16 %v2447, %v2439
        %v3032 = vpack.c.b16 %v2448, %v2440
        %v3033 = vpack.c.b16 %v2449, %v2441
        %v3034 = vpack.c.b16 %v2450, %v2442
        %v3035 = vpack.c.b16 %v2451, %v2443
        %v3036 = vpack.c.b16 %v2452, %v2444
        %v3037 = vpack.c.b16 %v2461, %v2453
        %v3038 = vpack.c.b16 %v2462, %v2454
        %v3039 = vpack.c.b16 %v2463, %v2455
        %v3040 = vpack.c.b16 %v2464, %v2456
        %v3041 = vpack.c.b16 %v2465, %v2457
        %v3042 = vpack.c.b16 %v2466, %v2458
        %v3043 = vpack.c.b16 %v2467, %v2459
        %v3044 = vpack.c.b16 %v2468, %v2460
        %v3045 = vpack.c.b16 %v2477, %v2469
        %v3046 = vpack.c.b16 %v2478, %v2470
        %v3047 = vpack.c.b16 %v2479, %v2471
        %v3048 = vpack.c.b16 %v2480, %v2472
        %v3049 = vpack.c.b16 %v2481, %v2473
        %v3050 = vpack.c.b16 %v2482, %v2474
        %v3051 = vpack.c.b16 %v2483, %v2475
        %v3052 = vpack.c.b16 %v2484, %v2476
        %v3053 = vpack.c.b16 %v2493, %v2485
        %v3054 = vpack.c.b16 %v2494, %v2486
        %v3055 = vpack.c.b16 %v2495, %v2487
        %v3056 = vpack.c.b16 %v2496, %v2488
        %v3057 = vpack.c.b16 %v2497, %v2489
        %v3058 = vpack.c.b16 %v2498, %v2490
        %v3059 = vpack.c.b16 %v2499, %v2491
        %v3060 = vpack.c.b16 %v2500, %v2492
        %v3061 = vpack.c.b16 %v2509, %v2501
        %v3062 = vpack.c.b16 %v2510, %v2502
        %v3063 = vpack.c.b16 %v2511, %v2503
        %v3064 = vpack.c.b16 %v2512, %v2504
        %v3065 = vpack.c.b16 %v2513, %v2505
        %v3066 = vpack.c.b16 %v2514, %v2506
        %v3067 = vpack.c.b16 %v2515, %v2507
        %v3068 = vpack.c.b16 %v2516, %v2508
        %v3069 = vpack.c.b16 %v2525, %v2517
        %v3070 = vpack.c.b16 %v2526, %v2518
        %v3071 = vpack.c.b16 %v2527, %v2519
        %v3072 = vpack.c.b16 %v2528, %v2520
        %v3073 = vpack.c.b16 %v2529, %v2521
        %v3074 = vpack.c.b16 %v2530, %v2522
        %v3075 = vpack.c.b16 %v2531, %v2523
        %v3076 = vpack.c.b16 %v2532, %v2524
        %v3077 = vpack.c.b16 %v2541, %v2533
        %v3078 = vpack.c.b16 %v2542, %v2534
        %v3079 = vpack.c.b16 %v2543, %v2535
        %v3080 = vpack.c.b16 %v2544, %v2536
        %v3081 = vpack.c.b16 %v2545, %v2537
        %v3082 = vpack.c.b16 %v2546, %v2538
        %v3083 = vpack.c.b16 %v2547, %v2539
        %v3084 = vpack.c.b16 %v2548, %v2540
        %v3085 = vpack.c.b16 %v2557, %v2549
        %v3086 = vpack.c.b16 %v2558, %v2550
        %v3087 = vpack.c.b16 %v2559, %v2551
        %v3088 = vpack.c.b16 %v2560, %v2552
        %v3089 = vpack.c.b16 %v2561, %v2553
        %v3090 = vpack.c.b16 %v2562, %v2554
        %v3091 = vpack.c.b16 %v2563, %v2555
        %v3092 = vpack.c.b16 %v2564, %v2556
        %v3093 = vpack.c.b16 %v2573, %v2565
        %v3094 = vpack.c.b16 %v2574, %v2566
        %v3095 = vpack.c.b16 %v2575, %v2567
        %v3096 = vpack.c.b16 %v2576, %v2568
        %v3097 = vpack.c.b16 %v2577, %v2569
        %v3098 = vpack.c.b16 %v2578, %v2570
        %v3099 = vpack.c.b16 %v2579, %v2571
        %v3100 = vpack.c.b16 %v2580, %v2572
        %v3101 = vpack.c.b16 %v2589, %v2581
        %v3102 = vpack.c.b16 %v2590, %v2582
        %v3103 = vpack.c.b16 %v2591, %v2583
        %v3104 = vpack.c.b16 %v2592, %v2584
        %v3105 = vpack.c.b16 %v2593, %v2585
        %v3106 = vpack.c.b16 %v2594, %v2586
        %v3107 = vpack.c.b16 %v2595, %v2587
        %v3108 = vpack.c.b16 %v2596, %v2588
        %3621 = vmatprep.subr.bf16.mxu0 %v2654
        %3622 = vmatpush1.bf16.msra.mxu0 %v2653
        %3623 = vmatprep.subr.bf16.mxu0 %v2646
        %3624 = vmatpush1.bf16.msra.mxu0 %v2645
        %3625 = vmatprep.subr.bf16.mxu0 %v2638
        %3626 = vmatpush1.bf16.msra.mxu0 %v2637
        %3627 = vmatprep.subr.bf16.mxu0 %v2630
        %3628 = vmatpush1.bf16.msra.mxu0 %v2629
        %3629 = vmatprep.subr.bf16.mxu0 %v2622
        %3630 = vmatpush1.bf16.msra.mxu0 %v2621
        %3631 = vmatprep.subr.bf16.mxu0 %v2614
        %3632 = vmatpush1.bf16.msra.mxu0 %v2613
        %3633 = vmatprep.subr.bf16.mxu0 %v2606
        %3634 = vmatpush1.bf16.msra.mxu0 %v2605
        %3635 = vmatprep.subr.bf16.mxu0 %v2598
        %3636 = vmatpush1.bf16.msra.mxu0 %v2597
        %3637 = vmatprep.subr.bf16.mxu0 %v2718
        %3638 = vmatpush2.bf16.msra.mxu0 %v2717
        %3639 = vmatprep.subr.bf16.mxu0 %v2710
        %3640 = vmatpush2.bf16.msra.mxu0 %v2709
        %3641 = vmatprep.subr.bf16.mxu0 %v2702
        %3642 = vmatpush2.bf16.msra.mxu0 %v2701
        %3643 = vmatprep.subr.bf16.mxu0 %v2694
        %3644 = vmatpush2.bf16.msra.mxu0 %v2693
        %3645 = vmatprep.subr.bf16.mxu0 %v2686
        %3646 = vmatpush2.bf16.msra.mxu0 %v2685
        %3647 = vmatprep.subr.bf16.mxu0 %v2678
        %3648 = vmatpush2.bf16.msra.mxu0 %v2677
        %3649 = vmatprep.subr.bf16.mxu0 %v2670
        %3650 = vmatpush2.bf16.msra.mxu0 %v2669
        %3651 = vmatprep.subr.bf16.mxu0 %v2662
        %3652 = vmatpush2.bf16.msra.mxu0 %v2661
        %3653 = vmatprep.mubr.bf16.mxu0 %v500
        %3654 = vmatmul.mubr.bf16.gmra.mxu0 %v499
        %v3655 = vpop.f32.mrf.mxu0
        %v3656 = vadd.f32 %v1024, %v3655
        %v3657 = vpop.f32.mrf.mxu0
        %v3658 = vadd.f32 %v1028, %v3657
        %v3659 = vpop.f32.mrf.mxu0
        %v3660 = vpop.f32.mrf.mxu0
        %3661 = vdwg.mxu0
        %3662 = vmatprep.subr.bf16.mxu0 %v2782
        %3663 = vmatpush1.bf16.msra.mxu0 %v2781
        %3664 = vmatprep.subr.bf16.mxu0 %v2774
        %3665 = vmatpush1.bf16.msra.mxu0 %v2773
        %3666 = vmatprep.subr.bf16.mxu0 %v2766
        %3667 = vmatpush1.bf16.msra.mxu0 %v2765
        %3668 = vmatprep.subr.bf16.mxu0 %v2758
        %3669 = vmatpush1.bf16.msra.mxu0 %v2757
        %3670 = vmatprep.subr.bf16.mxu0 %v2750
        %3671 = vmatpush1.bf16.msra.mxu0 %v2749
        %3672 = vmatprep.subr.bf16.mxu0 %v2742
        %3673 = vmatpush1.bf16.msra.mxu0 %v2741
        %3674 = vmatprep.subr.bf16.mxu0 %v2734
        %3675 = vmatpush1.bf16.msra.mxu0 %v2733
        %3676 = vmatprep.subr.bf16.mxu0 %v2726
        %3677 = vmatpush1.bf16.msra.mxu0 %v2725
        %3678 = vmatprep.subr.bf16.mxu0 %v2846
        %3679 = vmatpush2.bf16.msra.mxu0 %v2845
        %3680 = vmatprep.subr.bf16.mxu0 %v2838
        %3681 = vmatpush2.bf16.msra.mxu0 %v2837
        %3682 = vmatprep.subr.bf16.mxu0 %v2830
        %3683 = vmatpush2.bf16.msra.mxu0 %v2829
        %3684 = vmatprep.subr.bf16.mxu0 %v2822
        %3685 = vmatpush2.bf16.msra.mxu0 %v2821
        %3686 = vmatprep.subr.bf16.mxu0 %v2814
        %3687 = vmatpush2.bf16.msra.mxu0 %v2813
        %3688 = vmatprep.subr.bf16.mxu0 %v2806
        %3689 = vmatpush2.bf16.msra.mxu0 %v2805
        %3690 = vmatprep.subr.bf16.mxu0 %v2798
        %3691 = vmatpush2.bf16.msra.mxu0 %v2797
        %3692 = vmatprep.subr.bf16.mxu0 %v2790
        %3693 = vmatpush2.bf16.msra.mxu0 %v2789
        %3694 = vmatprep.mubr.bf16.mxu0 %v502
        %3695 = vmatmul.mubr.bf16.gmra.mxu0 %v501
        %v3696 = vpop.f32.mrf.mxu0
        %v3697 = vadd.f32 %v3656, %v3696
        %v3698 = vpop.f32.mrf.mxu0
        %v3699 = vadd.f32 %v3658, %v3698
        %v3700 = vpop.f32.mrf.mxu0
        %v3701 = vpop.f32.mrf.mxu0
        %3702 = vdwg.mxu0
        %3703 = vmatprep.subr.bf16.mxu0 %v2910
        %3704 = vmatpush1.bf16.msra.mxu0 %v2909
        %3705 = vmatprep.subr.bf16.mxu0 %v2902
        %3706 = vmatpush1.bf16.msra.mxu0 %v2901
        %3707 = vmatprep.subr.bf16.mxu0 %v2894
        %3708 = vmatpush1.bf16.msra.mxu0 %v2893
        %3709 = vmatprep.subr.bf16.mxu0 %v2886
        %3710 = vmatpush1.bf16.msra.mxu0 %v2885
        %3711 = vmatprep.subr.bf16.mxu0 %v2878
        %3712 = vmatpush1.bf16.msra.mxu0 %v2877
        %3713 = vmatprep.subr.bf16.mxu0 %v2870
        %3714 = vmatpush1.bf16.msra.mxu0 %v2869
        %3715 = vmatprep.subr.bf16.mxu0 %v2862
        %3716 = vmatpush1.bf16.msra.mxu0 %v2861
        %3717 = vmatprep.subr.bf16.mxu0 %v2854
        %3718 = vmatpush1.bf16.msra.mxu0 %v2853
        %3719 = vmatprep.subr.bf16.mxu0 %v2974
        %3720 = vmatpush2.bf16.msra.mxu0 %v2973
        %3721 = vmatprep.subr.bf16.mxu0 %v2966
        %3722 = vmatpush2.bf16.msra.mxu0 %v2965
        %3723 = vmatprep.subr.bf16.mxu0 %v2958
        %3724 = vmatpush2.bf16.msra.mxu0 %v2957
        %3725 = vmatprep.subr.bf16.mxu0 %v2950
        %3726 = vmatpush2.bf16.msra.mxu0 %v2949
        %3727 = vmatprep.subr.bf16.mxu0 %v2942
        %3728 = vmatpush2.bf16.msra.mxu0 %v2941
        %3729 = vmatprep.subr.bf16.mxu0 %v2934
        %3730 = vmatpush2.bf16.msra.mxu0 %v2933
        %3731 = vmatprep.subr.bf16.mxu0 %v2926
        %3732 = vmatpush2.bf16.msra.mxu0 %v2925
        %3733 = vmatprep.subr.bf16.mxu0 %v2918
        %3734 = vmatpush2.bf16.msra.mxu0 %v2917
        %3735 = vmatprep.mubr.bf16.mxu0 %v504
        %3736 = vmatmul.mubr.bf16.gmra.mxu0 %v503
        %v3737 = vpop.f32.mrf.mxu0
        %v3738 = vadd.f32 %v3697, %v3737
        %v3739 = vpop.f32.mrf.mxu0
        %v3740 = vadd.f32 %v3699, %v3739
        %v3741 = vpop.f32.mrf.mxu0
        %v3742 = vpop.f32.mrf.mxu0
        %3743 = vdwg.mxu0
        %3744 = vmatprep.subr.bf16.mxu0 %v3038
        %3745 = vmatpush1.bf16.msra.mxu0 %v3037
        %3746 = vmatprep.subr.bf16.mxu0 %v3030
        %3747 = vmatpush1.bf16.msra.mxu0 %v3029
        %3748 = vmatprep.subr.bf16.mxu0 %v3022
        %3749 = vmatpush1.bf16.msra.mxu0 %v3021
        %3750 = vmatprep.subr.bf16.mxu0 %v3014
        %3751 = vmatpush1.bf16.msra.mxu0 %v3013
        %3752 = vmatprep.subr.bf16.mxu0 %v3006
        %3753 = vmatpush1.bf16.msra.mxu0 %v3005
        %3754 = vmatprep.subr.bf16.mxu0 %v2998
        %3755 = vmatpush1.bf16.msra.mxu0 %v2997
        %3756 = vmatprep.subr.bf16.mxu0 %v2990
        %3757 = vmatpush1.bf16.msra.mxu0 %v2989
        %3758 = vmatprep.subr.bf16.mxu0 %v2982
        %3759 = vmatpush1.bf16.msra.mxu0 %v2981
        %3760 = vmatprep.subr.bf16.mxu0 %v3102
        %3761 = vmatpush2.bf16.msra.mxu0 %v3101
        %3762 = vmatprep.subr.bf16.mxu0 %v3094
        %3763 = vmatpush2.bf16.msra.mxu0 %v3093
        %3764 = vmatprep.subr.bf16.mxu0 %v3086
        %3765 = vmatpush2.bf16.msra.mxu0 %v3085
        %3766 = vmatprep.subr.bf16.mxu0 %v3078
        %3767 = vmatpush2.bf16.msra.mxu0 %v3077
        %3768 = vmatprep.subr.bf16.mxu0 %v3070
        %3769 = vmatpush2.bf16.msra.mxu0 %v3069
        %3770 = vmatprep.subr.bf16.mxu0 %v3062
        %3771 = vmatpush2.bf16.msra.mxu0 %v3061
        %3772 = vmatprep.subr.bf16.mxu0 %v3054
        %3773 = vmatpush2.bf16.msra.mxu0 %v3053
        %3774 = vmatprep.subr.bf16.mxu0 %v3046
        %3775 = vmatpush2.bf16.msra.mxu0 %v3045
        %3776 = vmatprep.mubr.bf16.mxu0 %v506
        %3777 = vmatmul.mubr.bf16.gmra.mxu0 %v505
        %v3778 = vpop.f32.mrf.mxu0
        %v3779 = vadd.f32 %v3738, %v3778
        %v3780 = vpop.f32.mrf.mxu0
        %v3781 = vadd.f32 %v3740, %v3780
        %v3782 = vpop.f32.mrf.mxu0
        %v3783 = vpop.f32.mrf.mxu0
        %3784 = vdwg.mxu0
        %3785 = vmatprep.subr.bf16.mxu0 %v2656
        %3786 = vmatpush1.bf16.msra.mxu0 %v2655
        %3787 = vmatprep.subr.bf16.mxu0 %v2648
        %3788 = vmatpush1.bf16.msra.mxu0 %v2647
        %3789 = vmatprep.subr.bf16.mxu0 %v2640
        %3790 = vmatpush1.bf16.msra.mxu0 %v2639
        %3791 = vmatprep.subr.bf16.mxu0 %v2632
        %3792 = vmatpush1.bf16.msra.mxu0 %v2631
        %3793 = vmatprep.subr.bf16.mxu0 %v2624
        %3794 = vmatpush1.bf16.msra.mxu0 %v2623
        %3795 = vmatprep.subr.bf16.mxu0 %v2616
        %3796 = vmatpush1.bf16.msra.mxu0 %v2615
        %3797 = vmatprep.subr.bf16.mxu0 %v2608
        %3798 = vmatpush1.bf16.msra.mxu0 %v2607
        %3799 = vmatprep.subr.bf16.mxu0 %v2600
        %3800 = vmatpush1.bf16.msra.mxu0 %v2599
        %3801 = vmatprep.subr.bf16.mxu0 %v2720
        %3802 = vmatpush2.bf16.msra.mxu0 %v2719
        %3803 = vmatprep.subr.bf16.mxu0 %v2712
        %3804 = vmatpush2.bf16.msra.mxu0 %v2711
        %3805 = vmatprep.subr.bf16.mxu0 %v2704
        %3806 = vmatpush2.bf16.msra.mxu0 %v2703
        %3807 = vmatprep.subr.bf16.mxu0 %v2696
        %3808 = vmatpush2.bf16.msra.mxu0 %v2695
        %3809 = vmatprep.subr.bf16.mxu0 %v2688
        %3810 = vmatpush2.bf16.msra.mxu0 %v2687
        %3811 = vmatprep.subr.bf16.mxu0 %v2680
        %3812 = vmatpush2.bf16.msra.mxu0 %v2679
        %3813 = vmatprep.subr.bf16.mxu0 %v2672
        %3814 = vmatpush2.bf16.msra.mxu0 %v2671
        %3815 = vmatprep.subr.bf16.mxu0 %v2664
        %3816 = vmatpush2.bf16.msra.mxu0 %v2663
        %3817 = vmatprep.mubr.bf16.mxu0 %v500
        %3818 = vmatmul.mubr.bf16.gmra.mxu0 %v499
        %v3819 = vpop.f32.mrf.mxu0
        %v3820 = vadd.f32 %v1032, %v3819
        %v3821 = vpop.f32.mrf.mxu0
        %v3822 = vadd.f32 %v1036, %v3821
        %v3823 = vpop.f32.mrf.mxu0
        %v3824 = vpop.f32.mrf.mxu0
        %3825 = vdwg.mxu0
        %3826 = vmatprep.subr.bf16.mxu0 %v2784
        %3827 = vmatpush1.bf16.msra.mxu0 %v2783
        %3828 = vmatprep.subr.bf16.mxu0 %v2776
        %3829 = vmatpush1.bf16.msra.mxu0 %v2775
        %3830 = vmatprep.subr.bf16.mxu0 %v2768
        %3831 = vmatpush1.bf16.msra.mxu0 %v2767
        %3832 = vmatprep.subr.bf16.mxu0 %v2760
        %3833 = vmatpush1.bf16.msra.mxu0 %v2759
        %3834 = vmatprep.subr.bf16.mxu0 %v2752
        %3835 = vmatpush1.bf16.msra.mxu0 %v2751
        %3836 = vmatprep.subr.bf16.mxu0 %v2744
        %3837 = vmatpush1.bf16.msra.mxu0 %v2743
        %3838 = vmatprep.subr.bf16.mxu0 %v2736
        %3839 = vmatpush1.bf16.msra.mxu0 %v2735
        %3840 = vmatprep.subr.bf16.mxu0 %v2728
        %3841 = vmatpush1.bf16.msra.mxu0 %v2727
        %3842 = vmatprep.subr.bf16.mxu0 %v2848
        %3843 = vmatpush2.bf16.msra.mxu0 %v2847
        %3844 = vmatprep.subr.bf16.mxu0 %v2840
        %3845 = vmatpush2.bf16.msra.mxu0 %v2839
        %3846 = vmatprep.subr.bf16.mxu0 %v2832
        %3847 = vmatpush2.bf16.msra.mxu0 %v2831
        %3848 = vmatprep.subr.bf16.mxu0 %v2824
        %3849 = vmatpush2.bf16.msra.mxu0 %v2823
        %3850 = vmatprep.subr.bf16.mxu0 %v2816
        %3851 = vmatpush2.bf16.msra.mxu0 %v2815
        %3852 = vmatprep.subr.bf16.mxu0 %v2808
        %3853 = vmatpush2.bf16.msra.mxu0 %v2807
        %3854 = vmatprep.subr.bf16.mxu0 %v2800
        %3855 = vmatpush2.bf16.msra.mxu0 %v2799
        %3856 = vmatprep.subr.bf16.mxu0 %v2792
        %3857 = vmatpush2.bf16.msra.mxu0 %v2791
        %3858 = vmatprep.mubr.bf16.mxu0 %v502
        %3859 = vmatmul.mubr.bf16.gmra.mxu0 %v501
        %v3860 = vpop.f32.mrf.mxu0
        %v3861 = vadd.f32 %v3820, %v3860
        %v3862 = vpop.f32.mrf.mxu0
        %v3863 = vadd.f32 %v3822, %v3862
        %v3864 = vpop.f32.mrf.mxu0
        %v3865 = vpop.f32.mrf.mxu0
        %3866 = vdwg.mxu0
        %3867 = vmatprep.subr.bf16.mxu0 %v2912
        %3868 = vmatpush1.bf16.msra.mxu0 %v2911
        %3869 = vmatprep.subr.bf16.mxu0 %v2904
        %3870 = vmatpush1.bf16.msra.mxu0 %v2903
        %3871 = vmatprep.subr.bf16.mxu0 %v2896
        %3872 = vmatpush1.bf16.msra.mxu0 %v2895
        %3873 = vmatprep.subr.bf16.mxu0 %v2888
        %3874 = vmatpush1.bf16.msra.mxu0 %v2887
        %3875 = vmatprep.subr.bf16.mxu0 %v2880
        %3876 = vmatpush1.bf16.msra.mxu0 %v2879
        %3877 = vmatprep.subr.bf16.mxu0 %v2872
        %3878 = vmatpush1.bf16.msra.mxu0 %v2871
        %3879 = vmatprep.subr.bf16.mxu0 %v2864
        %3880 = vmatpush1.bf16.msra.mxu0 %v2863
        %3881 = vmatprep.subr.bf16.mxu0 %v2856
        %3882 = vmatpush1.bf16.msra.mxu0 %v2855
        %3883 = vmatprep.subr.bf16.mxu0 %v2976
        %3884 = vmatpush2.bf16.msra.mxu0 %v2975
        %3885 = vmatprep.subr.bf16.mxu0 %v2968
        %3886 = vmatpush2.bf16.msra.mxu0 %v2967
        %3887 = vmatprep.subr.bf16.mxu0 %v2960
        %3888 = vmatpush2.bf16.msra.mxu0 %v2959
        %3889 = vmatprep.subr.bf16.mxu0 %v2952
        %3890 = vmatpush2.bf16.msra.mxu0 %v2951
        %3891 = vmatprep.subr.bf16.mxu0 %v2944
        %3892 = vmatpush2.bf16.msra.mxu0 %v2943
        %3893 = vmatprep.subr.bf16.mxu0 %v2936
        %3894 = vmatpush2.bf16.msra.mxu0 %v2935
        %3895 = vmatprep.subr.bf16.mxu0 %v2928
        %3896 = vmatpush2.bf16.msra.mxu0 %v2927
        %3897 = vmatprep.subr.bf16.mxu0 %v2920
        %3898 = vmatpush2.bf16.msra.mxu0 %v2919
        %3899 = vmatprep.mubr.bf16.mxu0 %v504
        %3900 = vmatmul.mubr.bf16.gmra.mxu0 %v503
        %v3901 = vpop.f32.mrf.mxu0
        %v3902 = vadd.f32 %v3861, %v3901
        %v3903 = vpop.f32.mrf.mxu0
        %v3904 = vadd.f32 %v3863, %v3903
        %v3905 = vpop.f32.mrf.mxu0
        %v3906 = vpop.f32.mrf.mxu0
        %3907 = vdwg.mxu0
        %3908 = vmatprep.subr.bf16.mxu0 %v3040
        %3909 = vmatpush1.bf16.msra.mxu0 %v3039
        %3910 = vmatprep.subr.bf16.mxu0 %v3032
        %3911 = vmatpush1.bf16.msra.mxu0 %v3031
        %3912 = vmatprep.subr.bf16.mxu0 %v3024
        %3913 = vmatpush1.bf16.msra.mxu0 %v3023
        %3914 = vmatprep.subr.bf16.mxu0 %v3016
        %3915 = vmatpush1.bf16.msra.mxu0 %v3015
        %3916 = vmatprep.subr.bf16.mxu0 %v3008
        %3917 = vmatpush1.bf16.msra.mxu0 %v3007
        %3918 = vmatprep.subr.bf16.mxu0 %v3000
        %3919 = vmatpush1.bf16.msra.mxu0 %v2999
        %3920 = vmatprep.subr.bf16.mxu0 %v2992
        %3921 = vmatpush1.bf16.msra.mxu0 %v2991
        %3922 = vmatprep.subr.bf16.mxu0 %v2984
        %3923 = vmatpush1.bf16.msra.mxu0 %v2983
        %3924 = vmatprep.subr.bf16.mxu0 %v3104
        %3925 = vmatpush2.bf16.msra.mxu0 %v3103
        %3926 = vmatprep.subr.bf16.mxu0 %v3096
        %3927 = vmatpush2.bf16.msra.mxu0 %v3095
        %3928 = vmatprep.subr.bf16.mxu0 %v3088
        %3929 = vmatpush2.bf16.msra.mxu0 %v3087
        %3930 = vmatprep.subr.bf16.mxu0 %v3080
        %3931 = vmatpush2.bf16.msra.mxu0 %v3079
        %3932 = vmatprep.subr.bf16.mxu0 %v3072
        %3933 = vmatpush2.bf16.msra.mxu0 %v3071
        %3934 = vmatprep.subr.bf16.mxu0 %v3064
        %3935 = vmatpush2.bf16.msra.mxu0 %v3063
        %3936 = vmatprep.subr.bf16.mxu0 %v3056
        %3937 = vmatpush2.bf16.msra.mxu0 %v3055
        %3938 = vmatprep.subr.bf16.mxu0 %v3048
        %3939 = vmatpush2.bf16.msra.mxu0 %v3047
        %3940 = vmatprep.mubr.bf16.mxu0 %v506
        %3941 = vmatmul.mubr.bf16.gmra.mxu0 %v505
        %v3942 = vpop.f32.mrf.mxu0
        %v3943 = vadd.f32 %v3902, %v3942
        %v3944 = vpop.f32.mrf.mxu0
        %v3945 = vadd.f32 %v3904, %v3944
        %v3946 = vpop.f32.mrf.mxu0
        %v3947 = vpop.f32.mrf.mxu0
        %3948 = vdwg.mxu0
        %3949 = vmatprep.subr.bf16.mxu0 %v2658
        %3950 = vmatpush1.bf16.msra.mxu0 %v2657
        %3951 = vmatprep.subr.bf16.mxu0 %v2650
        %3952 = vmatpush1.bf16.msra.mxu0 %v2649
        %3953 = vmatprep.subr.bf16.mxu0 %v2642
        %3954 = vmatpush1.bf16.msra.mxu0 %v2641
        %3955 = vmatprep.subr.bf16.mxu0 %v2634
        %3956 = vmatpush1.bf16.msra.mxu0 %v2633
        %3957 = vmatprep.subr.bf16.mxu0 %v2626
        %3958 = vmatpush1.bf16.msra.mxu0 %v2625
        %3959 = vmatprep.subr.bf16.mxu0 %v2618
        %3960 = vmatpush1.bf16.msra.mxu0 %v2617
        %3961 = vmatprep.subr.bf16.mxu0 %v2610
        %3962 = vmatpush1.bf16.msra.mxu0 %v2609
        %3963 = vmatprep.subr.bf16.mxu0 %v2602
        %3964 = vmatpush1.bf16.msra.mxu0 %v2601
        %3965 = vmatprep.subr.bf16.mxu0 %v2722
        %3966 = vmatpush2.bf16.msra.mxu0 %v2721
        %3967 = vmatprep.subr.bf16.mxu0 %v2714
        %3968 = vmatpush2.bf16.msra.mxu0 %v2713
        %3969 = vmatprep.subr.bf16.mxu0 %v2706
        %3970 = vmatpush2.bf16.msra.mxu0 %v2705
        %3971 = vmatprep.subr.bf16.mxu0 %v2698
        %3972 = vmatpush2.bf16.msra.mxu0 %v2697
        %3973 = vmatprep.subr.bf16.mxu0 %v2690
        %3974 = vmatpush2.bf16.msra.mxu0 %v2689
        %3975 = vmatprep.subr.bf16.mxu0 %v2682
        %3976 = vmatpush2.bf16.msra.mxu0 %v2681
        %3977 = vmatprep.subr.bf16.mxu0 %v2674
        %3978 = vmatpush2.bf16.msra.mxu0 %v2673
        %3979 = vmatprep.subr.bf16.mxu0 %v2666
        %3980 = vmatpush2.bf16.msra.mxu0 %v2665
        %3981 = vmatprep.mubr.bf16.mxu0 %v500
        %3982 = vmatmul.mubr.bf16.gmra.mxu0 %v499
        %v3983 = vpop.f32.mrf.mxu0
        %v3984 = vadd.f32 %v1040, %v3983
        %v3985 = vpop.f32.mrf.mxu0
        %v3986 = vadd.f32 %v1044, %v3985
        %v3987 = vpop.f32.mrf.mxu0
        %v3988 = vpop.f32.mrf.mxu0
        %3989 = vdwg.mxu0
        %3990 = vmatprep.subr.bf16.mxu0 %v2786
        %3991 = vmatpush1.bf16.msra.mxu0 %v2785
        %3992 = vmatprep.subr.bf16.mxu0 %v2778
        %3993 = vmatpush1.bf16.msra.mxu0 %v2777
        %3994 = vmatprep.subr.bf16.mxu0 %v2770
        %3995 = vmatpush1.bf16.msra.mxu0 %v2769
        %3996 = vmatprep.subr.bf16.mxu0 %v2762
        %3997 = vmatpush1.bf16.msra.mxu0 %v2761
        %3998 = vmatprep.subr.bf16.mxu0 %v2754
        %3999 = vmatpush1.bf16.msra.mxu0 %v2753
        %4000 = vmatprep.subr.bf16.mxu0 %v2746
        %4001 = vmatpush1.bf16.msra.mxu0 %v2745
        %4002 = vmatprep.subr.bf16.mxu0 %v2738
        %4003 = vmatpush1.bf16.msra.mxu0 %v2737
        %4004 = vmatprep.subr.bf16.mxu0 %v2730
        %4005 = vmatpush1.bf16.msra.mxu0 %v2729
        %4006 = vmatprep.subr.bf16.mxu0 %v2850
        %4007 = vmatpush2.bf16.msra.mxu0 %v2849
        %4008 = vmatprep.subr.bf16.mxu0 %v2842
        %4009 = vmatpush2.bf16.msra.mxu0 %v2841
        %4010 = vmatprep.subr.bf16.mxu0 %v2834
        %4011 = vmatpush2.bf16.msra.mxu0 %v2833
        %4012 = vmatprep.subr.bf16.mxu0 %v2826
        %4013 = vmatpush2.bf16.msra.mxu0 %v2825
        %4014 = vmatprep.subr.bf16.mxu0 %v2818
        %4015 = vmatpush2.bf16.msra.mxu0 %v2817
        %4016 = vmatprep.subr.bf16.mxu0 %v2810
        %4017 = vmatpush2.bf16.msra.mxu0 %v2809
        %4018 = vmatprep.subr.bf16.mxu0 %v2802
        %4019 = vmatpush2.bf16.msra.mxu0 %v2801
        %4020 = vmatprep.subr.bf16.mxu0 %v2794
        %4021 = vmatpush2.bf16.msra.mxu0 %v2793
        %4022 = vmatprep.mubr.bf16.mxu0 %v502
        %4023 = vmatmul.mubr.bf16.gmra.mxu0 %v501
        %v4024 = vpop.f32.mrf.mxu0
        %v4025 = vadd.f32 %v3984, %v4024
        %v4026 = vpop.f32.mrf.mxu0
        %v4027 = vadd.f32 %v3986, %v4026
        %v4028 = vpop.f32.mrf.mxu0
        %v4029 = vpop.f32.mrf.mxu0
        %4030 = vdwg.mxu0
        %4031 = vmatprep.subr.bf16.mxu0 %v2914
        %4032 = vmatpush1.bf16.msra.mxu0 %v2913
        %4033 = vmatprep.subr.bf16.mxu0 %v2906
        %4034 = vmatpush1.bf16.msra.mxu0 %v2905
        %4035 = vmatprep.subr.bf16.mxu0 %v2898
        %4036 = vmatpush1.bf16.msra.mxu0 %v2897
        %4037 = vmatprep.subr.bf16.mxu0 %v2890
        %4038 = vmatpush1.bf16.msra.mxu0 %v2889
        %4039 = vmatprep.subr.bf16.mxu0 %v2882
        %4040 = vmatpush1.bf16.msra.mxu0 %v2881
        %4041 = vmatprep.subr.bf16.mxu0 %v2874
        %4042 = vmatpush1.bf16.msra.mxu0 %v2873
        %4043 = vmatprep.subr.bf16.mxu0 %v2866
        %4044 = vmatpush1.bf16.msra.mxu0 %v2865
        %4045 = vmatprep.subr.bf16.mxu0 %v2858
        %4046 = vmatpush1.bf16.msra.mxu0 %v2857
        %4047 = vmatprep.subr.bf16.mxu0 %v2978
        %4048 = vmatpush2.bf16.msra.mxu0 %v2977
        %4049 = vmatprep.subr.bf16.mxu0 %v2970
        %4050 = vmatpush2.bf16.msra.mxu0 %v2969
        %4051 = vmatprep.subr.bf16.mxu0 %v2962
        %4052 = vmatpush2.bf16.msra.mxu0 %v2961
        %4053 = vmatprep.subr.bf16.mxu0 %v2954
        %4054 = vmatpush2.bf16.msra.mxu0 %v2953
        %4055 = vmatprep.subr.bf16.mxu0 %v2946
        %4056 = vmatpush2.bf16.msra.mxu0 %v2945
        %4057 = vmatprep.subr.bf16.mxu0 %v2938
        %4058 = vmatpush2.bf16.msra.mxu0 %v2937
        %4059 = vmatprep.subr.bf16.mxu0 %v2930
        %4060 = vmatpush2.bf16.msra.mxu0 %v2929
        %4061 = vmatprep.subr.bf16.mxu0 %v2922
        %4062 = vmatpush2.bf16.msra.mxu0 %v2921
        %4063 = vmatprep.mubr.bf16.mxu0 %v504
        %4064 = vmatmul.mubr.bf16.gmra.mxu0 %v503
        %v4065 = vpop.f32.mrf.mxu0
        %v4066 = vadd.f32 %v4025, %v4065
        %v4067 = vpop.f32.mrf.mxu0
        %v4068 = vadd.f32 %v4027, %v4067
        %v4069 = vpop.f32.mrf.mxu0
        %v4070 = vpop.f32.mrf.mxu0
        %4071 = vdwg.mxu0
        %4072 = vmatprep.subr.bf16.mxu0 %v3042
        %4073 = vmatpush1.bf16.msra.mxu0 %v3041
        %4074 = vmatprep.subr.bf16.mxu0 %v3034
        %4075 = vmatpush1.bf16.msra.mxu0 %v3033
        %4076 = vmatprep.subr.bf16.mxu0 %v3026
        %4077 = vmatpush1.bf16.msra.mxu0 %v3025
        %4078 = vmatprep.subr.bf16.mxu0 %v3018
        %4079 = vmatpush1.bf16.msra.mxu0 %v3017
        %4080 = vmatprep.subr.bf16.mxu0 %v3010
        %4081 = vmatpush1.bf16.msra.mxu0 %v3009
        %4082 = vmatprep.subr.bf16.mxu0 %v3002
        %4083 = vmatpush1.bf16.msra.mxu0 %v3001
        %4084 = vmatprep.subr.bf16.mxu0 %v2994
        %4085 = vmatpush1.bf16.msra.mxu0 %v2993
        %4086 = vmatprep.subr.bf16.mxu0 %v2986
        %4087 = vmatpush1.bf16.msra.mxu0 %v2985
        %4088 = vmatprep.subr.bf16.mxu0 %v3106
        %4089 = vmatpush2.bf16.msra.mxu0 %v3105
        %4090 = vmatprep.subr.bf16.mxu0 %v3098
        %4091 = vmatpush2.bf16.msra.mxu0 %v3097
        %4092 = vmatprep.subr.bf16.mxu0 %v3090
        %4093 = vmatpush2.bf16.msra.mxu0 %v3089
        %4094 = vmatprep.subr.bf16.mxu0 %v3082
        %4095 = vmatpush2.bf16.msra.mxu0 %v3081
        %4096 = vmatprep.subr.bf16.mxu0 %v3074
        %4097 = vmatpush2.bf16.msra.mxu0 %v3073
        %4098 = vmatprep.subr.bf16.mxu0 %v3066
        %4099 = vmatpush2.bf16.msra.mxu0 %v3065
        %4100 = vmatprep.subr.bf16.mxu0 %v3058
        %4101 = vmatpush2.bf16.msra.mxu0 %v3057
        %4102 = vmatprep.subr.bf16.mxu0 %v3050
        %4103 = vmatpush2.bf16.msra.mxu0 %v3049
        %4104 = vmatprep.mubr.bf16.mxu0 %v506
        %4105 = vmatmul.mubr.bf16.gmra.mxu0 %v505
        %v4106 = vpop.f32.mrf.mxu0
        %v4107 = vadd.f32 %v4066, %v4106
        %v4108 = vpop.f32.mrf.mxu0
        %v4109 = vadd.f32 %v4068, %v4108
        %v4110 = vpop.f32.mrf.mxu0
        %v4111 = vpop.f32.mrf.mxu0
        %4112 = vdwg.mxu0
        %4113 = vmatprep.subr.bf16.mxu0 %v2660
        %4114 = vmatpush1.bf16.msra.mxu0 %v2659
        %4115 = vmatprep.subr.bf16.mxu0 %v2652
        %4116 = vmatpush1.bf16.msra.mxu0 %v2651
        %4117 = vmatprep.subr.bf16.mxu0 %v2644
        %4118 = vmatpush1.bf16.msra.mxu0 %v2643
        %4119 = vmatprep.subr.bf16.mxu0 %v2636
        %4120 = vmatpush1.bf16.msra.mxu0 %v2635
        %4121 = vmatprep.subr.bf16.mxu0 %v2628
        %4122 = vmatpush1.bf16.msra.mxu0 %v2627
        %4123 = vmatprep.subr.bf16.mxu0 %v2620
        %4124 = vmatpush1.bf16.msra.mxu0 %v2619
        %4125 = vmatprep.subr.bf16.mxu0 %v2612
        %4126 = vmatpush1.bf16.msra.mxu0 %v2611
        %4127 = vmatprep.subr.bf16.mxu0 %v2604
        %4128 = vmatpush1.bf16.msra.mxu0 %v2603
        %4129 = vmatprep.subr.bf16.mxu0 %v2724
        %4130 = vmatpush2.bf16.msra.mxu0 %v2723
        %4131 = vmatprep.subr.bf16.mxu0 %v2716
        %4132 = vmatpush2.bf16.msra.mxu0 %v2715
        %4133 = vmatprep.subr.bf16.mxu0 %v2708
        %4134 = vmatpush2.bf16.msra.mxu0 %v2707
        %4135 = vmatprep.subr.bf16.mxu0 %v2700
        %4136 = vmatpush2.bf16.msra.mxu0 %v2699
        %4137 = vmatprep.subr.bf16.mxu0 %v2692
        %4138 = vmatpush2.bf16.msra.mxu0 %v2691
        %4139 = vmatprep.subr.bf16.mxu0 %v2684
        %4140 = vmatpush2.bf16.msra.mxu0 %v2683
        %4141 = vmatprep.subr.bf16.mxu0 %v2676
        %4142 = vmatpush2.bf16.msra.mxu0 %v2675
        %4143 = vmatprep.subr.bf16.mxu0 %v2668
        %4144 = vmatpush2.bf16.msra.mxu0 %v2667
        %4145 = vmatprep.mubr.bf16.mxu0 %v500
        %4146 = vmatmul.mubr.bf16.gmra.mxu0 %v499
        %v4147 = vpop.f32.mrf.mxu0
        %v4148 = vadd.f32 %v1048, %v4147
        %v4149 = vpop.f32.mrf.mxu0
        %v4150 = vadd.f32 %v1052, %v4149
        %v4151 = vpop.f32.mrf.mxu0
        %v4152 = vpop.f32.mrf.mxu0
        %4153 = vdwg.mxu0
        %4154 = vmatprep.subr.bf16.mxu0 %v2788
        %4155 = vmatpush1.bf16.msra.mxu0 %v2787
        %4156 = vmatprep.subr.bf16.mxu0 %v2780
        %4157 = vmatpush1.bf16.msra.mxu0 %v2779
        %4158 = vmatprep.subr.bf16.mxu0 %v2772
        %4159 = vmatpush1.bf16.msra.mxu0 %v2771
        %4160 = vmatprep.subr.bf16.mxu0 %v2764
        %4161 = vmatpush1.bf16.msra.mxu0 %v2763
        %4162 = vmatprep.subr.bf16.mxu0 %v2756
        %4163 = vmatpush1.bf16.msra.mxu0 %v2755
        %4164 = vmatprep.subr.bf16.mxu0 %v2748
        %4165 = vmatpush1.bf16.msra.mxu0 %v2747
        %4166 = vmatprep.subr.bf16.mxu0 %v2740
        %4167 = vmatpush1.bf16.msra.mxu0 %v2739
        %4168 = vmatprep.subr.bf16.mxu0 %v2732
        %4169 = vmatpush1.bf16.msra.mxu0 %v2731
        %4170 = vmatprep.subr.bf16.mxu0 %v2852
        %4171 = vmatpush2.bf16.msra.mxu0 %v2851
        %4172 = vmatprep.subr.bf16.mxu0 %v2844
        %4173 = vmatpush2.bf16.msra.mxu0 %v2843
        %4174 = vmatprep.subr.bf16.mxu0 %v2836
        %4175 = vmatpush2.bf16.msra.mxu0 %v2835
        %4176 = vmatprep.subr.bf16.mxu0 %v2828
        %4177 = vmatpush2.bf16.msra.mxu0 %v2827
        %4178 = vmatprep.subr.bf16.mxu0 %v2820
        %4179 = vmatpush2.bf16.msra.mxu0 %v2819
        %4180 = vmatprep.subr.bf16.mxu0 %v2812
        %4181 = vmatpush2.bf16.msra.mxu0 %v2811
        %4182 = vmatprep.subr.bf16.mxu0 %v2804
        %4183 = vmatpush2.bf16.msra.mxu0 %v2803
        %4184 = vmatprep.subr.bf16.mxu0 %v2796
        %4185 = vmatpush2.bf16.msra.mxu0 %v2795
        %4186 = vmatprep.mubr.bf16.mxu0 %v502
        %4187 = vmatmul.mubr.bf16.gmra.mxu0 %v501
        %v4188 = vpop.f32.mrf.mxu0
        %v4189 = vadd.f32 %v4148, %v4188
        %v4190 = vpop.f32.mrf.mxu0
        %v4191 = vadd.f32 %v4150, %v4190
        %v4192 = vpop.f32.mrf.mxu0
        %v4193 = vpop.f32.mrf.mxu0
        %4194 = vdwg.mxu0
        %4195 = vmatprep.subr.bf16.mxu0 %v2916
        %4196 = vmatpush1.bf16.msra.mxu0 %v2915
        %4197 = vmatprep.subr.bf16.mxu0 %v2908
        %4198 = vmatpush1.bf16.msra.mxu0 %v2907
        %4199 = vmatprep.subr.bf16.mxu0 %v2900
        %4200 = vmatpush1.bf16.msra.mxu0 %v2899
        %4201 = vmatprep.subr.bf16.mxu0 %v2892
        %4202 = vmatpush1.bf16.msra.mxu0 %v2891
        %4203 = vmatprep.subr.bf16.mxu0 %v2884
        %4204 = vmatpush1.bf16.msra.mxu0 %v2883
        %4205 = vmatprep.subr.bf16.mxu0 %v2876
        %4206 = vmatpush1.bf16.msra.mxu0 %v2875
        %4207 = vmatprep.subr.bf16.mxu0 %v2868
        %4208 = vmatpush1.bf16.msra.mxu0 %v2867
        %4209 = vmatprep.subr.bf16.mxu0 %v2860
        %4210 = vmatpush1.bf16.msra.mxu0 %v2859
        %4211 = vmatprep.subr.bf16.mxu0 %v2980
        %4212 = vmatpush2.bf16.msra.mxu0 %v2979
        %4213 = vmatprep.subr.bf16.mxu0 %v2972
        %4214 = vmatpush2.bf16.msra.mxu0 %v2971
        %4215 = vmatprep.subr.bf16.mxu0 %v2964
        %4216 = vmatpush2.bf16.msra.mxu0 %v2963
        %4217 = vmatprep.subr.bf16.mxu0 %v2956
        %4218 = vmatpush2.bf16.msra.mxu0 %v2955
        %4219 = vmatprep.subr.bf16.mxu0 %v2948
        %4220 = vmatpush2.bf16.msra.mxu0 %v2947
        %4221 = vmatprep.subr.bf16.mxu0 %v2940
        %4222 = vmatpush2.bf16.msra.mxu0 %v2939
        %4223 = vmatprep.subr.bf16.mxu0 %v2932
        %4224 = vmatpush2.bf16.msra.mxu0 %v2931
        %4225 = vmatprep.subr.bf16.mxu0 %v2924
        %4226 = vmatpush2.bf16.msra.mxu0 %v2923
        %4227 = vmatprep.mubr.bf16.mxu0 %v504
        %4228 = vmatmul.mubr.bf16.gmra.mxu0 %v503
        %v4229 = vpop.f32.mrf.mxu0
        %v4230 = vadd.f32 %v4189, %v4229
        %v4231 = vpop.f32.mrf.mxu0
        %v4232 = vadd.f32 %v4191, %v4231
        %v4233 = vpop.f32.mrf.mxu0
        %v4234 = vpop.f32.mrf.mxu0
        %4235 = vdwg.mxu0
        %4236 = vmatprep.subr.bf16.mxu0 %v3044
        %4237 = vmatpush1.bf16.msra.mxu0 %v3043
        %4238 = vmatprep.subr.bf16.mxu0 %v3036
        %4239 = vmatpush1.bf16.msra.mxu0 %v3035
        %4240 = vmatprep.subr.bf16.mxu0 %v3028
        %4241 = vmatpush1.bf16.msra.mxu0 %v3027
        %4242 = vmatprep.subr.bf16.mxu0 %v3020
        %4243 = vmatpush1.bf16.msra.mxu0 %v3019
        %4244 = vmatprep.subr.bf16.mxu0 %v3012
        %4245 = vmatpush1.bf16.msra.mxu0 %v3011
        %4246 = vmatprep.subr.bf16.mxu0 %v3004
        %4247 = vmatpush1.bf16.msra.mxu0 %v3003
        %4248 = vmatprep.subr.bf16.mxu0 %v2996
        %4249 = vmatpush1.bf16.msra.mxu0 %v2995
        %4250 = vmatprep.subr.bf16.mxu0 %v2988
        %4251 = vmatpush1.bf16.msra.mxu0 %v2987
        %4252 = vmatprep.subr.bf16.mxu0 %v3108
        %4253 = vmatpush2.bf16.msra.mxu0 %v3107
        %4254 = vmatprep.subr.bf16.mxu0 %v3100
        %4255 = vmatpush2.bf16.msra.mxu0 %v3099
        %4256 = vmatprep.subr.bf16.mxu0 %v3092
        %4257 = vmatpush2.bf16.msra.mxu0 %v3091
        %4258 = vmatprep.subr.bf16.mxu0 %v3084
        %4259 = vmatpush2.bf16.msra.mxu0 %v3083
        %4260 = vmatprep.subr.bf16.mxu0 %v3076
        %4261 = vmatpush2.bf16.msra.mxu0 %v3075
        %4262 = vmatprep.subr.bf16.mxu0 %v3068
        %4263 = vmatpush2.bf16.msra.mxu0 %v3067
        %4264 = vmatprep.subr.bf16.mxu0 %v3060
        %4265 = vmatpush2.bf16.msra.mxu0 %v3059
        %4266 = vmatprep.subr.bf16.mxu0 %v3052
        %4267 = vmatpush2.bf16.msra.mxu0 %v3051
        %4268 = vmatprep.mubr.bf16.mxu0 %v506
        %4269 = vmatmul.mubr.bf16.gmra.mxu0 %v505
        %v4270 = vpop.f32.mrf.mxu0
        %v4271 = vadd.f32 %v4230, %v4270
        %v4272 = vpop.f32.mrf.mxu0
        %v4273 = vadd.f32 %v4232, %v4272
        %v4274 = vpop.f32.mrf.mxu0
        %v4275 = vpop.f32.mrf.mxu0
        %4276 = vdwg.mxu0
        %v4277 = vxor.u32 %v3779, 2147483648
        %v4278 = vxor.u32 %v3781, 2147483648
        %v4279 = vxor.u32 %v3943, 2147483648
        %v4280 = vxor.u32 %v3945, 2147483648
        %v4281 = vxor.u32 %v4107, 2147483648
        %v4282 = vxor.u32 %v4109, 2147483648
        %v4283 = vxor.u32 %v4271, 2147483648
        %v4284 = vxor.u32 %v4273, 2147483648
        %v4285 = vmul.f32 %v4277, 1.442695
        %v4286 = vpow.pop %v4285
        %v4287 = vmul.f32 %v4278, 1.442695
        %v4288 = vpow.pop %v4287
        %v4289 = vmul.f32 %v4279, 1.442695
        %v4290 = vpow.pop %v4289
        %v4291 = vmul.f32 %v4280, 1.442695
        %v4292 = vpow.pop %v4291
        %v4293 = vmul.f32 %v4281, 1.442695
        %v4294 = vpow.pop %v4293
        %v4295 = vmul.f32 %v4282, 1.442695
        %v4296 = vpow.pop %v4295
        %v4297 = vmul.f32 %v4283, 1.442695
        %v4298 = vpow.pop %v4297
        %v4299 = vmul.f32 %v4284, 1.442695
        %v4300 = vpow.pop %v4299
        %v4301 = vadd.f32 %v4286, 1.0
        %v4302 = vadd.f32 %v4288, 1.0
        %v4303 = vadd.f32 %v4290, 1.0
        %v4304 = vadd.f32 %v4292, 1.0
        %v4305 = vadd.f32 %v4294, 1.0
        %v4306 = vadd.f32 %v4296, 1.0
        %v4307 = vadd.f32 %v4298, 1.0
        %v4308 = vadd.f32 %v4300, 1.0
        %v4309 = vrcp.pop %v4301
        %v4310 = vmul.f32 1.0, %v4309
        %v4311 = vrcp.pop %v4302
        %v4312 = vmul.f32 1.0, %v4311
        %v4313 = vrcp.pop %v4303
        %v4314 = vmul.f32 1.0, %v4313
        %v4315 = vrcp.pop %v4304
        %v4316 = vmul.f32 1.0, %v4315
        %v4317 = vrcp.pop %v4305
        %v4318 = vmul.f32 1.0, %v4317
        %v4319 = vrcp.pop %v4306
        %v4320 = vmul.f32 1.0, %v4319
        %v4321 = vrcp.pop %v4307
        %v4322 = vmul.f32 1.0, %v4321
        %v4323 = vrcp.pop %v4308
        %v4324 = vmul.f32 1.0, %v4323
        %v4325 = vld [vmem:[%s419] sm:$0xff]
        %v4327 = vlaneseq
        %v4328 = vshrl.u32 %v4327, 7
        %v4329 = vsub.s32 0, %v4328
        %v4330 = vrot.slane %v4325, %v4329
        %v4331 = vlaneseq
        %v4332 = vshrl.u32 %v4331, 7
        %v4333 = vsub.s32 1, %v4332
        %v4334 = vrot.slane %v4325, %v4333
        %v4335 = vlaneseq
        %v4336 = vshrl.u32 %v4335, 7
        %v4337 = vsub.s32 2, %v4336
        %v4338 = vrot.slane %v4325, %v4337
        %v4339 = vlaneseq
        %v4340 = vshrl.u32 %v4339, 7
        %v4341 = vsub.s32 3, %v4340
        %v4342 = vrot.slane %v4325, %v4341
        %v4343 = vlaneseq
        %v4344 = vshrl.u32 %v4343, 7
        %v4345 = vsub.s32 4, %v4344
        %v4346 = vrot.slane %v4325, %v4345
        %v4347 = vlaneseq
        %v4348 = vshrl.u32 %v4347, 7
        %v4349 = vsub.s32 5, %v4348
        %v4350 = vrot.slane %v4325, %v4349
        %v4351 = vlaneseq
        %v4352 = vshrl.u32 %v4351, 7
        %v4353 = vsub.s32 6, %v4352
        %v4354 = vrot.slane %v4325, %v4353
        %v4355 = vlaneseq
        %v4356 = vshrl.u32 %v4355, 7
        %v4357 = vsub.s32 7, %v4356
        %v4358 = vrot.slane %v4325, %v4357
        %v4367 = vmul.f32 %v491, %v4330
        %v4368 = vmul.f32 %v492, %v4334
        %v4369 = vmul.f32 %v493, %v4338
        %v4370 = vmul.f32 %v494, %v4342
        %v4371 = vmul.f32 %v495, %v4346
        %v4372 = vmul.f32 %v496, %v4350
        %v4373 = vmul.f32 %v497, %v4354
        %v4374 = vmul.f32 %v498, %v4358
        %v4375 = vadd.f32 %v4367, %v4368
        %v4376 = vadd.f32 %v4375, %v4369
        %v4377 = vadd.f32 %v4376, %v4370
        %v4378 = vadd.f32 %v4377, %v4371
        %v4379 = vadd.f32 %v4378, %v4372
        %v4380 = vadd.f32 %v4379, %v4373
        %v4381 = vadd.f32 %v4380, %v4374
        %4382 = vadd.xlane.f32.xlu0 %v4381
        %v4383 = vpop.xlane.xlu0 %4382
        %v4384 = vld [vmem:[%s489] sm:$0x1]
        %v4386 = vlaneseq
        %v4387 = vshrl.u32 %v4386, 7
        %v4388 = vsub.s32 0, %v4387
        %v4389 = vrot.slane %v4384, %v4388
        %v4391 = vadd.f32 %v4383, %v4389
        %v4392 = vmul.f32 %v491, %v4310
        %v4393 = vmul.f32 %v492, %v4312
        %v4394 = vmul.f32 %v493, %v4314
        %v4395 = vmul.f32 %v494, %v4316
        %v4396 = vmul.f32 %v495, %v4318
        %v4397 = vmul.f32 %v496, %v4320
        %v4398 = vmul.f32 %v497, %v4322
        %v4399 = vmul.f32 %v498, %v4324
        %v4400 = vpack.c.bf16 %v4392, %v4392
        %v4401 = vpack.c.bf16 %v4393, %v4393
        %v4402 = vpack.c.bf16 %v4394, %v4394
        %v4403 = vpack.c.bf16 %v4395, %v4395
        %v4404 = vpack.c.bf16 %v4396, %v4396
        %v4405 = vpack.c.bf16 %v4397, %v4397
        %v4406 = vpack.c.bf16 %v4398, %v4398
        %v4407 = vpack.c.bf16 %v4399, %v4399
        %v4408 = vld [vmem:[%s428] sm:$0xf]
        %v4409 = vld [vmem:[%s428 + $0x4] sm:$0xf]
        %v4410 = vld [vmem:[%s428 + $0x8] sm:$0xf]
        %v4411 = vld [vmem:[%s428 + $0xc] sm:$0xf]
        %v4412 = vld [vmem:[%s428 + $0x10] sm:$0xf]
        %v4413 = vld [vmem:[%s428 + $0x14] sm:$0xf]
        %v4414 = vld [vmem:[%s428 + $0x18] sm:$0xf]
        %v4415 = vld [vmem:[%s428 + $0x1c] sm:$0xf]
        %v4416 = vld [vmem:[%s428 + $0x20] sm:$0xf]
        %v4417 = vld [vmem:[%s428 + $0x24] sm:$0xf]
        %v4418 = vld [vmem:[%s428 + $0x28] sm:$0xf]
        %v4419 = vld [vmem:[%s428 + $0x2c] sm:$0xf]
        %v4420 = vld [vmem:[%s428 + $0x30] sm:$0xf]
        %v4421 = vld [vmem:[%s428 + $0x34] sm:$0xf]
        %v4422 = vld [vmem:[%s428 + $0x38] sm:$0xf]
        %v4423 = vld [vmem:[%s428 + $0x3c] sm:$0xf]
        %v4424 = vld [vmem:[%s428 + $0x40] sm:$0xf]
        %v4425 = vld [vmem:[%s428 + $0x44] sm:$0xf]
        %v4426 = vld [vmem:[%s428 + $0x48] sm:$0xf]
        %v4427 = vld [vmem:[%s428 + $0x4c] sm:$0xf]
        %v4428 = vld [vmem:[%s428 + $0x50] sm:$0xf]
        %v4429 = vld [vmem:[%s428 + $0x54] sm:$0xf]
        %v4430 = vld [vmem:[%s428 + $0x58] sm:$0xf]
        %v4431 = vld [vmem:[%s428 + $0x5c] sm:$0xf]
        %v4432 = vld [vmem:[%s428 + $0x60] sm:$0xf]
        %v4433 = vld [vmem:[%s428 + $0x64] sm:$0xf]
        %v4434 = vld [vmem:[%s428 + $0x68] sm:$0xf]
        %v4435 = vld [vmem:[%s428 + $0x6c] sm:$0xf]
        %v4436 = vld [vmem:[%s428 + $0x70] sm:$0xf]
        %v4437 = vld [vmem:[%s428 + $0x74] sm:$0xf]
        %v4438 = vld [vmem:[%s428 + $0x78] sm:$0xf]
        %v4439 = vld [vmem:[%s428 + $0x7c] sm:$0xf]
        %v4440 = vld [vmem:[%s428 + $0x80] sm:$0xf]
        %v4441 = vld [vmem:[%s428 + $0x84] sm:$0xf]
        %v4442 = vld [vmem:[%s428 + $0x88] sm:$0xf]
        %v4443 = vld [vmem:[%s428 + $0x8c] sm:$0xf]
        %v4444 = vld [vmem:[%s428 + $0x90] sm:$0xf]
        %v4445 = vld [vmem:[%s428 + $0x94] sm:$0xf]
        %v4446 = vld [vmem:[%s428 + $0x98] sm:$0xf]
        %v4447 = vld [vmem:[%s428 + $0x9c] sm:$0xf]
        %v4448 = vld [vmem:[%s428 + $0xa0] sm:$0xf]
        %v4449 = vld [vmem:[%s428 + $0xa4] sm:$0xf]
        %v4450 = vld [vmem:[%s428 + $0xa8] sm:$0xf]
        %v4451 = vld [vmem:[%s428 + $0xac] sm:$0xf]
        %v4452 = vld [vmem:[%s428 + $0xb0] sm:$0xf]
        %v4453 = vld [vmem:[%s428 + $0xb4] sm:$0xf]
        %v4454 = vld [vmem:[%s428 + $0xb8] sm:$0xf]
        %v4455 = vld [vmem:[%s428 + $0xbc] sm:$0xf]
        %v4456 = vld [vmem:[%s428 + $0xc0] sm:$0xf]
        %v4457 = vld [vmem:[%s428 + $0xc4] sm:$0xf]
        %v4458 = vld [vmem:[%s428 + $0xc8] sm:$0xf]
        %v4459 = vld [vmem:[%s428 + $0xcc] sm:$0xf]
        %v4460 = vld [vmem:[%s428 + $0xd0] sm:$0xf]
        %v4461 = vld [vmem:[%s428 + $0xd4] sm:$0xf]
        %v4462 = vld [vmem:[%s428 + $0xd8] sm:$0xf]
        %v4463 = vld [vmem:[%s428 + $0xdc] sm:$0xf]
        %v4464 = vld [vmem:[%s428 + $0xe0] sm:$0xf]
        %v4465 = vld [vmem:[%s428 + $0xe4] sm:$0xf]
        %v4466 = vld [vmem:[%s428 + $0xe8] sm:$0xf]
        %v4467 = vld [vmem:[%s428 + $0xec] sm:$0xf]
        %v4468 = vld [vmem:[%s428 + $0xf0] sm:$0xf]
        %v4469 = vld [vmem:[%s428 + $0xf4] sm:$0xf]
        %v4470 = vld [vmem:[%s428 + $0xf8] sm:$0xf]
        %v4471 = vld [vmem:[%s428 + $0xfc] sm:$0xf]
        %v4472 = vld [vmem:[%s428 + $0x100] sm:$0xf]
        %v4473 = vld [vmem:[%s428 + $0x104] sm:$0xf]
        %v4474 = vld [vmem:[%s428 + $0x108] sm:$0xf]
        %v4475 = vld [vmem:[%s428 + $0x10c] sm:$0xf]
        %v4476 = vld [vmem:[%s428 + $0x110] sm:$0xf]
        %v4477 = vld [vmem:[%s428 + $0x114] sm:$0xf]
        %v4478 = vld [vmem:[%s428 + $0x118] sm:$0xf]
        %v4479 = vld [vmem:[%s428 + $0x11c] sm:$0xf]
        %v4480 = vld [vmem:[%s428 + $0x120] sm:$0xf]
        %v4481 = vld [vmem:[%s428 + $0x124] sm:$0xf]
        %v4482 = vld [vmem:[%s428 + $0x128] sm:$0xf]
        %v4483 = vld [vmem:[%s428 + $0x12c] sm:$0xf]
        %v4484 = vld [vmem:[%s428 + $0x130] sm:$0xf]
        %v4485 = vld [vmem:[%s428 + $0x134] sm:$0xf]
        %v4486 = vld [vmem:[%s428 + $0x138] sm:$0xf]
        %v4487 = vld [vmem:[%s428 + $0x13c] sm:$0xf]
        %v4488 = vld [vmem:[%s428 + $0x140] sm:$0xf]
        %v4489 = vld [vmem:[%s428 + $0x144] sm:$0xf]
        %v4490 = vld [vmem:[%s428 + $0x148] sm:$0xf]
        %v4491 = vld [vmem:[%s428 + $0x14c] sm:$0xf]
        %v4492 = vld [vmem:[%s428 + $0x150] sm:$0xf]
        %v4493 = vld [vmem:[%s428 + $0x154] sm:$0xf]
        %v4494 = vld [vmem:[%s428 + $0x158] sm:$0xf]
        %v4495 = vld [vmem:[%s428 + $0x15c] sm:$0xf]
        %v4496 = vld [vmem:[%s428 + $0x160] sm:$0xf]
        %v4497 = vld [vmem:[%s428 + $0x164] sm:$0xf]
        %v4498 = vld [vmem:[%s428 + $0x168] sm:$0xf]
        %v4499 = vld [vmem:[%s428 + $0x16c] sm:$0xf]
        %v4500 = vld [vmem:[%s428 + $0x170] sm:$0xf]
        %v4501 = vld [vmem:[%s428 + $0x174] sm:$0xf]
        %v4502 = vld [vmem:[%s428 + $0x178] sm:$0xf]
        %v4503 = vld [vmem:[%s428 + $0x17c] sm:$0xf]
        %v4504 = vld [vmem:[%s428 + $0x180] sm:$0xf]
        %v4505 = vld [vmem:[%s428 + $0x184] sm:$0xf]
        %v4506 = vld [vmem:[%s428 + $0x188] sm:$0xf]
        %v4507 = vld [vmem:[%s428 + $0x18c] sm:$0xf]
        %v4508 = vld [vmem:[%s428 + $0x190] sm:$0xf]
        %v4509 = vld [vmem:[%s428 + $0x194] sm:$0xf]
        %v4510 = vld [vmem:[%s428 + $0x198] sm:$0xf]
        %v4511 = vld [vmem:[%s428 + $0x19c] sm:$0xf]
        %v4512 = vld [vmem:[%s428 + $0x1a0] sm:$0xf]
        %v4513 = vld [vmem:[%s428 + $0x1a4] sm:$0xf]
        %v4514 = vld [vmem:[%s428 + $0x1a8] sm:$0xf]
        %v4515 = vld [vmem:[%s428 + $0x1ac] sm:$0xf]
        %v4516 = vld [vmem:[%s428 + $0x1b0] sm:$0xf]
        %v4517 = vld [vmem:[%s428 + $0x1b4] sm:$0xf]
        %v4518 = vld [vmem:[%s428 + $0x1b8] sm:$0xf]
        %v4519 = vld [vmem:[%s428 + $0x1bc] sm:$0xf]
        %v4520 = vld [vmem:[%s428 + $0x1c0] sm:$0xf]
        %v4521 = vld [vmem:[%s428 + $0x1c4] sm:$0xf]
        %v4522 = vld [vmem:[%s428 + $0x1c8] sm:$0xf]
        %v4523 = vld [vmem:[%s428 + $0x1cc] sm:$0xf]
        %v4524 = vld [vmem:[%s428 + $0x1d0] sm:$0xf]
        %v4525 = vld [vmem:[%s428 + $0x1d4] sm:$0xf]
        %v4526 = vld [vmem:[%s428 + $0x1d8] sm:$0xf]
        %v4527 = vld [vmem:[%s428 + $0x1dc] sm:$0xf]
        %v4528 = vld [vmem:[%s428 + $0x1e0] sm:$0xf]
        %v4529 = vld [vmem:[%s428 + $0x1e4] sm:$0xf]
        %v4530 = vld [vmem:[%s428 + $0x1e8] sm:$0xf]
        %v4531 = vld [vmem:[%s428 + $0x1ec] sm:$0xf]
        %v4532 = vld [vmem:[%s428 + $0x1f0] sm:$0xf]
        %v4533 = vld [vmem:[%s428 + $0x1f4] sm:$0xf]
        %v4534 = vld [vmem:[%s428 + $0x1f8] sm:$0xf]
        %v4535 = vld [vmem:[%s428 + $0x1fc] sm:$0xf]
        %v4664 = vunpack.c.l.b16 %v4408
        %v4665 = vunpack.c.l.b16 %v4409
        %v4666 = vunpack.c.l.b16 %v4410
        %v4667 = vunpack.c.l.b16 %v4411
        %v4668 = vunpack.c.l.b16 %v4412
        %v4669 = vunpack.c.l.b16 %v4413
        %v4670 = vunpack.c.l.b16 %v4414
        %v4671 = vunpack.c.l.b16 %v4415
        %v4672 = vunpack.c.l.b16 %v4416
        %v4673 = vunpack.c.l.b16 %v4417
        %v4674 = vunpack.c.l.b16 %v4418
        %v4675 = vunpack.c.l.b16 %v4419
        %v4676 = vunpack.c.l.b16 %v4420
        %v4677 = vunpack.c.l.b16 %v4421
        %v4678 = vunpack.c.l.b16 %v4422
        %v4679 = vunpack.c.l.b16 %v4423
        %v4680 = vunpack.c.l.b16 %v4424
        %v4681 = vunpack.c.l.b16 %v4425
        %v4682 = vunpack.c.l.b16 %v4426
        %v4683 = vunpack.c.l.b16 %v4427
        %v4684 = vunpack.c.l.b16 %v4428
        %v4685 = vunpack.c.l.b16 %v4429
        %v4686 = vunpack.c.l.b16 %v4430
        %v4687 = vunpack.c.l.b16 %v4431
        %v4688 = vunpack.c.l.b16 %v4432
        %v4689 = vunpack.c.l.b16 %v4433
        %v4690 = vunpack.c.l.b16 %v4434
        %v4691 = vunpack.c.l.b16 %v4435
        %v4692 = vunpack.c.l.b16 %v4436
        %v4693 = vunpack.c.l.b16 %v4437
        %v4694 = vunpack.c.l.b16 %v4438
        %v4695 = vunpack.c.l.b16 %v4439
        %v4696 = vunpack.c.l.b16 %v4440
        %v4697 = vunpack.c.l.b16 %v4441
        %v4698 = vunpack.c.l.b16 %v4442
        %v4699 = vunpack.c.l.b16 %v4443
        %v4700 = vunpack.c.l.b16 %v4444
        %v4701 = vunpack.c.l.b16 %v4445
        %v4702 = vunpack.c.l.b16 %v4446
        %v4703 = vunpack.c.l.b16 %v4447
        %v4704 = vunpack.c.l.b16 %v4448
        %v4705 = vunpack.c.l.b16 %v4449
        %v4706 = vunpack.c.l.b16 %v4450
        %v4707 = vunpack.c.l.b16 %v4451
        %v4708 = vunpack.c.l.b16 %v4452
        %v4709 = vunpack.c.l.b16 %v4453
        %v4710 = vunpack.c.l.b16 %v4454
        %v4711 = vunpack.c.l.b16 %v4455
        %v4712 = vunpack.c.l.b16 %v4456
        %v4713 = vunpack.c.l.b16 %v4457
        %v4714 = vunpack.c.l.b16 %v4458
        %v4715 = vunpack.c.l.b16 %v4459
        %v4716 = vunpack.c.l.b16 %v4460
        %v4717 = vunpack.c.l.b16 %v4461
        %v4718 = vunpack.c.l.b16 %v4462
        %v4719 = vunpack.c.l.b16 %v4463
        %v4720 = vunpack.c.l.b16 %v4464
        %v4721 = vunpack.c.l.b16 %v4465
        %v4722 = vunpack.c.l.b16 %v4466
        %v4723 = vunpack.c.l.b16 %v4467
        %v4724 = vunpack.c.l.b16 %v4468
        %v4725 = vunpack.c.l.b16 %v4469
        %v4726 = vunpack.c.l.b16 %v4470
        %v4727 = vunpack.c.l.b16 %v4471
        %v4728 = vunpack.c.l.b16 %v4472
        %v4729 = vunpack.c.l.b16 %v4473
        %v4730 = vunpack.c.l.b16 %v4474
        %v4731 = vunpack.c.l.b16 %v4475
        %v4732 = vunpack.c.l.b16 %v4476
        %v4733 = vunpack.c.l.b16 %v4477
        %v4734 = vunpack.c.l.b16 %v4478
        %v4735 = vunpack.c.l.b16 %v4479
        %v4736 = vunpack.c.l.b16 %v4480
        %v4737 = vunpack.c.l.b16 %v4481
        %v4738 = vunpack.c.l.b16 %v4482
        %v4739 = vunpack.c.l.b16 %v4483
        %v4740 = vunpack.c.l.b16 %v4484
        %v4741 = vunpack.c.l.b16 %v4485
        %v4742 = vunpack.c.l.b16 %v4486
        %v4743 = vunpack.c.l.b16 %v4487
        %v4744 = vunpack.c.l.b16 %v4488
        %v4745 = vunpack.c.l.b16 %v4489
        %v4746 = vunpack.c.l.b16 %v4490
        %v4747 = vunpack.c.l.b16 %v4491
        %v4748 = vunpack.c.l.b16 %v4492
        %v4749 = vunpack.c.l.b16 %v4493
        %v4750 = vunpack.c.l.b16 %v4494
        %v4751 = vunpack.c.l.b16 %v4495
        %v4752 = vunpack.c.l.b16 %v4496
        %v4753 = vunpack.c.l.b16 %v4497
        %v4754 = vunpack.c.l.b16 %v4498
        %v4755 = vunpack.c.l.b16 %v4499
        %v4756 = vunpack.c.l.b16 %v4500
        %v4757 = vunpack.c.l.b16 %v4501
        %v4758 = vunpack.c.l.b16 %v4502
        %v4759 = vunpack.c.l.b16 %v4503
        %v4760 = vunpack.c.l.b16 %v4504
        %v4761 = vunpack.c.l.b16 %v4505
        %v4762 = vunpack.c.l.b16 %v4506
        %v4763 = vunpack.c.l.b16 %v4507
        %v4764 = vunpack.c.l.b16 %v4508
        %v4765 = vunpack.c.l.b16 %v4509
        %v4766 = vunpack.c.l.b16 %v4510
        %v4767 = vunpack.c.l.b16 %v4511
        %v4768 = vunpack.c.l.b16 %v4512
        %v4769 = vunpack.c.l.b16 %v4513
        %v4770 = vunpack.c.l.b16 %v4514
        %v4771 = vunpack.c.l.b16 %v4515
        %v4772 = vunpack.c.l.b16 %v4516
        %v4773 = vunpack.c.l.b16 %v4517
        %v4774 = vunpack.c.l.b16 %v4518
        %v4775 = vunpack.c.l.b16 %v4519
        %v4776 = vunpack.c.l.b16 %v4520
        %v4777 = vunpack.c.l.b16 %v4521
        %v4778 = vunpack.c.l.b16 %v4522
        %v4779 = vunpack.c.l.b16 %v4523
        %v4780 = vunpack.c.l.b16 %v4524
        %v4781 = vunpack.c.l.b16 %v4525
        %v4782 = vunpack.c.l.b16 %v4526
        %v4783 = vunpack.c.l.b16 %v4527
        %v4784 = vunpack.c.l.b16 %v4528
        %v4785 = vunpack.c.l.b16 %v4529
        %v4786 = vunpack.c.l.b16 %v4530
        %v4787 = vunpack.c.l.b16 %v4531
        %v4788 = vunpack.c.l.b16 %v4532
        %v4789 = vunpack.c.l.b16 %v4533
        %v4790 = vunpack.c.l.b16 %v4534
        %v4791 = vunpack.c.l.b16 %v4535
        %v4792 = vpack.c.b16 %v4665, %v4664
        %v4793 = vpack.c.b16 %v4667, %v4666
        %v4794 = vpack.c.b16 %v4669, %v4668
        %v4795 = vpack.c.b16 %v4671, %v4670
        %v4796 = vpack.c.b16 %v4673, %v4672
        %v4797 = vpack.c.b16 %v4675, %v4674
        %v4798 = vpack.c.b16 %v4677, %v4676
        %v4799 = vpack.c.b16 %v4679, %v4678
        %v4800 = vpack.c.b16 %v4681, %v4680
        %v4801 = vpack.c.b16 %v4683, %v4682
        %v4802 = vpack.c.b16 %v4685, %v4684
        %v4803 = vpack.c.b16 %v4687, %v4686
        %v4804 = vpack.c.b16 %v4689, %v4688
        %v4805 = vpack.c.b16 %v4691, %v4690
        %v4806 = vpack.c.b16 %v4693, %v4692
        %v4807 = vpack.c.b16 %v4695, %v4694
        %v4808 = vpack.c.b16 %v4697, %v4696
        %v4809 = vpack.c.b16 %v4699, %v4698
        %v4810 = vpack.c.b16 %v4701, %v4700
        %v4811 = vpack.c.b16 %v4703, %v4702
        %v4812 = vpack.c.b16 %v4705, %v4704
        %v4813 = vpack.c.b16 %v4707, %v4706
        %v4814 = vpack.c.b16 %v4709, %v4708
        %v4815 = vpack.c.b16 %v4711, %v4710
        %v4816 = vpack.c.b16 %v4713, %v4712
        %v4817 = vpack.c.b16 %v4715, %v4714
        %v4818 = vpack.c.b16 %v4717, %v4716
        %v4819 = vpack.c.b16 %v4719, %v4718
        %v4820 = vpack.c.b16 %v4721, %v4720
        %v4821 = vpack.c.b16 %v4723, %v4722
        %v4822 = vpack.c.b16 %v4725, %v4724
        %v4823 = vpack.c.b16 %v4727, %v4726
        %v4824 = vpack.c.b16 %v4729, %v4728
        %v4825 = vpack.c.b16 %v4731, %v4730
        %v4826 = vpack.c.b16 %v4733, %v4732
        %v4827 = vpack.c.b16 %v4735, %v4734
        %v4828 = vpack.c.b16 %v4737, %v4736
        %v4829 = vpack.c.b16 %v4739, %v4738
        %v4830 = vpack.c.b16 %v4741, %v4740
        %v4831 = vpack.c.b16 %v4743, %v4742
        %v4832 = vpack.c.b16 %v4745, %v4744
        %v4833 = vpack.c.b16 %v4747, %v4746
        %v4834 = vpack.c.b16 %v4749, %v4748
        %v4835 = vpack.c.b16 %v4751, %v4750
        %v4836 = vpack.c.b16 %v4753, %v4752
        %v4837 = vpack.c.b16 %v4755, %v4754
        %v4838 = vpack.c.b16 %v4757, %v4756
        %v4839 = vpack.c.b16 %v4759, %v4758
        %v4840 = vpack.c.b16 %v4761, %v4760
        %v4841 = vpack.c.b16 %v4763, %v4762
        %v4842 = vpack.c.b16 %v4765, %v4764
        %v4843 = vpack.c.b16 %v4767, %v4766
        %v4844 = vpack.c.b16 %v4769, %v4768
        %v4845 = vpack.c.b16 %v4771, %v4770
        %v4846 = vpack.c.b16 %v4773, %v4772
        %v4847 = vpack.c.b16 %v4775, %v4774
        %v4848 = vpack.c.b16 %v4777, %v4776
        %v4849 = vpack.c.b16 %v4779, %v4778
        %v4850 = vpack.c.b16 %v4781, %v4780
        %v4851 = vpack.c.b16 %v4783, %v4782
        %v4852 = vpack.c.b16 %v4785, %v4784
        %v4853 = vpack.c.b16 %v4787, %v4786
        %v4854 = vpack.c.b16 %v4789, %v4788
        %v4855 = vpack.c.b16 %v4791, %v4790
        %4920 = vmatprep.subr.bf16.mxu0 0
        %4921 = vmatpush1.bf16.msra.mxu0 %v4799
        %4922 = vmatprep.subr.bf16.mxu0 0
        %4923 = vmatpush1.bf16.msra.mxu0 %v4798
        %4924 = vmatprep.subr.bf16.mxu0 0
        %4925 = vmatpush1.bf16.msra.mxu0 %v4797
        %4926 = vmatprep.subr.bf16.mxu0 0
        %4927 = vmatpush1.bf16.msra.mxu0 %v4796
        %4928 = vmatprep.subr.bf16.mxu0 0
        %4929 = vmatpush1.bf16.msra.mxu0 %v4795
        %4930 = vmatprep.subr.bf16.mxu0 0
        %4931 = vmatpush1.bf16.msra.mxu0 %v4794
        %4932 = vmatprep.subr.bf16.mxu0 0
        %4933 = vmatpush1.bf16.msra.mxu0 %v4793
        %4934 = vmatprep.subr.bf16.mxu0 0
        %4935 = vmatpush1.bf16.msra.mxu0 %v4792
        %4936 = vmatprep.subr.bf16.mxu0 0
        %4937 = vmatpush2.bf16.msra.mxu0 %v4807
        %4938 = vmatprep.subr.bf16.mxu0 0
        %4939 = vmatpush2.bf16.msra.mxu0 %v4806
        %4940 = vmatprep.subr.bf16.mxu0 0
        %4941 = vmatpush2.bf16.msra.mxu0 %v4805
        %4942 = vmatprep.subr.bf16.mxu0 0
        %4943 = vmatpush2.bf16.msra.mxu0 %v4804
        %4944 = vmatprep.subr.bf16.mxu0 0
        %4945 = vmatpush2.bf16.msra.mxu0 %v4803
        %4946 = vmatprep.subr.bf16.mxu0 0
        %4947 = vmatpush2.bf16.msra.mxu0 %v4802
        %4948 = vmatprep.subr.bf16.mxu0 0
        %4949 = vmatpush2.bf16.msra.mxu0 %v4801
        %4950 = vmatprep.subr.bf16.mxu0 0
        %4951 = vmatpush2.bf16.msra.mxu0 %v4800
        %4952 = vmatprep.mubr.bf16.mxu0 %v4401
        %4953 = vmatmul.mubr.bf16.gmra.mxu0 %v4400
        %v4954 = vpop.f32.mrf.mxu0
        %v4955 = vadd.f32 0.0, %v4954
        %v4956 = vpop.f32.mrf.mxu0
        %v4957 = vpop.f32.mrf.mxu0
        %v4958 = vpop.f32.mrf.mxu0
        %4959 = vdwg.mxu0
        %4960 = vmatprep.subr.bf16.mxu0 0
        %4961 = vmatpush1.bf16.msra.mxu0 %v4815
        %4962 = vmatprep.subr.bf16.mxu0 0
        %4963 = vmatpush1.bf16.msra.mxu0 %v4814
        %4964 = vmatprep.subr.bf16.mxu0 0
        %4965 = vmatpush1.bf16.msra.mxu0 %v4813
        %4966 = vmatprep.subr.bf16.mxu0 0
        %4967 = vmatpush1.bf16.msra.mxu0 %v4812
        %4968 = vmatprep.subr.bf16.mxu0 0
        %4969 = vmatpush1.bf16.msra.mxu0 %v4811
        %4970 = vmatprep.subr.bf16.mxu0 0
        %4971 = vmatpush1.bf16.msra.mxu0 %v4810
        %4972 = vmatprep.subr.bf16.mxu0 0
        %4973 = vmatpush1.bf16.msra.mxu0 %v4809
        %4974 = vmatprep.subr.bf16.mxu0 0
        %4975 = vmatpush1.bf16.msra.mxu0 %v4808
        %4976 = vmatprep.subr.bf16.mxu0 0
        %4977 = vmatpush2.bf16.msra.mxu0 %v4823
        %4978 = vmatprep.subr.bf16.mxu0 0
        %4979 = vmatpush2.bf16.msra.mxu0 %v4822
        %4980 = vmatprep.subr.bf16.mxu0 0
        %4981 = vmatpush2.bf16.msra.mxu0 %v4821
        %4982 = vmatprep.subr.bf16.mxu0 0
        %4983 = vmatpush2.bf16.msra.mxu0 %v4820
        %4984 = vmatprep.subr.bf16.mxu0 0
        %4985 = vmatpush2.bf16.msra.mxu0 %v4819
        %4986 = vmatprep.subr.bf16.mxu0 0
        %4987 = vmatpush2.bf16.msra.mxu0 %v4818
        %4988 = vmatprep.subr.bf16.mxu0 0
        %4989 = vmatpush2.bf16.msra.mxu0 %v4817
        %4990 = vmatprep.subr.bf16.mxu0 0
        %4991 = vmatpush2.bf16.msra.mxu0 %v4816
        %4992 = vmatprep.mubr.bf16.mxu0 %v4403
        %4993 = vmatmul.mubr.bf16.gmra.mxu0 %v4402
        %v4994 = vpop.f32.mrf.mxu0
        %v4995 = vadd.f32 %v4955, %v4994
        %v4996 = vpop.f32.mrf.mxu0
        %v4997 = vpop.f32.mrf.mxu0
        %v4998 = vpop.f32.mrf.mxu0
        %4999 = vdwg.mxu0
        %5000 = vmatprep.subr.bf16.mxu0 0
        %5001 = vmatpush1.bf16.msra.mxu0 %v4831
        %5002 = vmatprep.subr.bf16.mxu0 0
        %5003 = vmatpush1.bf16.msra.mxu0 %v4830
        %5004 = vmatprep.subr.bf16.mxu0 0
        %5005 = vmatpush1.bf16.msra.mxu0 %v4829
        %5006 = vmatprep.subr.bf16.mxu0 0
        %5007 = vmatpush1.bf16.msra.mxu0 %v4828
        %5008 = vmatprep.subr.bf16.mxu0 0
        %5009 = vmatpush1.bf16.msra.mxu0 %v4827
        %5010 = vmatprep.subr.bf16.mxu0 0
        %5011 = vmatpush1.bf16.msra.mxu0 %v4826
        %5012 = vmatprep.subr.bf16.mxu0 0
        %5013 = vmatpush1.bf16.msra.mxu0 %v4825
        %5014 = vmatprep.subr.bf16.mxu0 0
        %5015 = vmatpush1.bf16.msra.mxu0 %v4824
        %5016 = vmatprep.subr.bf16.mxu0 0
        %5017 = vmatpush2.bf16.msra.mxu0 %v4839
        %5018 = vmatprep.subr.bf16.mxu0 0
        %5019 = vmatpush2.bf16.msra.mxu0 %v4838
        %5020 = vmatprep.subr.bf16.mxu0 0
        %5021 = vmatpush2.bf16.msra.mxu0 %v4837
        %5022 = vmatprep.subr.bf16.mxu0 0
        %5023 = vmatpush2.bf16.msra.mxu0 %v4836
        %5024 = vmatprep.subr.bf16.mxu0 0
        %5025 = vmatpush2.bf16.msra.mxu0 %v4835
        %5026 = vmatprep.subr.bf16.mxu0 0
        %5027 = vmatpush2.bf16.msra.mxu0 %v4834
        %5028 = vmatprep.subr.bf16.mxu0 0
        %5029 = vmatpush2.bf16.msra.mxu0 %v4833
        %5030 = vmatprep.subr.bf16.mxu0 0
        %5031 = vmatpush2.bf16.msra.mxu0 %v4832
        %5032 = vmatprep.mubr.bf16.mxu0 %v4405
        %5033 = vmatmul.mubr.bf16.gmra.mxu0 %v4404
        %v5034 = vpop.f32.mrf.mxu0
        %v5035 = vadd.f32 %v4995, %v5034
        %v5036 = vpop.f32.mrf.mxu0
        %v5037 = vpop.f32.mrf.mxu0
        %v5038 = vpop.f32.mrf.mxu0
        %5039 = vdwg.mxu0
        %5040 = vmatprep.subr.bf16.mxu0 0
        %5041 = vmatpush1.bf16.msra.mxu0 %v4847
        %5042 = vmatprep.subr.bf16.mxu0 0
        %5043 = vmatpush1.bf16.msra.mxu0 %v4846
        %5044 = vmatprep.subr.bf16.mxu0 0
        %5045 = vmatpush1.bf16.msra.mxu0 %v4845
        %5046 = vmatprep.subr.bf16.mxu0 0
        %5047 = vmatpush1.bf16.msra.mxu0 %v4844
        %5048 = vmatprep.subr.bf16.mxu0 0
        %5049 = vmatpush1.bf16.msra.mxu0 %v4843
        %5050 = vmatprep.subr.bf16.mxu0 0
        %5051 = vmatpush1.bf16.msra.mxu0 %v4842
        %5052 = vmatprep.subr.bf16.mxu0 0
        %5053 = vmatpush1.bf16.msra.mxu0 %v4841
        %5054 = vmatprep.subr.bf16.mxu0 0
        %5055 = vmatpush1.bf16.msra.mxu0 %v4840
        %5056 = vmatprep.subr.bf16.mxu0 0
        %5057 = vmatpush2.bf16.msra.mxu0 %v4855
        %5058 = vmatprep.subr.bf16.mxu0 0
        %5059 = vmatpush2.bf16.msra.mxu0 %v4854
        %5060 = vmatprep.subr.bf16.mxu0 0
        %5061 = vmatpush2.bf16.msra.mxu0 %v4853
        %5062 = vmatprep.subr.bf16.mxu0 0
        %5063 = vmatpush2.bf16.msra.mxu0 %v4852
        %5064 = vmatprep.subr.bf16.mxu0 0
        %5065 = vmatpush2.bf16.msra.mxu0 %v4851
        %5066 = vmatprep.subr.bf16.mxu0 0
        %5067 = vmatpush2.bf16.msra.mxu0 %v4850
        %5068 = vmatprep.subr.bf16.mxu0 0
        %5069 = vmatpush2.bf16.msra.mxu0 %v4849
        %5070 = vmatprep.subr.bf16.mxu0 0
        %5071 = vmatpush2.bf16.msra.mxu0 %v4848
        %5072 = vmatprep.mubr.bf16.mxu0 %v4407
        %5073 = vmatmul.mubr.bf16.gmra.mxu0 %v4406
        %v5074 = vpop.f32.mrf.mxu0
        %v5075 = vadd.f32 %v5035, %v5074
        %v5076 = vpop.f32.mrf.mxu0
        %v5077 = vpop.f32.mrf.mxu0
        %v5078 = vpop.f32.mrf.mxu0
        %5079 = vdwg.mxu0
        %5081 = vset.pattern.permute.xlu0 0
        %5082 = vperm.xlu0 %5081, %v4391
        %v5083 = vpop.permute.xlu0 %5082
        %v5085 = vmul.f32 %v5075, %v5083
        %v5086 = vlaneseq
        %v5087 = vand.u32 %v5086, 127
        %vm5088 = vcmp.eq.s32.totalorder %v5087, 16
        %v5089 = vsel %vm5088, %v5083, %v5085
        %5090 = vst [vmem:[%s479] sm:$0xff] %v5089
        %v5091 = vpack.c.bf16 %v4310, %v4310
        %v5092 = vpack.c.bf16 %v4312, %v4312
        %v5093 = vpack.c.bf16 %v4314, %v4314
        %v5094 = vpack.c.bf16 %v4316, %v4316
        %v5095 = vpack.c.bf16 %v4318, %v4318
        %v5096 = vpack.c.bf16 %v4320, %v4320
        %v5097 = vpack.c.bf16 %v4322, %v4322
        %v5098 = vpack.c.bf16 %v4324, %v4324
        %v5107 = vunpack.c.l.b16 %v5091
        %v5108 = vunpack.c.l.b16 %v5092
        %v5109 = vunpack.c.l.b16 %v5093
        %v5110 = vunpack.c.l.b16 %v5094
        %v5111 = vunpack.c.l.b16 %v5095
        %v5112 = vunpack.c.l.b16 %v5096
        %v5113 = vunpack.c.l.b16 %v5097
        %v5114 = vunpack.c.l.b16 %v5098
        %v5115 = vpack.c.b16 %v5108, %v5107
        %v5116 = vpack.c.b16 %v5110, %v5109
        %v5117 = vpack.c.b16 %v5112, %v5111
        %v5118 = vpack.c.b16 %v5114, %v5113
        %5123 = vst [vmem:[%s486] sm:$0xff] %v5115
        %5124 = vst [vmem:[%s486 + $0x8] sm:$0xff] %v5116
        %5125 = vst [vmem:[%s486 + $0x10] sm:$0xff] %v5117
        %5126 = vst [vmem:[%s486 + $0x18] sm:$0xff] %v5118
        %s5127 = sand.u32 %s214, 1
        %s5128 = scalar_lea.sflag [#allocation4], %s5127
        %s5129 = sand.u32 %s214, 1
        %s5130 = smul.addr %s5129, 8
        %s5131 = scalar_lea.vmem [#allocation11], %s5130
        %s5132 = sand.u32 %s242, 1
        %s5133 = scalar_lea.sflag [#allocation13], %s5132
        %s5134 = sand.u32 %s242, 1
        %s5135 = smul.addr %s5134, 32
        %s5136 = scalar_lea.vmem [#allocation12], %s5135
        // Predicated region
        $region65: #{tpu_custom_call.1} parent=43 // pred_check
          %p5137 = pneg %p224
        $region66: #{tpu_custom_call.1} parent=43 // pred_check_branch
          %5139 = sbr.rel (%p5137) target = $region68
        $region67: #{tpu_custom_call.1} parent=43 // pred_region
          %s5141 = ssub.s32 128, 128
          %5142 = vsyncadd %s5128, %s5141
          %s5143 = sadd.s32 %s39, %s38
          %s5144 = smul.addr %s5143, 128
          %s5145 = scalar_lea.hbm %s6, %s5144
          %s5147 = sshll.u32 %s5131, 4
          %s5148 = int_to_ptr.vmem [resolvable:$true] %s5147
          %5150 = dma.vmem_to_hbm [thread:$0]  %s5148, 128, %s5145, %s5128
        $region68: #{tpu_custom_call.1} parent=43 // pred_fallthru
          _
        // Predicated region
        $region69: #{tpu_custom_call.1} parent=43 // pred_check
          %p5151 = pneg %p252
        $region70: #{tpu_custom_call.1} parent=43 // pred_check_branch
          %5153 = sbr.rel (%p5151) target = $region72
        $region71: #{tpu_custom_call.1} parent=43 // pred_region
          %s5155 = ssub.s32 512, 512
          %5156 = vsyncadd %s5133, %s5155
          %s5157 = smul.addr %s39, 8
          %s5158 = smul.addr %s38, 8
          %s5159 = sadd.s32 %s5157, %s5158
          %s5160 = smul.addr %s5159, 64
          %s5161 = scalar_lea.hbm %s7, %s5160
          %s5163 = sshll.u32 %s5136, 4
          %s5164 = int_to_ptr.vmem [resolvable:$true] %s5163
          %5166 = dma.vmem_to_hbm [thread:$0]  %s5164, 512, %s5161, %s5133
        $region72: #{tpu_custom_call.1} parent=43 // pred_fallthru
          _
      $region44: #{tpu_custom_call.1} parent=5 // pred_fallthru
        _
      %p5167 = scmp.le.s32.totalorder 2, %s29
      // Predicated region
      $region73: #{tpu_custom_call.1} parent=5 // pred_check
        %p5168 = pneg %p5167
      $region74: #{tpu_custom_call.1} parent=5 // pred_check_branch
        %5170 = sbr.rel (%p5168) target = $region76
      $region75: #{tpu_custom_call.1} parent=5 // pred_region
        %s5171 = ssub.s32 %s29, 2
        // Predicated region
        $region77: #{tpu_custom_call.1} parent=75 // pred_check
          %p5172 = pneg %p230
        $region78: #{tpu_custom_call.1} parent=75 // pred_check_branch
          %5174 = sbr.rel (%p5172) target = $region80
        $region79: #{tpu_custom_call.1} parent=75 // pred_region
          %s5175 = sand.u32 %s215, 1
          %s5176 = scalar_lea.sflag [#allocation4], %s5175
          %s5177 = sand.u32 %s215, 1
          %s5178 = smul.addr %s5177, 8
          %s5179 = scalar_lea.vmem [#allocation11], %s5178
          %5180 = dma.done %s5176, 128
        $region80: #{tpu_custom_call.1} parent=75 // pred_fallthru
          _
        // Predicated region
        $region81: #{tpu_custom_call.1} parent=75 // pred_check
          %p5181 = pneg %p258
        $region82: #{tpu_custom_call.1} parent=75 // pred_check_branch
          %5183 = sbr.rel (%p5181) target = $region84
        $region83: #{tpu_custom_call.1} parent=75 // pred_region
          %s5184 = sand.u32 %s243, 1
          %s5185 = scalar_lea.sflag [#allocation13], %s5184
          %s5186 = sand.u32 %s243, 1
          %s5187 = smul.addr %s5186, 32
          %s5188 = scalar_lea.vmem [#allocation12], %s5187
          %5189 = dma.done %s5185, 512
        $region84: #{tpu_custom_call.1} parent=75 // pred_fallthru
          _
      $region76: #{tpu_custom_call.1} parent=5 // pred_fallthru
        _
    $region6: #{tpu_custom_call.1} parent=1 // loop_footer
      %s33 = sadd.s32 1, %s29
    $region7: #{tpu_custom_call.1} parent=1 // loop_footer_branch
      %28 = sbr.rel target = $region3
    $region8: #{tpu_custom_call.1} parent=1 // loop_exit
      _
    %5190 = vsyncpa [#allocation3], 1
    %s5191 = scalar_lea.sflag [#allocation3], 1
    %5192 = vsyncpa %s5191, 1
    %5193 = vsyncpa [#allocation6], 1
    %s5194 = scalar_lea.sflag [#allocation6], 1
    %5195 = vsyncpa %s5194, 1
    %5196 = vsyncpa [#allocation9], 1
    %s5197 = scalar_lea.sflag [#allocation9], 1
    %5198 = vsyncpa %s5197, 1
    %5199 = vsyncpa [#allocation4], 1
    %s5200 = scalar_lea.sflag [#allocation4], 1
    %5201 = vsyncpa %s5200, 1
    %5202 = vsyncpa [#allocation13], 1
    %s5203 = scalar_lea.sflag [#allocation13], 1
    %5204 = vsyncpa %s5203, 1

</llo_original>
